<compile_context>
chip_gen: v7x
topology: tpu7x:2x2x1
jax: 0.10.0
libtpu: 0.0.40
codegen_flags: <defaults>
</compile_context>

<pallas_src>
import math

import jax
import jax.numpy as jnp
from jax import lax
from jax.experimental import pallas as pl
from jax.experimental.pallas import tpu as pltpu  # noqa: F401  (kept for parity; no scratch needed)


# --------------------------------------------------------------------------
# Fused Pallas kernel
# --------------------------------------------------------------------------

def _make_encoder_kernel(S, B, E, H, n_highway, n_layers):
    """Fully fused NestedEncoder forward.

    Ref layout (all f32):
      x_ref      : (S*B, E)            time-major rows (row block t*B:(t+1)*B == timestep t)
      w_hw_ref   : (n_highway, E, 3E)  packed [nonlinear | linear | gate]
      b_hw_ref   : (n_highway, 1, 3E)
      per LSTM layer l (3 refs):
        wih_ref  : (In_l, 8H)          packed gate cols [i_f|i_b|f_f|f_b|o_f|o_b|g_f|g_b]
        whh_ref  : (2H, 8H)            block-diagonal (h_f rows -> fwd cols, h_b rows -> bwd cols)
        b_ref    : (1, 8H)             b_ih + b_hh, same column layout
      w_out_ref  : (4H, 2L)            packed [W_mu | W_logvar]
      b_out_ref  : (1, 2L)
      out_ref    : (B, 2L)
    """

    def kernel(*refs):
        it = iter(refs)
        x_ref = next(it)
        w_hw_ref = next(it)
        b_hw_ref = next(it)
        lstm_refs = [tuple(next(it) for _ in range(3)) for _ in range(n_layers)]
        w_out_ref = next(it)
        b_out_ref = next(it)
        out_ref = next(it)

        # ---- Highway stack: one (S*B,E)x(E,3E) matmul per layer, fused gating ----
        x = x_ref[...]
        for i in range(n_highway):
            z = jnp.dot(x, w_hw_ref[i], preferred_element_type=jnp.float32) + b_hw_ref[i]
            nonlin = jnp.maximum(z[:, 0:E], 0.0)
            lin = z[:, E:2 * E]
            gate = jax.nn.sigmoid(z[:, 2 * E:3 * E])
            x = gate * nonlin + (1.0 - gate) * lin            # (S*B, E)

        # ---- Static lane masks (constants; compiler hoists) ----
        col8 = lax.broadcasted_iota(jnp.int32, (B, 8 * H), 1)
        fwd_gate_mask = (col8 % (2 * H)) < H                  # True on fwd gate columns
        col2 = lax.broadcasted_iota(jnp.int32, (B, 2 * H), 1)
        fwd_half_mask = col2 < H                              # True on the h_f half of the state

        # ---- Bidirectional stacked LSTM: fwd+bwd lane-packed, time loop fully unrolled ----
        # TODO(synk): nn.LSTM inter-layer dropout is train-time only; eval forward omits it.
        layer_in = x
        h = c = None
        for l in range(n_layers):
            wih_ref, whh_ref, b_ref = lstm_refs[l]

            # Hoisted fused input projection: one (S*B, In) x (In, 8H) matmul, bias folded in.
            g_all = (jnp.dot(layer_in, wih_ref[...],
                             preferred_element_type=jnp.float32) + b_ref[...])   # (S*B, 8H)
            whh = whh_ref[...]                                                   # (2H, 8H)

            h = jnp.zeros((B, 2 * H), jnp.float32)            # [h_f | h_b]
            c = jnp.zeros((B, 2 * H), jnp.float32)            # [c_f | c_b]
            collect = l < n_layers - 1                        # last layer only needs (h, c)
            hs = []                                           # hs[t] = [h_f(t) | h_b(S-1-t)]

            for t in range(S):                                # fully unrolled: S is static
                tb = S - 1 - t
                # fwd columns from timestep t, bwd columns from timestep tb (one vsel).
                pre = jnp.where(fwd_gate_mask,
                                g_all[t * B:(t + 1) * B, :],
                                g_all[tb * B:(tb + 1) * B, :])
                gates = pre + jnp.dot(h, whh, preferred_element_type=jnp.float32)  # (B, 8H)
                sig = jax.nn.sigmoid(gates[:, 0:6 * H])       # i|f|o for both dirs: 1 EUP push
                g_g = jnp.tanh(gates[:, 6 * H:8 * H])         # g for both dirs:     1 EUP push
                i_g = sig[:, 0:2 * H]
                f_g = sig[:, 2 * H:4 * H]
                o_g = sig[:, 4 * H:6 * H]
                c = f_g * c + i_g * g_g                       # packed (B, 2H)
                h = o_g * jnp.tanh(c)                         # packed (B, 2H)
                if collect:
                    hs.append(h)

            if collect:
                # Next-layer input at time t = [h_f(t) | h_b(t)]; assemble with lane selects
                # and a single sublane concat (no masked VMEM stores, no scratch round trip).
                rows = [jnp.where(fwd_half_mask, hs[t], hs[S - 1 - t]) for t in range(S)]
                layer_in = jnp.concatenate(rows, axis=0)      # (S*B, 2H)

        # ---- process_state: final_state = [h_fwd | h_bwd | c_fwd | c_bwd] (already lane-packed) ----
        final_state = jnp.concatenate([h, c], axis=1)         # (B, 4H)

        # ---- packed mu / logvar projection -> single (B, 2L) lane-packed output ----
        out_ref[...] = (jnp.dot(final_state, w_out_ref[...],
                                preferred_element_type=jnp.float32) + b_out_ref[...])

    return kernel


def nested_encoder_forward(packed, source_inputs):
    """source_inputs: (B, S, input_size) float -> (mu, logvar), each (B, latent_size)."""
    B, S, E = source_inputs.shape
    H = packed['lstm'][0][1].shape[0] // 2        # whh_packed is (2H, 8H)
    L = packed['w_out'].shape[1] // 2
    n_layers = len(packed['lstm'])
    n_highway = packed['hw_w'].shape[0]

    # Time-major flatten so row block t*B:(t+1)*B is timestep t (8-sublane aligned for B=8).
    x2 = jnp.transpose(source_inputs, (1, 0, 2)).reshape(S * B, E).astype(jnp.float32)

    flat_lstm = []
    for (wih, whh, b) in packed['lstm']:
        flat_lstm += [wih, whh, b]

    kernel = _make_encoder_kernel(S, B, E, H, n_highway, n_layers)
    out = pl.pallas_call(
        kernel,
        out_shape=jax.ShapeDtypeStruct((B, 2 * L), jnp.float32),
    )(x2, packed['hw_w'], packed['hw_b'], *flat_lstm, packed['w_out'], packed['b_out'])

    return out[:, :L], out[:, L:]


# --------------------------------------------------------------------------
# Parameter init (deterministic, PyTorch-style uniform fan-in) in RAW layout
# --------------------------------------------------------------------------

def _uniform(key, shape, bound):
    return jax.random.uniform(key, shape, jnp.float32, -bound, bound)


def init_raw_params(key, input_size, hidden_size, latent_size, number_layers, n_highway):
    """Raw PyTorch-layout parameters (gate order i,f,g,o; W_ih (4H,in); W_hh (4H,H))."""
    E, H, L = input_size, hidden_size, latent_size
    keys = iter(jax.random.split(key, 6 * n_highway + 8 * number_layers + 4))
    p = {}

    # TODO(synk): HighwayLayer is an external object in the spec; implemented as the standard
    #             gate*relu(Wn x) + (1-gate)*(Wl x) highway layer.
    bound = 1.0 / math.sqrt(E)
    hw = []
    for _ in range(n_highway):
        w_n = _uniform(next(keys), (E, E), bound); b_n = _uniform(next(keys), (E,), bound)
        w_l = _uniform(next(keys), (E, E), bound); b_l = _uniform(next(keys), (E,), bound)
        w_g = _uniform(next(keys), (E, E), bound); b_g = _uniform(next(keys), (E,), bound)
        hw.append((w_n, b_n, w_l, b_l, w_g, b_g))
    p['highway'] = hw

    bound = 1.0 / math.sqrt(H)
    lstm = []
    for l in range(number_layers):
        in_size = E if l == 0 else 2 * H
        dirs = []
        for _ in range(2):                         # forward, backward
            w_ih = _uniform(next(keys), (4 * H, in_size), bound)
            w_hh = _uniform(next(keys), (4 * H, H), bound)
            b_ih = _uniform(next(keys), (4 * H,), bound)
            b_hh = _uniform(next(keys), (4 * H,), bound)
            dirs.append((w_ih, w_hh, b_ih, b_hh))
        lstm.append(tuple(dirs))
    p['lstm'] = lstm

    bound = 1.0 / math.sqrt(4 * H)
    p['w_mu'] = _uniform(next(keys), (L, 4 * H), bound)
    p['b_mu'] = _uniform(next(keys), (L,), bound)
    p['w_logvar'] = _uniform(next(keys), (L, 4 * H), bound)
    p['b_logvar'] = _uniform(next(keys), (L,), bound)
    return p


# --------------------------------------------------------------------------
# Host-side packing into the kernel layout
# --------------------------------------------------------------------------

def pack_params(raw):
    H = raw['lstm'][0][0][1].shape[1]              # w_hh is (4H, H)
    p = {}

    hw_w, hw_b = [], []
    for (w_n, b_n, w_l, b_l, w_g, b_g) in raw['highway']:
        hw_w.append(jnp.concatenate([w_n.T, w_l.T, w_g.T], axis=1))     # (E, 3E)
        hw_b.append(jnp.concatenate([b_n, b_l, b_g]).reshape(1, -1))    # (1, 3E)
    p['hw_w'] = jnp.stack(hw_w)
    p['hw_b'] = jnp.stack(hw_b)

    def split_cols(w_t):                           # (in, 4H), PyTorch gate cols i,f,g,o
        return (w_t[:, 0:H], w_t[:, H:2 * H], w_t[:, 2 * H:3 * H], w_t[:, 3 * H:4 * H])

    lstm = []
    for (w_ih_f, w_hh_f, b_ih_f, b_hh_f), (w_ih_b, w_hh_b, b_ih_b, b_hh_b) in raw['lstm']:
        # Input weights: interleave directions per gate, sigmoid gates first, tanh gate last.
        i_f, f_f, g_f, o_f = split_cols(w_ih_f.T)
        i_b, f_b, g_b, o_b = split_cols(w_ih_b.T)
        wih = jnp.concatenate([i_f, i_b, f_f, f_b, o_f, o_b, g_f, g_b], axis=1)   # (In, 8H)

        # Recurrent weights: block-diagonal so [h_f|h_b] drives fwd/bwd columns respectively.
        hi_f, hf_f, hg_f, ho_f = split_cols(w_hh_f.T)
        hi_b, hf_b, hg_b, ho_b = split_cols(w_hh_b.T)
        Z = jnp.zeros((H, H), jnp.float32)
        fwd_rows = jnp.concatenate([hi_f, Z, hf_f, Z, ho_f, Z, hg_f, Z], axis=1)  # (H, 8H)
        bwd_rows = jnp.concatenate([Z, hi_b, Z, hf_b, Z, ho_b, Z, hg_b], axis=1)  # (H, 8H)
        whh = jnp.concatenate([fwd_rows, bwd_rows], axis=0)                       # (2H, 8H)

        bf = b_ih_f + b_hh_f
        bb = b_ih_b + b_hh_b
        b = jnp.concatenate([bf[0:H], bb[0:H], bf[H:2 * H], bb[H:2 * H],
                             bf[3 * H:4 * H], bb[3 * H:4 * H],
                             bf[2 * H:3 * H], bb[2 * H:3 * H]]).reshape(1, -1)    # (1, 8H)
        lstm.append((wih, whh, b))
    p['lstm'] = lstm

    p['w_out'] = jnp.concatenate([raw['w_mu'].T, raw['w_logvar'].T], axis=1)      # (4H, 2L)
    p['b_out'] = jnp.concatenate([raw['b_mu'], raw['b_logvar']]).reshape(1, -1)   # (1, 2L)
    return p


# --------------------------------------------------------------------------
# Pure-JAX reference (PyTorch semantics, HIGHEST precision) for correctness check
# --------------------------------------------------------------------------

def reference_forward(raw, source_inputs):
    HI = lax.Precision.HIGHEST
    B, S, E = source_inputs.shape
    H = raw['lstm'][0][0][1].shape[1]

    x = source_inputs.astype(jnp.float32)
    for (w_n, b_n, w_l, b_l, w_g, b_g) in raw['highway']:
        xf = x.reshape(B * S, E)
        nonlin = jnp.maximum(jnp.dot(xf, w_n.T, precision=HI) + b_n, 0.0)
        lin = jnp.dot(xf, w_l.T, precision=HI) + b_l
        gate = jax.nn.sigmoid(jnp.dot(xf, w_g.T, precision=HI) + b_g)
        x = (gate * nonlin + (1.0 - gate) * lin).reshape(B, S, E)

    def run_dir(x_seq, w_ih, w_hh, b_ih, b_hh):
        def step(carry, x_t):
            h, c = carry
            g = (jnp.dot(x_t, w_ih.T, precision=HI)
                 + jnp.dot(h, w_hh.T, precision=HI) + b_ih + b_hh)
            i = jax.nn.sigmoid(g[:, 0:H]); f = jax.nn.sigmoid(g[:, H:2 * H])
            gg = jnp.tanh(g[:, 2 * H:3 * H]); o = jax.nn.sigmoid(g[:, 3 * H:4 * H])
            c = f * c + i * gg
            h = o * jnp.tanh(c)
            return (h, c), h
        (h, c), hs = lax.scan(step,
                              (jnp.zeros((B, H), jnp.float32),
                               jnp.zeros((B, H), jnp.float32)),
                              jnp.transpose(x_seq, (1, 0, 2)))
        return h, c, jnp.transpose(hs, (1, 0, 2))

    layer_in = x
    h_f = c_f = h_b = c_b = None
    for (fwd, bwd) in raw['lstm']:
        h_f, c_f, seq_f = run_dir(layer_in, *fwd)
        h_b, c_b, seq_b_rev = run_dir(jnp.flip(layer_in, axis=1), *bwd)
        layer_in = jnp.concatenate([seq_f, jnp.flip(seq_b_rev, axis=1)], axis=-1)

    final = jnp.concatenate([h_f, h_b, c_f, c_b], axis=-1)    # process_state(h) ++ process_state(c)
    mu = jnp.dot(final, raw['w_mu'].T, precision=HI) + raw['b_mu']
    logvar = jnp.dot(final, raw['w_logvar'].T, precision=HI) + raw['b_logvar']
    return mu, logvar


# --------------------------------------------------------------------------
# Main
# --------------------------------------------------------------------------

if __name__ == "__main__":
    INPUT, HIDDEN, LATENT = 32, 16, 8
    N_LAYERS, N_HIGHWAY = 2, 2
    B, S = 8, 8

    key = jax.random.PRNGKey(0)
    k_p, k_x = jax.random.split(key)
    raw = init_raw_params(k_p, INPUT, HIDDEN, LATENT, N_LAYERS, N_HIGHWAY)
    packed = pack_params(raw)
    source = jax.random.normal(k_x, (B, S, INPUT), jnp.float32)

    mu, logvar = nested_encoder_forward(packed, source)
    jax.block_until_ready((mu, logvar))

    mu_ref, lv_ref = reference_forward(raw, source)

    assert mu.shape == (B, LATENT) and logvar.shape == (B, LATENT)
    assert bool(jnp.all(jnp.isfinite(mu))) and bool(jnp.all(jnp.isfinite(logvar)))
    assert bool(jnp.allclose(mu, mu_ref, atol=2e-3, rtol=2e-3))
    assert bool(jnp.allclose(logvar, lv_ref, atol=2e-3, rtol=2e-3))
    print("KERNEL_OK")
</pallas_src>

<mosaic_0001>
module attributes {stable_mosaic.version = 11 : i64} {
  func.func @kernel(%arg0: memref<64x32xf32, #tpu.memory_space<vmem>>, %arg1: memref<2x32x96xf32, #tpu.memory_space<vmem>>, %arg2: memref<2x1x96xf32, #tpu.memory_space<vmem>>, %arg3: memref<32x128xf32, #tpu.memory_space<vmem>>, %arg4: memref<32x128xf32, #tpu.memory_space<vmem>>, %arg5: memref<1x128xf32, #tpu.memory_space<vmem>>, %arg6: memref<32x128xf32, #tpu.memory_space<vmem>>, %arg7: memref<32x128xf32, #tpu.memory_space<vmem>>, %arg8: memref<1x128xf32, #tpu.memory_space<vmem>>, %arg9: memref<64x16xf32, #tpu.memory_space<vmem>>, %arg10: memref<1x16xf32, #tpu.memory_space<vmem>>, %arg11: memref<8x16xf32, #tpu.memory_space<vmem>>) attributes {dimension_semantics = [], scalar_prefetch = 0 : i64, scratch_operands = 0 : i64, tpu.core_type = #tpu.core_type<tc>} {
    %c0 = arith.constant 0 : index
    %c0_0 = arith.constant 0 : index
    %0 = vector.load %arg0[%c0, %c0_0] : memref<64x32xf32, #tpu.memory_space<vmem>>, vector<64x32xf32>
    %c0_1 = arith.constant 0 : index
    %c0_2 = arith.constant 0 : index
    %c0_3 = arith.constant 0 : index
    %1 = vector.load %arg1[%c0_1, %c0_2, %c0_3] : memref<2x32x96xf32, #tpu.memory_space<vmem>>, vector<1x32x96xf32>
    %2 = vector.shape_cast %1 : vector<1x32x96xf32> to vector<32x96xf32>
    %cst = arith.constant dense<0.000000e+00> : vector<64x96xf32>
    %3 = tpu.matmul %0, %2, %cst {dimension_numbers = #tpu.dot_dimension_numbers<[1], [0], [0], [1], [0, 0, 1, 1], [], []>} : vector<64x32xf32>, vector<32x96xf32>, vector<64x96xf32> -> vector<64x96xf32>
    %c0_4 = arith.constant 0 : index
    %c0_5 = arith.constant 0 : index
    %c0_6 = arith.constant 0 : index
    %4 = vector.load %arg2[%c0_4, %c0_5, %c0_6] : memref<2x1x96xf32, #tpu.memory_space<vmem>>, vector<1x1x96xf32>
    %5 = vector.shape_cast %4 : vector<1x1x96xf32> to vector<1x96xf32>
    %6 = vector.broadcast %5 : vector<1x96xf32> to vector<64x96xf32>
    %7 = arith.addf %3, %6 : vector<64x96xf32>
    %8 = vector.extract_strided_slice %7 {offsets = [0, 0], sizes = [64, 32], strides = [1, 1]} : vector<64x96xf32> to vector<64x32xf32>
    %cst_7 = arith.constant 0.000000e+00 : f32
    %9 = vector.broadcast %cst_7 : f32 to vector<64x32xf32>
    %10 = arith.maximumf %8, %9 : vector<64x32xf32>
    %11 = vector.extract_strided_slice %7 {offsets = [0, 32], sizes = [64, 32], strides = [1, 1]} : vector<64x96xf32> to vector<64x32xf32>
    %12 = vector.extract_strided_slice %7 {offsets = [0, 64], sizes = [64, 32], strides = [1, 1]} : vector<64x96xf32> to vector<64x32xf32>
    %13 = arith.negf %12 : vector<64x32xf32>
    %14 = math.exp %13 : vector<64x32xf32>
    %cst_8 = arith.constant 1.000000e+00 : f32
    %15 = vector.broadcast %cst_8 : f32 to vector<64x32xf32>
    %16 = arith.addf %15, %14 : vector<64x32xf32>
    %17 = arith.divf %15, %16 : vector<64x32xf32>
    %18 = arith.mulf %17, %10 : vector<64x32xf32>
    %cst_9 = arith.constant 1.000000e+00 : f32
    %19 = vector.broadcast %cst_9 : f32 to vector<64x32xf32>
    %20 = arith.subf %19, %17 : vector<64x32xf32>
    %21 = arith.mulf %20, %11 : vector<64x32xf32>
    %22 = arith.addf %18, %21 : vector<64x32xf32>
    %c1 = arith.constant 1 : index
    %c0_10 = arith.constant 0 : index
    %c0_11 = arith.constant 0 : index
    %23 = vector.load %arg1[%c1, %c0_10, %c0_11] : memref<2x32x96xf32, #tpu.memory_space<vmem>>, vector<1x32x96xf32>
    %24 = vector.shape_cast %23 : vector<1x32x96xf32> to vector<32x96xf32>
    %cst_12 = arith.constant dense<0.000000e+00> : vector<64x96xf32>
    %25 = tpu.matmul %22, %24, %cst_12 {dimension_numbers = #tpu.dot_dimension_numbers<[1], [0], [0], [1], [0, 0, 1, 1], [], []>} : vector<64x32xf32>, vector<32x96xf32>, vector<64x96xf32> -> vector<64x96xf32>
    %c1_13 = arith.constant 1 : index
    %c0_14 = arith.constant 0 : index
    %c0_15 = arith.constant 0 : index
    %26 = vector.load %arg2[%c1_13, %c0_14, %c0_15] : memref<2x1x96xf32, #tpu.memory_space<vmem>>, vector<1x1x96xf32>
    %27 = vector.shape_cast %26 : vector<1x1x96xf32> to vector<1x96xf32>
    %28 = vector.broadcast %27 : vector<1x96xf32> to vector<64x96xf32>
    %29 = arith.addf %25, %28 : vector<64x96xf32>
    %30 = vector.extract_strided_slice %29 {offsets = [0, 0], sizes = [64, 32], strides = [1, 1]} : vector<64x96xf32> to vector<64x32xf32>
    %cst_16 = arith.constant 0.000000e+00 : f32
    %31 = vector.broadcast %cst_16 : f32 to vector<64x32xf32>
    %32 = arith.maximumf %30, %31 : vector<64x32xf32>
    %33 = vector.extract_strided_slice %29 {offsets = [0, 32], sizes = [64, 32], strides = [1, 1]} : vector<64x96xf32> to vector<64x32xf32>
    %34 = vector.extract_strided_slice %29 {offsets = [0, 64], sizes = [64, 32], strides = [1, 1]} : vector<64x96xf32> to vector<64x32xf32>
    %35 = arith.negf %34 : vector<64x32xf32>
    %36 = math.exp %35 : vector<64x32xf32>
    %cst_17 = arith.constant 1.000000e+00 : f32
    %37 = vector.broadcast %cst_17 : f32 to vector<64x32xf32>
    %38 = arith.addf %37, %36 : vector<64x32xf32>
    %39 = arith.divf %37, %38 : vector<64x32xf32>
    %40 = arith.mulf %39, %32 : vector<64x32xf32>
    %cst_18 = arith.constant 1.000000e+00 : f32
    %41 = vector.broadcast %cst_18 : f32 to vector<64x32xf32>
    %42 = arith.subf %41, %39 : vector<64x32xf32>
    %43 = arith.mulf %42, %33 : vector<64x32xf32>
    %44 = arith.addf %40, %43 : vector<64x32xf32>
    %45 = tpu.iota {dimensions = array<i32: 1>} : vector<8x128xi32>
    %c32_i32 = arith.constant 32 : i32
    %c0_i32 = arith.constant 0 : i32
    %46 = arith.cmpi eq, %c32_i32, %c0_i32 : i32
    %c1_i32 = arith.constant 1 : i32
    %47 = arith.select %46, %c1_i32, %c32_i32 : i32
    %48 = vector.broadcast %47 : i32 to vector<8x128xi32>
    %49 = arith.remsi %45, %48 : vector<8x128xi32>
    %c0_i32_19 = arith.constant 0 : i32
    %50 = vector.broadcast %c0_i32_19 : i32 to vector<8x128xi32>
    %51 = arith.cmpi ne, %49, %50 : vector<8x128xi32>
    %c0_i32_20 = arith.constant 0 : i32
    %52 = vector.broadcast %c0_i32_20 : i32 to vector<8x128xi32>
    %53 = arith.cmpi slt, %49, %52 : vector<8x128xi32>
    %c0_i32_21 = arith.constant 0 : i32
    %54 = arith.cmpi slt, %47, %c0_i32_21 : i32
    %55 = vector.broadcast %54 : i1 to vector<8x128xi1>
    %56 = vector.broadcast %55 : vector<8x128xi1> to vector<8x128xi1>
    %57 = arith.xori %53, %56 : vector<8x128xi1>
    %58 = arith.andi %57, %51 : vector<8x128xi1>
    %59 = vector.broadcast %47 : i32 to vector<8x128xi32>
    %60 = arith.addi %49, %59 : vector<8x128xi32>
    %61 = arith.select %58, %60, %49 : vector<8x128xi1>, vector<8x128xi32>
    %c16_i32 = arith.constant 16 : i32
    %62 = vector.broadcast %c16_i32 : i32 to vector<8x128xi32>
    %63 = arith.cmpi slt, %61, %62 : vector<8x128xi32>
    %64 = tpu.iota {dimensions = array<i32: 1>} : vector<8x32xi32>
    %c16_i32_22 = arith.constant 16 : i32
    %65 = vector.broadcast %c16_i32_22 : i32 to vector<8x32xi32>
    %66 = arith.cmpi slt, %64, %65 : vector<8x32xi32>
    %c0_23 = arith.constant 0 : index
    %c0_24 = arith.constant 0 : index
    %67 = vector.load %arg3[%c0_23, %c0_24] : memref<32x128xf32, #tpu.memory_space<vmem>>, vector<32x128xf32>
    %cst_25 = arith.constant dense<0.000000e+00> : vector<64x128xf32>
    %68 = tpu.matmul %44, %67, %cst_25 {dimension_numbers = #tpu.dot_dimension_numbers<[1], [0], [0], [1], [0, 0, 1, 1], [], []>} : vector<64x32xf32>, vector<32x128xf32>, vector<64x128xf32> -> vector<64x128xf32>
    %c0_26 = arith.constant 0 : index
    %c0_27 = arith.constant 0 : index
    %69 = vector.load %arg5[%c0_26, %c0_27] : memref<1x128xf32, #tpu.memory_space<vmem>>, vector<1x128xf32>
    %70 = vector.broadcast %69 : vector<1x128xf32> to vector<64x128xf32>
    %71 = arith.addf %68, %70 : vector<64x128xf32>
    %c0_28 = arith.constant 0 : index
    %c0_29 = arith.constant 0 : index
    %72 = vector.load %arg4[%c0_28, %c0_29] : memref<32x128xf32, #tpu.memory_space<vmem>>, vector<32x128xf32>
    %cst_30 = arith.constant 0.000000e+00 : f32
    %73 = vector.broadcast %cst_30 : f32 to vector<8x32xf32>
    %cst_31 = arith.constant 0.000000e+00 : f32
    %74 = vector.broadcast %cst_31 : f32 to vector<8x32xf32>
    %75 = vector.extract_strided_slice %71 {offsets = [0, 0], sizes = [8, 128], strides = [1, 1]} : vector<64x128xf32> to vector<8x128xf32>
    %76 = vector.extract_strided_slice %71 {offsets = [56, 0], sizes = [8, 128], strides = [1, 1]} : vector<64x128xf32> to vector<8x128xf32>
    %77 = arith.select %63, %75, %76 : vector<8x128xi1>, vector<8x128xf32>
    %cst_32 = arith.constant dense<0.000000e+00> : vector<8x128xf32>
    %78 = tpu.matmul %73, %72, %cst_32 {dimension_numbers = #tpu.dot_dimension_numbers<[1], [0], [0], [1], [0, 0, 1, 1], [], []>} : vector<8x32xf32>, vector<32x128xf32>, vector<8x128xf32> -> vector<8x128xf32>
    %79 = arith.addf %77, %78 : vector<8x128xf32>
    %80 = vector.extract_strided_slice %79 {offsets = [0, 0], sizes = [8, 96], strides = [1, 1]} : vector<8x128xf32> to vector<8x96xf32>
    %81 = arith.negf %80 : vector<8x96xf32>
    %82 = math.exp %81 : vector<8x96xf32>
    %cst_33 = arith.constant 1.000000e+00 : f32
    %83 = vector.broadcast %cst_33 : f32 to vector<8x96xf32>
    %84 = arith.addf %83, %82 : vector<8x96xf32>
    %85 = arith.divf %83, %84 : vector<8x96xf32>
    %86 = vector.extract_strided_slice %79 {offsets = [0, 96], sizes = [8, 32], strides = [1, 1]} : vector<8x128xf32> to vector<8x32xf32>
    %87 = math.tanh %86 : vector<8x32xf32>
    %88 = vector.extract_strided_slice %85 {offsets = [0, 0], sizes = [8, 32], strides = [1, 1]} : vector<8x96xf32> to vector<8x32xf32>
    %89 = vector.extract_strided_slice %85 {offsets = [0, 32], sizes = [8, 32], strides = [1, 1]} : vector<8x96xf32> to vector<8x32xf32>
    %90 = vector.extract_strided_slice %85 {offsets = [0, 64], sizes = [8, 32], strides = [1, 1]} : vector<8x96xf32> to vector<8x32xf32>
    %91 = arith.mulf %89, %74 : vector<8x32xf32>
    %92 = arith.mulf %88, %87 : vector<8x32xf32>
    %93 = arith.addf %91, %92 : vector<8x32xf32>
    %94 = math.tanh %93 : vector<8x32xf32>
    %95 = arith.mulf %90, %94 : vector<8x32xf32>
    %96 = vector.extract_strided_slice %71 {offsets = [8, 0], sizes = [8, 128], strides = [1, 1]} : vector<64x128xf32> to vector<8x128xf32>
    %97 = vector.extract_strided_slice %71 {offsets = [48, 0], sizes = [8, 128], strides = [1, 1]} : vector<64x128xf32> to vector<8x128xf32>
    %98 = arith.select %63, %96, %97 : vector<8x128xi1>, vector<8x128xf32>
    %cst_34 = arith.constant dense<0.000000e+00> : vector<8x128xf32>
    %99 = tpu.matmul %95, %72, %cst_34 {dimension_numbers = #tpu.dot_dimension_numbers<[1], [0], [0], [1], [0, 0, 1, 1], [], []>} : vector<8x32xf32>, vector<32x128xf32>, vector<8x128xf32> -> vector<8x128xf32>
    %100 = arith.addf %98, %99 : vector<8x128xf32>
    %101 = vector.extract_strided_slice %100 {offsets = [0, 0], sizes = [8, 96], strides = [1, 1]} : vector<8x128xf32> to vector<8x96xf32>
    %102 = arith.negf %101 : vector<8x96xf32>
    %103 = math.exp %102 : vector<8x96xf32>
    %cst_35 = arith.constant 1.000000e+00 : f32
    %104 = vector.broadcast %cst_35 : f32 to vector<8x96xf32>
    %105 = arith.addf %104, %103 : vector<8x96xf32>
    %106 = arith.divf %104, %105 : vector<8x96xf32>
    %107 = vector.extract_strided_slice %100 {offsets = [0, 96], sizes = [8, 32], strides = [1, 1]} : vector<8x128xf32> to vector<8x32xf32>
    %108 = math.tanh %107 : vector<8x32xf32>
    %109 = vector.extract_strided_slice %106 {offsets = [0, 0], sizes = [8, 32], strides = [1, 1]} : vector<8x96xf32> to vector<8x32xf32>
    %110 = vector.extract_strided_slice %106 {offsets = [0, 32], sizes = [8, 32], strides = [1, 1]} : vector<8x96xf32> to vector<8x32xf32>
    %111 = vector.extract_strided_slice %106 {offsets = [0, 64], sizes = [8, 32], strides = [1, 1]} : vector<8x96xf32> to vector<8x32xf32>
    %112 = arith.mulf %110, %93 : vector<8x32xf32>
    %113 = arith.mulf %109, %108 : vector<8x32xf32>
    %114 = arith.addf %112, %113 : vector<8x32xf32>
    %115 = math.tanh %114 : vector<8x32xf32>
    %116 = arith.mulf %111, %115 : vector<8x32xf32>
    %117 = vector.extract_strided_slice %71 {offsets = [16, 0], sizes = [8, 128], strides = [1, 1]} : vector<64x128xf32> to vector<8x128xf32>
    %118 = vector.extract_strided_slice %71 {offsets = [40, 0], sizes = [8, 128], strides = [1, 1]} : vector<64x128xf32> to vector<8x128xf32>
    %119 = arith.select %63, %117, %118 : vector<8x128xi1>, vector<8x128xf32>
    %cst_36 = arith.constant dense<0.000000e+00> : vector<8x128xf32>
    %120 = tpu.matmul %116, %72, %cst_36 {dimension_numbers = #tpu.dot_dimension_numbers<[1], [0], [0], [1], [0, 0, 1, 1], [], []>} : vector<8x32xf32>, vector<32x128xf32>, vector<8x128xf32> -> vector<8x128xf32>
    %121 = arith.addf %119, %120 : vector<8x128xf32>
    %122 = vector.extract_strided_slice %121 {offsets = [0, 0], sizes = [8, 96], strides = [1, 1]} : vector<8x128xf32> to vector<8x96xf32>
    %123 = arith.negf %122 : vector<8x96xf32>
    %124 = math.exp %123 : vector<8x96xf32>
    %cst_37 = arith.constant 1.000000e+00 : f32
    %125 = vector.broadcast %cst_37 : f32 to vector<8x96xf32>
    %126 = arith.addf %125, %124 : vector<8x96xf32>
    %127 = arith.divf %125, %126 : vector<8x96xf32>
    %128 = vector.extract_strided_slice %121 {offsets = [0, 96], sizes = [8, 32], strides = [1, 1]} : vector<8x128xf32> to vector<8x32xf32>
    %129 = math.tanh %128 : vector<8x32xf32>
    %130 = vector.extract_strided_slice %127 {offsets = [0, 0], sizes = [8, 32], strides = [1, 1]} : vector<8x96xf32> to vector<8x32xf32>
    %131 = vector.extract_strided_slice %127 {offsets = [0, 32], sizes = [8, 32], strides = [1, 1]} : vector<8x96xf32> to vector<8x32xf32>
    %132 = vector.extract_strided_slice %127 {offsets = [0, 64], sizes = [8, 32], strides = [1, 1]} : vector<8x96xf32> to vector<8x32xf32>
    %133 = arith.mulf %131, %114 : vector<8x32xf32>
    %134 = arith.mulf %130, %129 : vector<8x32xf32>
    %135 = arith.addf %133, %134 : vector<8x32xf32>
    %136 = math.tanh %135 : vector<8x32xf32>
    %137 = arith.mulf %132, %136 : vector<8x32xf32>
    %138 = vector.extract_strided_slice %71 {offsets = [24, 0], sizes = [8, 128], strides = [1, 1]} : vector<64x128xf32> to vector<8x128xf32>
    %139 = vector.extract_strided_slice %71 {offsets = [32, 0], sizes = [8, 128], strides = [1, 1]} : vector<64x128xf32> to vector<8x128xf32>
    %140 = arith.select %63, %138, %139 : vector<8x128xi1>, vector<8x128xf32>
    %cst_38 = arith.constant dense<0.000000e+00> : vector<8x128xf32>
    %141 = tpu.matmul %137, %72, %cst_38 {dimension_numbers = #tpu.dot_dimension_numbers<[1], [0], [0], [1], [0, 0, 1, 1], [], []>} : vector<8x32xf32>, vector<32x128xf32>, vector<8x128xf32> -> vector<8x128xf32>
    %142 = arith.addf %140, %141 : vector<8x128xf32>
    %143 = vector.extract_strided_slice %142 {offsets = [0, 0], sizes = [8, 96], strides = [1, 1]} : vector<8x128xf32> to vector<8x96xf32>
    %144 = arith.negf %143 : vector<8x96xf32>
    %145 = math.exp %144 : vector<8x96xf32>
    %cst_39 = arith.constant 1.000000e+00 : f32
    %146 = vector.broadcast %cst_39 : f32 to vector<8x96xf32>
    %147 = arith.addf %146, %145 : vector<8x96xf32>
    %148 = arith.divf %146, %147 : vector<8x96xf32>
    %149 = vector.extract_strided_slice %142 {offsets = [0, 96], sizes = [8, 32], strides = [1, 1]} : vector<8x128xf32> to vector<8x32xf32>
    %150 = math.tanh %149 : vector<8x32xf32>
    %151 = vector.extract_strided_slice %148 {offsets = [0, 0], sizes = [8, 32], strides = [1, 1]} : vector<8x96xf32> to vector<8x32xf32>
    %152 = vector.extract_strided_slice %148 {offsets = [0, 32], sizes = [8, 32], strides = [1, 1]} : vector<8x96xf32> to vector<8x32xf32>
    %153 = vector.extract_strided_slice %148 {offsets = [0, 64], sizes = [8, 32], strides = [1, 1]} : vector<8x96xf32> to vector<8x32xf32>
    %154 = arith.mulf %152, %135 : vector<8x32xf32>
    %155 = arith.mulf %151, %150 : vector<8x32xf32>
    %156 = arith.addf %154, %155 : vector<8x32xf32>
    %157 = math.tanh %156 : vector<8x32xf32>
    %158 = arith.mulf %153, %157 : vector<8x32xf32>
    %159 = vector.extract_strided_slice %71 {offsets = [32, 0], sizes = [8, 128], strides = [1, 1]} : vector<64x128xf32> to vector<8x128xf32>
    %160 = vector.extract_strided_slice %71 {offsets = [24, 0], sizes = [8, 128], strides = [1, 1]} : vector<64x128xf32> to vector<8x128xf32>
    %161 = arith.select %63, %159, %160 : vector<8x128xi1>, vector<8x128xf32>
    %cst_40 = arith.constant dense<0.000000e+00> : vector<8x128xf32>
    %162 = tpu.matmul %158, %72, %cst_40 {dimension_numbers = #tpu.dot_dimension_numbers<[1], [0], [0], [1], [0, 0, 1, 1], [], []>} : vector<8x32xf32>, vector<32x128xf32>, vector<8x128xf32> -> vector<8x128xf32>
    %163 = arith.addf %161, %162 : vector<8x128xf32>
    %164 = vector.extract_strided_slice %163 {offsets = [0, 0], sizes = [8, 96], strides = [1, 1]} : vector<8x128xf32> to vector<8x96xf32>
    %165 = arith.negf %164 : vector<8x96xf32>
    %166 = math.exp %165 : vector<8x96xf32>
    %cst_41 = arith.constant 1.000000e+00 : f32
    %167 = vector.broadcast %cst_41 : f32 to vector<8x96xf32>
    %168 = arith.addf %167, %166 : vector<8x96xf32>
    %169 = arith.divf %167, %168 : vector<8x96xf32>
    %170 = vector.extract_strided_slice %163 {offsets = [0, 96], sizes = [8, 32], strides = [1, 1]} : vector<8x128xf32> to vector<8x32xf32>
    %171 = math.tanh %170 : vector<8x32xf32>
    %172 = vector.extract_strided_slice %169 {offsets = [0, 0], sizes = [8, 32], strides = [1, 1]} : vector<8x96xf32> to vector<8x32xf32>
    %173 = vector.extract_strided_slice %169 {offsets = [0, 32], sizes = [8, 32], strides = [1, 1]} : vector<8x96xf32> to vector<8x32xf32>
    %174 = vector.extract_strided_slice %169 {offsets = [0, 64], sizes = [8, 32], strides = [1, 1]} : vector<8x96xf32> to vector<8x32xf32>
    %175 = arith.mulf %173, %156 : vector<8x32xf32>
    %176 = arith.mulf %172, %171 : vector<8x32xf32>
    %177 = arith.addf %175, %176 : vector<8x32xf32>
    %178 = math.tanh %177 : vector<8x32xf32>
    %179 = arith.mulf %174, %178 : vector<8x32xf32>
    %180 = vector.extract_strided_slice %71 {offsets = [40, 0], sizes = [8, 128], strides = [1, 1]} : vector<64x128xf32> to vector<8x128xf32>
    %181 = vector.extract_strided_slice %71 {offsets = [16, 0], sizes = [8, 128], strides = [1, 1]} : vector<64x128xf32> to vector<8x128xf32>
    %182 = arith.select %63, %180, %181 : vector<8x128xi1>, vector<8x128xf32>
    %cst_42 = arith.constant dense<0.000000e+00> : vector<8x128xf32>
    %183 = tpu.matmul %179, %72, %cst_42 {dimension_numbers = #tpu.dot_dimension_numbers<[1], [0], [0], [1], [0, 0, 1, 1], [], []>} : vector<8x32xf32>, vector<32x128xf32>, vector<8x128xf32> -> vector<8x128xf32>
    %184 = arith.addf %182, %183 : vector<8x128xf32>
    %185 = vector.extract_strided_slice %184 {offsets = [0, 0], sizes = [8, 96], strides = [1, 1]} : vector<8x128xf32> to vector<8x96xf32>
    %186 = arith.negf %185 : vector<8x96xf32>
    %187 = math.exp %186 : vector<8x96xf32>
    %cst_43 = arith.constant 1.000000e+00 : f32
    %188 = vector.broadcast %cst_43 : f32 to vector<8x96xf32>
    %189 = arith.addf %188, %187 : vector<8x96xf32>
    %190 = arith.divf %188, %189 : vector<8x96xf32>
    %191 = vector.extract_strided_slice %184 {offsets = [0, 96], sizes = [8, 32], strides = [1, 1]} : vector<8x128xf32> to vector<8x32xf32>
    %192 = math.tanh %191 : vector<8x32xf32>
    %193 = vector.extract_strided_slice %190 {offsets = [0, 0], sizes = [8, 32], strides = [1, 1]} : vector<8x96xf32> to vector<8x32xf32>
    %194 = vector.extract_strided_slice %190 {offsets = [0, 32], sizes = [8, 32], strides = [1, 1]} : vector<8x96xf32> to vector<8x32xf32>
    %195 = vector.extract_strided_slice %190 {offsets = [0, 64], sizes = [8, 32], strides = [1, 1]} : vector<8x96xf32> to vector<8x32xf32>
    %196 = arith.mulf %194, %177 : vector<8x32xf32>
    %197 = arith.mulf %193, %192 : vector<8x32xf32>
    %198 = arith.addf %196, %197 : vector<8x32xf32>
    %199 = math.tanh %198 : vector<8x32xf32>
    %200 = arith.mulf %195, %199 : vector<8x32xf32>
    %201 = vector.extract_strided_slice %71 {offsets = [48, 0], sizes = [8, 128], strides = [1, 1]} : vector<64x128xf32> to vector<8x128xf32>
    %202 = vector.extract_strided_slice %71 {offsets = [8, 0], sizes = [8, 128], strides = [1, 1]} : vector<64x128xf32> to vector<8x128xf32>
    %203 = arith.select %63, %201, %202 : vector<8x128xi1>, vector<8x128xf32>
    %cst_44 = arith.constant dense<0.000000e+00> : vector<8x128xf32>
    %204 = tpu.matmul %200, %72, %cst_44 {dimension_numbers = #tpu.dot_dimension_numbers<[1], [0], [0], [1], [0, 0, 1, 1], [], []>} : vector<8x32xf32>, vector<32x128xf32>, vector<8x128xf32> -> vector<8x128xf32>
    %205 = arith.addf %203, %204 : vector<8x128xf32>
    %206 = vector.extract_strided_slice %205 {offsets = [0, 0], sizes = [8, 96], strides = [1, 1]} : vector<8x128xf32> to vector<8x96xf32>
    %207 = arith.negf %206 : vector<8x96xf32>
    %208 = math.exp %207 : vector<8x96xf32>
    %cst_45 = arith.constant 1.000000e+00 : f32
    %209 = vector.broadcast %cst_45 : f32 to vector<8x96xf32>
    %210 = arith.addf %209, %208 : vector<8x96xf32>
    %211 = arith.divf %209, %210 : vector<8x96xf32>
    %212 = vector.extract_strided_slice %205 {offsets = [0, 96], sizes = [8, 32], strides = [1, 1]} : vector<8x128xf32> to vector<8x32xf32>
    %213 = math.tanh %212 : vector<8x32xf32>
    %214 = vector.extract_strided_slice %211 {offsets = [0, 0], sizes = [8, 32], strides = [1, 1]} : vector<8x96xf32> to vector<8x32xf32>
    %215 = vector.extract_strided_slice %211 {offsets = [0, 32], sizes = [8, 32], strides = [1, 1]} : vector<8x96xf32> to vector<8x32xf32>
    %216 = vector.extract_strided_slice %211 {offsets = [0, 64], sizes = [8, 32], strides = [1, 1]} : vector<8x96xf32> to vector<8x32xf32>
    %217 = arith.mulf %215, %198 : vector<8x32xf32>
    %218 = arith.mulf %214, %213 : vector<8x32xf32>
    %219 = arith.addf %217, %218 : vector<8x32xf32>
    %220 = math.tanh %219 : vector<8x32xf32>
    %221 = arith.mulf %216, %220 : vector<8x32xf32>
    %222 = vector.extract_strided_slice %71 {offsets = [56, 0], sizes = [8, 128], strides = [1, 1]} : vector<64x128xf32> to vector<8x128xf32>
    %223 = vector.extract_strided_slice %71 {offsets = [0, 0], sizes = [8, 128], strides = [1, 1]} : vector<64x128xf32> to vector<8x128xf32>
    %224 = arith.select %63, %222, %223 : vector<8x128xi1>, vector<8x128xf32>
    %cst_46 = arith.constant dense<0.000000e+00> : vector<8x128xf32>
    %225 = tpu.matmul %221, %72, %cst_46 {dimension_numbers = #tpu.dot_dimension_numbers<[1], [0], [0], [1], [0, 0, 1, 1], [], []>} : vector<8x32xf32>, vector<32x128xf32>, vector<8x128xf32> -> vector<8x128xf32>
    %226 = arith.addf %224, %225 : vector<8x128xf32>
    %227 = vector.extract_strided_slice %226 {offsets = [0, 0], sizes = [8, 96], strides = [1, 1]} : vector<8x128xf32> to vector<8x96xf32>
    %228 = arith.negf %227 : vector<8x96xf32>
    %229 = math.exp %228 : vector<8x96xf32>
    %cst_47 = arith.constant 1.000000e+00 : f32
    %230 = vector.broadcast %cst_47 : f32 to vector<8x96xf32>
    %231 = arith.addf %230, %229 : vector<8x96xf32>
    %232 = arith.divf %230, %231 : vector<8x96xf32>
    %233 = vector.extract_strided_slice %226 {offsets = [0, 96], sizes = [8, 32], strides = [1, 1]} : vector<8x128xf32> to vector<8x32xf32>
    %234 = math.tanh %233 : vector<8x32xf32>
    %235 = vector.extract_strided_slice %232 {offsets = [0, 0], sizes = [8, 32], strides = [1, 1]} : vector<8x96xf32> to vector<8x32xf32>
    %236 = vector.extract_strided_slice %232 {offsets = [0, 32], sizes = [8, 32], strides = [1, 1]} : vector<8x96xf32> to vector<8x32xf32>
    %237 = vector.extract_strided_slice %232 {offsets = [0, 64], sizes = [8, 32], strides = [1, 1]} : vector<8x96xf32> to vector<8x32xf32>
    %238 = arith.mulf %236, %219 : vector<8x32xf32>
    %239 = arith.mulf %235, %234 : vector<8x32xf32>
    %240 = arith.addf %238, %239 : vector<8x32xf32>
    %241 = math.tanh %240 : vector<8x32xf32>
    %242 = arith.mulf %237, %241 : vector<8x32xf32>
    %243 = arith.select %66, %95, %242 : vector<8x32xi1>, vector<8x32xf32>
    %244 = arith.select %66, %116, %221 : vector<8x32xi1>, vector<8x32xf32>
    %245 = arith.select %66, %137, %200 : vector<8x32xi1>, vector<8x32xf32>
    %246 = arith.select %66, %158, %179 : vector<8x32xi1>, vector<8x32xf32>
    %247 = arith.select %66, %179, %158 : vector<8x32xi1>, vector<8x32xf32>
    %248 = arith.select %66, %200, %137 : vector<8x32xi1>, vector<8x32xf32>
    %249 = arith.select %66, %221, %116 : vector<8x32xi1>, vector<8x32xf32>
    %250 = arith.select %66, %242, %95 : vector<8x32xi1>, vector<8x32xf32>
    %251 = tpu.concatenate %243, %244, %245, %246, %247, %248, %249, %250 in 0 : vector<8x32xf32>, vector<8x32xf32>, vector<8x32xf32>, vector<8x32xf32>, vector<8x32xf32>, vector<8x32xf32>, vector<8x32xf32>, vector<8x32xf32> -> vector<64x32xf32>
    %c0_48 = arith.constant 0 : index
    %c0_49 = arith.constant 0 : index
    %252 = vector.load %arg6[%c0_48, %c0_49] : memref<32x128xf32, #tpu.memory_space<vmem>>, vector<32x128xf32>
    %cst_50 = arith.constant dense<0.000000e+00> : vector<64x128xf32>
    %253 = tpu.matmul %251, %252, %cst_50 {dimension_numbers = #tpu.dot_dimension_numbers<[1], [0], [0], [1], [0, 0, 1, 1], [], []>} : vector<64x32xf32>, vector<32x128xf32>, vector<64x128xf32> -> vector<64x128xf32>
    %c0_51 = arith.constant 0 : index
    %c0_52 = arith.constant 0 : index
    %254 = vector.load %arg8[%c0_51, %c0_52] : memref<1x128xf32, #tpu.memory_space<vmem>>, vector<1x128xf32>
    %255 = vector.broadcast %254 : vector<1x128xf32> to vector<64x128xf32>
    %256 = arith.addf %253, %255 : vector<64x128xf32>
    %c0_53 = arith.constant 0 : index
    %c0_54 = arith.constant 0 : index
    %257 = vector.load %arg7[%c0_53, %c0_54] : memref<32x128xf32, #tpu.memory_space<vmem>>, vector<32x128xf32>
    %cst_55 = arith.constant 0.000000e+00 : f32
    %258 = vector.broadcast %cst_55 : f32 to vector<8x32xf32>
    %cst_56 = arith.constant 0.000000e+00 : f32
    %259 = vector.broadcast %cst_56 : f32 to vector<8x32xf32>
    %260 = vector.extract_strided_slice %256 {offsets = [0, 0], sizes = [8, 128], strides = [1, 1]} : vector<64x128xf32> to vector<8x128xf32>
    %261 = vector.extract_strided_slice %256 {offsets = [56, 0], sizes = [8, 128], strides = [1, 1]} : vector<64x128xf32> to vector<8x128xf32>
    %262 = arith.select %63, %260, %261 : vector<8x128xi1>, vector<8x128xf32>
    %cst_57 = arith.constant dense<0.000000e+00> : vector<8x128xf32>
    %263 = tpu.matmul %258, %257, %cst_57 {dimension_numbers = #tpu.dot_dimension_numbers<[1], [0], [0], [1], [0, 0, 1, 1], [], []>} : vector<8x32xf32>, vector<32x128xf32>, vector<8x128xf32> -> vector<8x128xf32>
    %264 = arith.addf %262, %263 : vector<8x128xf32>
    %265 = vector.extract_strided_slice %264 {offsets = [0, 0], sizes = [8, 96], strides = [1, 1]} : vector<8x128xf32> to vector<8x96xf32>
    %266 = arith.negf %265 : vector<8x96xf32>
    %267 = math.exp %266 : vector<8x96xf32>
    %cst_58 = arith.constant 1.000000e+00 : f32
    %268 = vector.broadcast %cst_58 : f32 to vector<8x96xf32>
    %269 = arith.addf %268, %267 : vector<8x96xf32>
    %270 = arith.divf %268, %269 : vector<8x96xf32>
    %271 = vector.extract_strided_slice %264 {offsets = [0, 96], sizes = [8, 32], strides = [1, 1]} : vector<8x128xf32> to vector<8x32xf32>
    %272 = math.tanh %271 : vector<8x32xf32>
    %273 = vector.extract_strided_slice %270 {offsets = [0, 0], sizes = [8, 32], strides = [1, 1]} : vector<8x96xf32> to vector<8x32xf32>
    %274 = vector.extract_strided_slice %270 {offsets = [0, 32], sizes = [8, 32], strides = [1, 1]} : vector<8x96xf32> to vector<8x32xf32>
    %275 = vector.extract_strided_slice %270 {offsets = [0, 64], sizes = [8, 32], strides = [1, 1]} : vector<8x96xf32> to vector<8x32xf32>
    %276 = arith.mulf %274, %259 : vector<8x32xf32>
    %277 = arith.mulf %273, %272 : vector<8x32xf32>
    %278 = arith.addf %276, %277 : vector<8x32xf32>
    %279 = math.tanh %278 : vector<8x32xf32>
    %280 = arith.mulf %275, %279 : vector<8x32xf32>
    %281 = vector.extract_strided_slice %256 {offsets = [8, 0], sizes = [8, 128], strides = [1, 1]} : vector<64x128xf32> to vector<8x128xf32>
    %282 = vector.extract_strided_slice %256 {offsets = [48, 0], sizes = [8, 128], strides = [1, 1]} : vector<64x128xf32> to vector<8x128xf32>
    %283 = arith.select %63, %281, %282 : vector<8x128xi1>, vector<8x128xf32>
    %cst_59 = arith.constant dense<0.000000e+00> : vector<8x128xf32>
    %284 = tpu.matmul %280, %257, %cst_59 {dimension_numbers = #tpu.dot_dimension_numbers<[1], [0], [0], [1], [0, 0, 1, 1], [], []>} : vector<8x32xf32>, vector<32x128xf32>, vector<8x128xf32> -> vector<8x128xf32>
    %285 = arith.addf %283, %284 : vector<8x128xf32>
    %286 = vector.extract_strided_slice %285 {offsets = [0, 0], sizes = [8, 96], strides = [1, 1]} : vector<8x128xf32> to vector<8x96xf32>
    %287 = arith.negf %286 : vector<8x96xf32>
    %288 = math.exp %287 : vector<8x96xf32>
    %cst_60 = arith.constant 1.000000e+00 : f32
    %289 = vector.broadcast %cst_60 : f32 to vector<8x96xf32>
    %290 = arith.addf %289, %288 : vector<8x96xf32>
    %291 = arith.divf %289, %290 : vector<8x96xf32>
    %292 = vector.extract_strided_slice %285 {offsets = [0, 96], sizes = [8, 32], strides = [1, 1]} : vector<8x128xf32> to vector<8x32xf32>
    %293 = math.tanh %292 : vector<8x32xf32>
    %294 = vector.extract_strided_slice %291 {offsets = [0, 0], sizes = [8, 32], strides = [1, 1]} : vector<8x96xf32> to vector<8x32xf32>
    %295 = vector.extract_strided_slice %291 {offsets = [0, 32], sizes = [8, 32], strides = [1, 1]} : vector<8x96xf32> to vector<8x32xf32>
    %296 = vector.extract_strided_slice %291 {offsets = [0, 64], sizes = [8, 32], strides = [1, 1]} : vector<8x96xf32> to vector<8x32xf32>
    %297 = arith.mulf %295, %278 : vector<8x32xf32>
    %298 = arith.mulf %294, %293 : vector<8x32xf32>
    %299 = arith.addf %297, %298 : vector<8x32xf32>
    %300 = math.tanh %299 : vector<8x32xf32>
    %301 = arith.mulf %296, %300 : vector<8x32xf32>
    %302 = vector.extract_strided_slice %256 {offsets = [16, 0], sizes = [8, 128], strides = [1, 1]} : vector<64x128xf32> to vector<8x128xf32>
    %303 = vector.extract_strided_slice %256 {offsets = [40, 0], sizes = [8, 128], strides = [1, 1]} : vector<64x128xf32> to vector<8x128xf32>
    %304 = arith.select %63, %302, %303 : vector<8x128xi1>, vector<8x128xf32>
    %cst_61 = arith.constant dense<0.000000e+00> : vector<8x128xf32>
    %305 = tpu.matmul %301, %257, %cst_61 {dimension_numbers = #tpu.dot_dimension_numbers<[1], [0], [0], [1], [0, 0, 1, 1], [], []>} : vector<8x32xf32>, vector<32x128xf32>, vector<8x128xf32> -> vector<8x128xf32>
    %306 = arith.addf %304, %305 : vector<8x128xf32>
    %307 = vector.extract_strided_slice %306 {offsets = [0, 0], sizes = [8, 96], strides = [1, 1]} : vector<8x128xf32> to vector<8x96xf32>
    %308 = arith.negf %307 : vector<8x96xf32>
    %309 = math.exp %308 : vector<8x96xf32>
    %cst_62 = arith.constant 1.000000e+00 : f32
    %310 = vector.broadcast %cst_62 : f32 to vector<8x96xf32>
    %311 = arith.addf %310, %309 : vector<8x96xf32>
    %312 = arith.divf %310, %311 : vector<8x96xf32>
    %313 = vector.extract_strided_slice %306 {offsets = [0, 96], sizes = [8, 32], strides = [1, 1]} : vector<8x128xf32> to vector<8x32xf32>
    %314 = math.tanh %313 : vector<8x32xf32>
    %315 = vector.extract_strided_slice %312 {offsets = [0, 0], sizes = [8, 32], strides = [1, 1]} : vector<8x96xf32> to vector<8x32xf32>
    %316 = vector.extract_strided_slice %312 {offsets = [0, 32], sizes = [8, 32], strides = [1, 1]} : vector<8x96xf32> to vector<8x32xf32>
    %317 = vector.extract_strided_slice %312 {offsets = [0, 64], sizes = [8, 32], strides = [1, 1]} : vector<8x96xf32> to vector<8x32xf32>
    %318 = arith.mulf %316, %299 : vector<8x32xf32>
    %319 = arith.mulf %315, %314 : vector<8x32xf32>
    %320 = arith.addf %318, %319 : vector<8x32xf32>
    %321 = math.tanh %320 : vector<8x32xf32>
    %322 = arith.mulf %317, %321 : vector<8x32xf32>
    %323 = vector.extract_strided_slice %256 {offsets = [24, 0], sizes = [8, 128], strides = [1, 1]} : vector<64x128xf32> to vector<8x128xf32>
    %324 = vector.extract_strided_slice %256 {offsets = [32, 0], sizes = [8, 128], strides = [1, 1]} : vector<64x128xf32> to vector<8x128xf32>
    %325 = arith.select %63, %323, %324 : vector<8x128xi1>, vector<8x128xf32>
    %cst_63 = arith.constant dense<0.000000e+00> : vector<8x128xf32>
    %326 = tpu.matmul %322, %257, %cst_63 {dimension_numbers = #tpu.dot_dimension_numbers<[1], [0], [0], [1], [0, 0, 1, 1], [], []>} : vector<8x32xf32>, vector<32x128xf32>, vector<8x128xf32> -> vector<8x128xf32>
    %327 = arith.addf %325, %326 : vector<8x128xf32>
    %328 = vector.extract_strided_slice %327 {offsets = [0, 0], sizes = [8, 96], strides = [1, 1]} : vector<8x128xf32> to vector<8x96xf32>
    %329 = arith.negf %328 : vector<8x96xf32>
    %330 = math.exp %329 : vector<8x96xf32>
    %cst_64 = arith.constant 1.000000e+00 : f32
    %331 = vector.broadcast %cst_64 : f32 to vector<8x96xf32>
    %332 = arith.addf %331, %330 : vector<8x96xf32>
    %333 = arith.divf %331, %332 : vector<8x96xf32>
    %334 = vector.extract_strided_slice %327 {offsets = [0, 96], sizes = [8, 32], strides = [1, 1]} : vector<8x128xf32> to vector<8x32xf32>
    %335 = math.tanh %334 : vector<8x32xf32>
    %336 = vector.extract_strided_slice %333 {offsets = [0, 0], sizes = [8, 32], strides = [1, 1]} : vector<8x96xf32> to vector<8x32xf32>
    %337 = vector.extract_strided_slice %333 {offsets = [0, 32], sizes = [8, 32], strides = [1, 1]} : vector<8x96xf32> to vector<8x32xf32>
    %338 = vector.extract_strided_slice %333 {offsets = [0, 64], sizes = [8, 32], strides = [1, 1]} : vector<8x96xf32> to vector<8x32xf32>
    %339 = arith.mulf %337, %320 : vector<8x32xf32>
    %340 = arith.mulf %336, %335 : vector<8x32xf32>
    %341 = arith.addf %339, %340 : vector<8x32xf32>
    %342 = math.tanh %341 : vector<8x32xf32>
    %343 = arith.mulf %338, %342 : vector<8x32xf32>
    %344 = vector.extract_strided_slice %256 {offsets = [32, 0], sizes = [8, 128], strides = [1, 1]} : vector<64x128xf32> to vector<8x128xf32>
    %345 = vector.extract_strided_slice %256 {offsets = [24, 0], sizes = [8, 128], strides = [1, 1]} : vector<64x128xf32> to vector<8x128xf32>
    %346 = arith.select %63, %344, %345 : vector<8x128xi1>, vector<8x128xf32>
    %cst_65 = arith.constant dense<0.000000e+00> : vector<8x128xf32>
    %347 = tpu.matmul %343, %257, %cst_65 {dimension_numbers = #tpu.dot_dimension_numbers<[1], [0], [0], [1], [0, 0, 1, 1], [], []>} : vector<8x32xf32>, vector<32x128xf32>, vector<8x128xf32> -> vector<8x128xf32>
    %348 = arith.addf %346, %347 : vector<8x128xf32>
    %349 = vector.extract_strided_slice %348 {offsets = [0, 0], sizes = [8, 96], strides = [1, 1]} : vector<8x128xf32> to vector<8x96xf32>
    %350 = arith.negf %349 : vector<8x96xf32>
    %351 = math.exp %350 : vector<8x96xf32>
    %cst_66 = arith.constant 1.000000e+00 : f32
    %352 = vector.broadcast %cst_66 : f32 to vector<8x96xf32>
    %353 = arith.addf %352, %351 : vector<8x96xf32>
    %354 = arith.divf %352, %353 : vector<8x96xf32>
    %355 = vector.extract_strided_slice %348 {offsets = [0, 96], sizes = [8, 32], strides = [1, 1]} : vector<8x128xf32> to vector<8x32xf32>
    %356 = math.tanh %355 : vector<8x32xf32>
    %357 = vector.extract_strided_slice %354 {offsets = [0, 0], sizes = [8, 32], strides = [1, 1]} : vector<8x96xf32> to vector<8x32xf32>
    %358 = vector.extract_strided_slice %354 {offsets = [0, 32], sizes = [8, 32], strides = [1, 1]} : vector<8x96xf32> to vector<8x32xf32>
    %359 = vector.extract_strided_slice %354 {offsets = [0, 64], sizes = [8, 32], strides = [1, 1]} : vector<8x96xf32> to vector<8x32xf32>
    %360 = arith.mulf %358, %341 : vector<8x32xf32>
    %361 = arith.mulf %357, %356 : vector<8x32xf32>
    %362 = arith.addf %360, %361 : vector<8x32xf32>
    %363 = math.tanh %362 : vector<8x32xf32>
    %364 = arith.mulf %359, %363 : vector<8x32xf32>
    %365 = vector.extract_strided_slice %256 {offsets = [40, 0], sizes = [8, 128], strides = [1, 1]} : vector<64x128xf32> to vector<8x128xf32>
    %366 = vector.extract_strided_slice %256 {offsets = [16, 0], sizes = [8, 128], strides = [1, 1]} : vector<64x128xf32> to vector<8x128xf32>
    %367 = arith.select %63, %365, %366 : vector<8x128xi1>, vector<8x128xf32>
    %cst_67 = arith.constant dense<0.000000e+00> : vector<8x128xf32>
    %368 = tpu.matmul %364, %257, %cst_67 {dimension_numbers = #tpu.dot_dimension_numbers<[1], [0], [0], [1], [0, 0, 1, 1], [], []>} : vector<8x32xf32>, vector<32x128xf32>, vector<8x128xf32> -> vector<8x128xf32>
    %369 = arith.addf %367, %368 : vector<8x128xf32>
    %370 = vector.extract_strided_slice %369 {offsets = [0, 0], sizes = [8, 96], strides = [1, 1]} : vector<8x128xf32> to vector<8x96xf32>
    %371 = arith.negf %370 : vector<8x96xf32>
    %372 = math.exp %371 : vector<8x96xf32>
    %cst_68 = arith.constant 1.000000e+00 : f32
    %373 = vector.broadcast %cst_68 : f32 to vector<8x96xf32>
    %374 = arith.addf %373, %372 : vector<8x96xf32>
    %375 = arith.divf %373, %374 : vector<8x96xf32>
    %376 = vector.extract_strided_slice %369 {offsets = [0, 96], sizes = [8, 32], strides = [1, 1]} : vector<8x128xf32> to vector<8x32xf32>
    %377 = math.tanh %376 : vector<8x32xf32>
    %378 = vector.extract_strided_slice %375 {offsets = [0, 0], sizes = [8, 32], strides = [1, 1]} : vector<8x96xf32> to vector<8x32xf32>
    %379 = vector.extract_strided_slice %375 {offsets = [0, 32], sizes = [8, 32], strides = [1, 1]} : vector<8x96xf32> to vector<8x32xf32>
    %380 = vector.extract_strided_slice %375 {offsets = [0, 64], sizes = [8, 32], strides = [1, 1]} : vector<8x96xf32> to vector<8x32xf32>
    %381 = arith.mulf %379, %362 : vector<8x32xf32>
    %382 = arith.mulf %378, %377 : vector<8x32xf32>
    %383 = arith.addf %381, %382 : vector<8x32xf32>
    %384 = math.tanh %383 : vector<8x32xf32>
    %385 = arith.mulf %380, %384 : vector<8x32xf32>
    %386 = vector.extract_strided_slice %256 {offsets = [48, 0], sizes = [8, 128], strides = [1, 1]} : vector<64x128xf32> to vector<8x128xf32>
    %387 = vector.extract_strided_slice %256 {offsets = [8, 0], sizes = [8, 128], strides = [1, 1]} : vector<64x128xf32> to vector<8x128xf32>
    %388 = arith.select %63, %386, %387 : vector<8x128xi1>, vector<8x128xf32>
    %cst_69 = arith.constant dense<0.000000e+00> : vector<8x128xf32>
    %389 = tpu.matmul %385, %257, %cst_69 {dimension_numbers = #tpu.dot_dimension_numbers<[1], [0], [0], [1], [0, 0, 1, 1], [], []>} : vector<8x32xf32>, vector<32x128xf32>, vector<8x128xf32> -> vector<8x128xf32>
    %390 = arith.addf %388, %389 : vector<8x128xf32>
    %391 = vector.extract_strided_slice %390 {offsets = [0, 0], sizes = [8, 96], strides = [1, 1]} : vector<8x128xf32> to vector<8x96xf32>
    %392 = arith.negf %391 : vector<8x96xf32>
    %393 = math.exp %392 : vector<8x96xf32>
    %cst_70 = arith.constant 1.000000e+00 : f32
    %394 = vector.broadcast %cst_70 : f32 to vector<8x96xf32>
    %395 = arith.addf %394, %393 : vector<8x96xf32>
    %396 = arith.divf %394, %395 : vector<8x96xf32>
    %397 = vector.extract_strided_slice %390 {offsets = [0, 96], sizes = [8, 32], strides = [1, 1]} : vector<8x128xf32> to vector<8x32xf32>
    %398 = math.tanh %397 : vector<8x32xf32>
    %399 = vector.extract_strided_slice %396 {offsets = [0, 0], sizes = [8, 32], strides = [1, 1]} : vector<8x96xf32> to vector<8x32xf32>
    %400 = vector.extract_strided_slice %396 {offsets = [0, 32], sizes = [8, 32], strides = [1, 1]} : vector<8x96xf32> to vector<8x32xf32>
    %401 = vector.extract_strided_slice %396 {offsets = [0, 64], sizes = [8, 32], strides = [1, 1]} : vector<8x96xf32> to vector<8x32xf32>
    %402 = arith.mulf %400, %383 : vector<8x32xf32>
    %403 = arith.mulf %399, %398 : vector<8x32xf32>
    %404 = arith.addf %402, %403 : vector<8x32xf32>
    %405 = math.tanh %404 : vector<8x32xf32>
    %406 = arith.mulf %401, %405 : vector<8x32xf32>
    %407 = vector.extract_strided_slice %256 {offsets = [56, 0], sizes = [8, 128], strides = [1, 1]} : vector<64x128xf32> to vector<8x128xf32>
    %408 = vector.extract_strided_slice %256 {offsets = [0, 0], sizes = [8, 128], strides = [1, 1]} : vector<64x128xf32> to vector<8x128xf32>
    %409 = arith.select %63, %407, %408 : vector<8x128xi1>, vector<8x128xf32>
    %cst_71 = arith.constant dense<0.000000e+00> : vector<8x128xf32>
    %410 = tpu.matmul %406, %257, %cst_71 {dimension_numbers = #tpu.dot_dimension_numbers<[1], [0], [0], [1], [0, 0, 1, 1], [], []>} : vector<8x32xf32>, vector<32x128xf32>, vector<8x128xf32> -> vector<8x128xf32>
    %411 = arith.addf %409, %410 : vector<8x128xf32>
    %412 = vector.extract_strided_slice %411 {offsets = [0, 0], sizes = [8, 96], strides = [1, 1]} : vector<8x128xf32> to vector<8x96xf32>
    %413 = arith.negf %412 : vector<8x96xf32>
    %414 = math.exp %413 : vector<8x96xf32>
    %cst_72 = arith.constant 1.000000e+00 : f32
    %415 = vector.broadcast %cst_72 : f32 to vector<8x96xf32>
    %416 = arith.addf %415, %414 : vector<8x96xf32>
    %417 = arith.divf %415, %416 : vector<8x96xf32>
    %418 = vector.extract_strided_slice %411 {offsets = [0, 96], sizes = [8, 32], strides = [1, 1]} : vector<8x128xf32> to vector<8x32xf32>
    %419 = math.tanh %418 : vector<8x32xf32>
    %420 = vector.extract_strided_slice %417 {offsets = [0, 0], sizes = [8, 32], strides = [1, 1]} : vector<8x96xf32> to vector<8x32xf32>
    %421 = vector.extract_strided_slice %417 {offsets = [0, 32], sizes = [8, 32], strides = [1, 1]} : vector<8x96xf32> to vector<8x32xf32>
    %422 = vector.extract_strided_slice %417 {offsets = [0, 64], sizes = [8, 32], strides = [1, 1]} : vector<8x96xf32> to vector<8x32xf32>
    %423 = arith.mulf %421, %404 : vector<8x32xf32>
    %424 = arith.mulf %420, %419 : vector<8x32xf32>
    %425 = arith.addf %423, %424 : vector<8x32xf32>
    %426 = math.tanh %425 : vector<8x32xf32>
    %427 = arith.mulf %422, %426 : vector<8x32xf32>
    %428 = tpu.concatenate %427, %425 in 1 : vector<8x32xf32>, vector<8x32xf32> -> vector<8x64xf32>
    %c0_73 = arith.constant 0 : index
    %c0_74 = arith.constant 0 : index
    %429 = vector.load %arg9[%c0_73, %c0_74] : memref<64x16xf32, #tpu.memory_space<vmem>>, vector<64x16xf32>
    %cst_75 = arith.constant dense<0.000000e+00> : vector<8x16xf32>
    %430 = tpu.matmul %428, %429, %cst_75 {dimension_numbers = #tpu.dot_dimension_numbers<[1], [0], [0], [1], [0, 0, 1, 1], [], []>} : vector<8x64xf32>, vector<64x16xf32>, vector<8x16xf32> -> vector<8x16xf32>
    %c0_76 = arith.constant 0 : index
    %c0_77 = arith.constant 0 : index
    %431 = vector.load %arg10[%c0_76, %c0_77] : memref<1x16xf32, #tpu.memory_space<vmem>>, vector<1x16xf32>
    %432 = vector.broadcast %431 : vector<1x16xf32> to vector<8x16xf32>
    %433 = arith.addf %430, %432 : vector<8x16xf32>
    %c0_78 = arith.constant 0 : index
    %c0_79 = arith.constant 0 : index
    %434 = vector.load %arg11[%c0_78, %c0_79] : memref<8x16xf32, #tpu.memory_space<vmem>>, vector<8x16xf32>
    tpu.vector_store %arg11[%c0_78, %c0_79], %433 {strides = array<i32>} : memref<8x16xf32, #tpu.memory_space<vmem>>, vector<8x16xf32>,
    return
  }
}

</mosaic_0001>

<llo_original>
// kernel: tpu_custom_call.1
$region0: #{tpu_custom_call.1}
  #allocation0 [shape = 'u32[]', space=smem, size = 0x4, offset = 0x4, fixed_abs, tag = 'smem constant byte address 0x4 - core index']
  #allocation1 [shape = 'u32[144,128]{1,0:T(1,128)}', space=vmem, size = 0x12000, scoped, tag = 'internal scratch']
  %s0 = inlined_call_operand.vmem [shape: f32[64,32], index: 0, kind: input, shape index: {}]
  %s1 = inlined_call_operand.vmem [shape: f32[2,32,96], index: 1, kind: input, shape index: {}]
  %s2 = inlined_call_operand.vmem [shape: f32[2,1,96], index: 2, kind: input, shape index: {}]
  %s3 = inlined_call_operand.vmem [shape: f32[32,128], index: 3, kind: input, shape index: {}]
  %s4 = inlined_call_operand.vmem [shape: f32[32,128], index: 4, kind: input, shape index: {}]
  %s5 = inlined_call_operand.hbm [shape: f32[1,128], index: 5, kind: input, shape index: {}]
  %s6 = inlined_call_operand.vmem [shape: f32[32,128], index: 6, kind: input, shape index: {}]
  %s7 = inlined_call_operand.vmem [shape: f32[32,128], index: 7, kind: input, shape index: {}]
  %s8 = inlined_call_operand.hbm [shape: f32[1,128], index: 8, kind: input, shape index: {}]
  %s9 = inlined_call_operand.vmem [shape: f32[64,16], index: 9, kind: input, shape index: {}]
  %s10 = inlined_call_operand.vmem [shape: f32[1,16], index: 10, kind: input, shape index: {}]
  %s11 = inlined_call_operand.hbm [shape: f32[8,16], index: 11, kind: output, shape index: {}]
  %s12 = sld [smem:[#allocation0]]
  $region62: #{tpu_custom_call.1} parent=0
    _
  %s14 = ssub.s32 1, %s12
  %s15 = scalar_select 0, %s14, %s12
  $region1: #{tpu_custom_call.1} parent=0
    #allocation2 [shape = 'u8[512]{0}', space=vmem, size = 0x400, scoped, tag = 'input window, operand 5, single buffered']
    #allocation3 [shape = 's32[1]{0}', space=sflag, size = 0x4, scoped, tag = 'scoped memory for tpu_custom_call.1']
    #allocation4 [shape = 's32[1]{0}', space=sflag, size = 0x4, scoped, tag = 'scoped memory for tpu_custom_call.1']
    #allocation5 [shape = 'u8[512]{0}', space=vmem, size = 0x400, scoped, tag = 'input window, operand 8, single buffered']
    #allocation6 [shape = 's32[1]{0}', space=sflag, size = 0x4, scoped, tag = 'scoped memory for tpu_custom_call.1']
    #allocation7 [shape = 'u8[4096]{0}', space=vmem, size = 0x1000, scoped, tag = 'output window, operand 0, single buffered']
    %16 = vsyncpa [#allocation3], 0
    %17 = vsyncpa [#allocation6], 0
    %18 = vsyncpa [#allocation4], 0
    // Predicated region
    $region2: #{tpu_custom_call.1} parent=1 // pred_check
      _
    $region3: #{tpu_custom_call.1} parent=1 // pred_check_branch
      %20 = sbr.rel (0) target = $region5
    $region4: #{tpu_custom_call.1} parent=1 // pred_region
      _
    $region5: #{tpu_custom_call.1} parent=1 // pred_fallthru
      _
    // Predicated region
    $region6: #{tpu_custom_call.1} parent=1 // pred_check
      _
    $region7: #{tpu_custom_call.1} parent=1 // pred_check_branch
      %22 = sbr.rel (0) target = $region9
    $region8: #{tpu_custom_call.1} parent=1 // pred_region
      _
    $region9: #{tpu_custom_call.1} parent=1 // pred_fallthru
      _
    // Predicated region
    $region10: #{tpu_custom_call.1} parent=1 // pred_check
      _
    $region11: #{tpu_custom_call.1} parent=1 // pred_check_branch
      %24 = sbr.rel (0) target = $region13
    $region12: #{tpu_custom_call.1} parent=1 // pred_region
      _
    $region13: #{tpu_custom_call.1} parent=1 // pred_fallthru
      _
    // Predicated region
    $region14: #{tpu_custom_call.1} parent=1 // pred_check
      _
    $region15: #{tpu_custom_call.1} parent=1 // pred_check_branch
      %26 = sbr.rel (0) target = $region17
    $region16: #{tpu_custom_call.1} parent=1 // pred_region
      _
    $region17: #{tpu_custom_call.1} parent=1 // pred_fallthru
      _
    // Predicated region
    $region18: #{tpu_custom_call.1} parent=1 // pred_check
      _
    $region19: #{tpu_custom_call.1} parent=1 // pred_check_branch
      %28 = sbr.rel (0) target = $region21
    $region20: #{tpu_custom_call.1} parent=1 // pred_region
      _
    $region21: #{tpu_custom_call.1} parent=1 // pred_fallthru
      _
    // Predicated region
    $region22: #{tpu_custom_call.1} parent=1 // pred_check
      _
    $region23: #{tpu_custom_call.1} parent=1 // pred_check_branch
      %30 = sbr.rel (0) target = $region25
    $region24: #{tpu_custom_call.1} parent=1 // pred_region
      %s32 = ssub.s32 16, 16
      %33 = vsyncadd [#allocation3], %s32
      %s35 = sshll.u32 [#allocation2], 4
      %s36 = int_to_ptr.vmem [resolvable:$true] %s35
      %38 = dma.hbm_to_vmem [thread:$0]  %s5, 16, %s36, [#allocation3]
    $region25: #{tpu_custom_call.1} parent=1 // pred_fallthru
      _
    // Predicated region
    $region26: #{tpu_custom_call.1} parent=1 // pred_check
      _
    $region27: #{tpu_custom_call.1} parent=1 // pred_check_branch
      %40 = sbr.rel (0) target = $region29
    $region28: #{tpu_custom_call.1} parent=1 // pred_region
      _
    $region29: #{tpu_custom_call.1} parent=1 // pred_fallthru
      _
    // Predicated region
    $region30: #{tpu_custom_call.1} parent=1 // pred_check
      _
    $region31: #{tpu_custom_call.1} parent=1 // pred_check_branch
      %42 = sbr.rel (0) target = $region33
    $region32: #{tpu_custom_call.1} parent=1 // pred_region
      _
    $region33: #{tpu_custom_call.1} parent=1 // pred_fallthru
      _
    // Predicated region
    $region34: #{tpu_custom_call.1} parent=1 // pred_check
      _
    $region35: #{tpu_custom_call.1} parent=1 // pred_check_branch
      %44 = sbr.rel (0) target = $region37
    $region36: #{tpu_custom_call.1} parent=1 // pred_region
      %s46 = ssub.s32 16, 16
      %47 = vsyncadd [#allocation6], %s46
      %s49 = sshll.u32 [#allocation5], 4
      %s50 = int_to_ptr.vmem [resolvable:$true] %s49
      %52 = dma.hbm_to_vmem [thread:$0]  %s8, 16, %s50, [#allocation6]
    $region37: #{tpu_custom_call.1} parent=1 // pred_fallthru
      _
    // Predicated region
    $region38: #{tpu_custom_call.1} parent=1 // pred_check
      _
    $region39: #{tpu_custom_call.1} parent=1 // pred_check_branch
      %54 = sbr.rel (0) target = $region41
    $region40: #{tpu_custom_call.1} parent=1 // pred_region
      _
    $region41: #{tpu_custom_call.1} parent=1 // pred_fallthru
      _
    // Predicated region
    $region42: #{tpu_custom_call.1} parent=1 // pred_check
      _
    $region43: #{tpu_custom_call.1} parent=1 // pred_check_branch
      %56 = sbr.rel (0) target = $region45
    $region44: #{tpu_custom_call.1} parent=1 // pred_region
      _
    $region45: #{tpu_custom_call.1} parent=1 // pred_fallthru
      _
    // Predicated region
    $region46: #{tpu_custom_call.1} parent=1 // pred_check
      _
    $region47: #{tpu_custom_call.1} parent=1 // pred_check_branch
      %58 = sbr.rel (0) target = $region49
    $region48: #{tpu_custom_call.1} parent=1 // pred_region
      %59 = dma.done [#allocation3], 16
    $region49: #{tpu_custom_call.1} parent=1 // pred_fallthru
      _
    // Predicated region
    $region50: #{tpu_custom_call.1} parent=1 // pred_check
      _
    $region51: #{tpu_custom_call.1} parent=1 // pred_check_branch
      %61 = sbr.rel (0) target = $region53
    $region52: #{tpu_custom_call.1} parent=1 // pred_region
      %62 = dma.done [#allocation6], 16
    $region53: #{tpu_custom_call.1} parent=1 // pred_fallthru
      _
    %v63 = vld [vmem:[%s0] sm:$0xff]
    %v64 = vld [vmem:[%s0 + $0x8] sm:$0xff]
    %v65 = vld [vmem:[%s0 + $0x10] sm:$0xff]
    %v66 = vld [vmem:[%s0 + $0x18] sm:$0xff]
    %v67 = vld [vmem:[%s0 + $0x20] sm:$0xff]
    %v68 = vld [vmem:[%s0 + $0x28] sm:$0xff]
    %v69 = vld [vmem:[%s0 + $0x30] sm:$0xff]
    %v70 = vld [vmem:[%s0 + $0x38] sm:$0xff]
    %v71 = vld [vmem:[%s1] sm:$0xff]
    %v72 = vld [vmem:[%s1 + $0x8] sm:$0xff]
    %v73 = vld [vmem:[%s1 + $0x10] sm:$0xff]
    %v74 = vld [vmem:[%s1 + $0x18] sm:$0xff]
    %v75 = vld [vmem:[%s2] sm:$0x1]
    %v77 = vlaneseq
    %v78 = vshrl.u32 %v77, 7
    %v79 = vsub.s32 0, %v78
    %v80 = vrot.slane %v75, %v79
    %vm82 = vcmask 261120
    %v84 = vsel %vm82, %v63, 0
    %v87 = vsel %vm82, %v64, 0
    %v90 = vsel %vm82, %v65, 0
    %v93 = vsel %vm82, %v66, 0
    %v96 = vsel %vm82, %v67, 0
    %v99 = vsel %vm82, %v68, 0
    %v102 = vsel %vm82, %v69, 0
    %v105 = vsel %vm82, %v70, 0
    %107 = vmatprep.subr.mxu0 0.0
    %108 = vmatpush1.msra.mxu0 %v71
    %109 = vmatprep.subr.mxu0 0.0
    %110 = vmatpush1.msra.mxu0 %v72
    %111 = vmatprep.subr.mxu0 0.0
    %112 = vmatpush1.msra.mxu0 %v73
    %113 = vmatprep.subr.mxu0 0.0
    %114 = vmatpush1.msra.mxu0 %v74
    %115 = vmatprep.subr.mxu0 0.0
    %116 = vmatpush1.msra.mxu0 0.0
    %117 = vmatprep.subr.mxu0 0.0
    %118 = vmatpush1.msra.mxu0 0.0
    %119 = vmatprep.subr.mxu0 0.0
    %120 = vmatpush1.msra.mxu0 0.0
    %121 = vmatprep.subr.mxu0 0.0
    %122 = vmatpush1.msra.mxu0 0.0
    %123 = vmatprep.subr.mxu0 0.0
    %124 = vmatpush1.msra.mxu0 0.0
    %125 = vmatprep.subr.mxu0 0.0
    %126 = vmatpush1.msra.mxu0 0.0
    %127 = vmatprep.subr.mxu0 0.0
    %128 = vmatpush1.msra.mxu0 0.0
    %129 = vmatprep.subr.mxu0 0.0
    %130 = vmatpush1.msra.mxu0 0.0
    %131 = vmatprep.subr.mxu0 0.0
    %132 = vmatpush1.msra.mxu0 0.0
    %133 = vmatprep.subr.mxu0 0.0
    %134 = vmatpush1.msra.mxu0 0.0
    %135 = vmatprep.subr.mxu0 0.0
    %136 = vmatpush1.msra.mxu0 0.0
    %137 = vmatprep.subr.mxu0 0.0
    %138 = vmatpush1.msra.mxu0 0.0
    %139 = vmatprep.subr.mxu0 0.0
    %140 = vmatpush1.msra.mxu0 0.0
    %141 = vmatprep.subr.mxu0 0.0
    %142 = vmatpush1.msra.mxu0 0.0
    %143 = vmatprep.subr.mxu0 0.0
    %144 = vmatpush1.msra.mxu0 0.0
    %145 = vmatprep.subr.mxu0 0.0
    %146 = vmatpush1.msra.mxu0 0.0
    %147 = vmatprep.subr.mxu0 0.0
    %148 = vmatpush1.msra.mxu0 0.0
    %149 = vmatprep.subr.mxu0 0.0
    %150 = vmatpush1.msra.mxu0 0.0
    %151 = vmatprep.subr.mxu0 0.0
    %152 = vmatpush1.msra.mxu0 0.0
    %153 = vmatprep.subr.mxu0 0.0
    %154 = vmatpush1.msra.mxu0 0.0
    %155 = vmatprep.subr.mxu0 0.0
    %156 = vmatpush1.msra.mxu0 0.0
    %157 = vmatprep.subr.mxu0 0.0
    %158 = vmatpush1.msra.mxu0 0.0
    %159 = vmatprep.subr.mxu0 0.0
    %160 = vmatpush1.msra.mxu0 0.0
    %161 = vmatprep.subr.mxu0 0.0
    %162 = vmatpush1.msra.mxu0 0.0
    %163 = vmatprep.subr.mxu0 0.0
    %164 = vmatpush1.msra.mxu0 0.0
    %165 = vmatprep.subr.mxu0 0.0
    %166 = vmatpush1.msra.mxu0 0.0
    %167 = vmatprep.subr.mxu0 0.0
    %168 = vmatpush1.msra.mxu0 0.0
    %169 = vmatprep.subr.mxu0 0.0
    %170 = vmatpush1.msra.mxu0 0.0
    %171 = vmatprep.mubr.f32.mxu0 0.0
    %172 = vmatmul.mubr.f32.gmra.mrb[0].mxu0 %v84
    %v173 = vpop.f32.mrb[0].mxu0
    %v174 = vadd.f32 %v80, %v173
    %v175 = vpop.f32.mrb[0].mxu0
    %176 = vmatprep.mubr.f32.mxu0 0.0
    %177 = vmatmul.mubr.f32.gmra.mrb[0].mxu0 %v87
    %v178 = vpop.f32.mrb[0].mxu0
    %v179 = vadd.f32 %v80, %v178
    %v180 = vpop.f32.mrb[0].mxu0
    %181 = vmatprep.mubr.f32.mxu0 0.0
    %182 = vmatmul.mubr.f32.gmra.mrb[0].mxu0 %v90
    %v183 = vpop.f32.mrb[0].mxu0
    %v184 = vadd.f32 %v80, %v183
    %v185 = vpop.f32.mrb[0].mxu0
    %186 = vmatprep.mubr.f32.mxu0 0.0
    %187 = vmatmul.mubr.f32.gmra.mrb[0].mxu0 %v93
    %v188 = vpop.f32.mrb[0].mxu0
    %v189 = vadd.f32 %v80, %v188
    %v190 = vpop.f32.mrb[0].mxu0
    %191 = vmatprep.mubr.f32.mxu0 0.0
    %192 = vmatmul.mubr.f32.gmra.mrb[0].mxu0 %v96
    %v193 = vpop.f32.mrb[0].mxu0
    %v194 = vadd.f32 %v80, %v193
    %v195 = vpop.f32.mrb[0].mxu0
    %196 = vmatprep.mubr.f32.mxu0 0.0
    %197 = vmatmul.mubr.f32.gmra.mrb[0].mxu0 %v99
    %v198 = vpop.f32.mrb[0].mxu0
    %v199 = vadd.f32 %v80, %v198
    %v200 = vpop.f32.mrb[0].mxu0
    %201 = vmatprep.mubr.f32.mxu0 0.0
    %202 = vmatmul.mubr.f32.gmra.mrb[0].mxu0 %v102
    %v203 = vpop.f32.mrb[0].mxu0
    %v204 = vadd.f32 %v80, %v203
    %v205 = vpop.f32.mrb[0].mxu0
    %206 = vmatprep.mubr.f32.mxu0 0.0
    %207 = vmatmul.mubr.f32.gmra.mrb[0].mxu0 %v105
    %v208 = vpop.f32.mrb[0].mxu0
    %v209 = vadd.f32 %v80, %v208
    %v210 = vpop.f32.mrb[0].mxu0
    %211 = vdwg.mxu0
    %v212 = vmax.f32 %v174, 0.0
    %v213 = vmax.f32 %v179, 0.0
    %v214 = vmax.f32 %v184, 0.0
    %v215 = vmax.f32 %v189, 0.0
    %v216 = vmax.f32 %v194, 0.0
    %v217 = vmax.f32 %v199, 0.0
    %v218 = vmax.f32 %v204, 0.0
    %v219 = vmax.f32 %v209, 0.0
    %v220 = vxor.u32 %v174, 2147483648
    %v221 = vxor.u32 %v179, 2147483648
    %v222 = vxor.u32 %v184, 2147483648
    %v223 = vxor.u32 %v189, 2147483648
    %v224 = vxor.u32 %v194, 2147483648
    %v225 = vxor.u32 %v199, 2147483648
    %v226 = vxor.u32 %v204, 2147483648
    %v227 = vxor.u32 %v209, 2147483648
    %v228 = vmul.f32 %v220, 1.442695
    %v229 = vpow.pop %v228
    %v230 = vmul.f32 %v221, 1.442695
    %v231 = vpow.pop %v230
    %v232 = vmul.f32 %v222, 1.442695
    %v233 = vpow.pop %v232
    %v234 = vmul.f32 %v223, 1.442695
    %v235 = vpow.pop %v234
    %v236 = vmul.f32 %v224, 1.442695
    %v237 = vpow.pop %v236
    %v238 = vmul.f32 %v225, 1.442695
    %v239 = vpow.pop %v238
    %v240 = vmul.f32 %v226, 1.442695
    %v241 = vpow.pop %v240
    %v242 = vmul.f32 %v227, 1.442695
    %v243 = vpow.pop %v242
    %v244 = vadd.f32 %v229, 1.0
    %v245 = vadd.f32 %v231, 1.0
    %v246 = vadd.f32 %v233, 1.0
    %v247 = vadd.f32 %v235, 1.0
    %v248 = vadd.f32 %v237, 1.0
    %v249 = vadd.f32 %v239, 1.0
    %v250 = vadd.f32 %v241, 1.0
    %v251 = vadd.f32 %v243, 1.0
    %v252 = vrcp.pop %v244
    %v253 = vmul.f32 1.0, %v252
    %v254 = vrcp.pop %v245
    %v255 = vmul.f32 1.0, %v254
    %v256 = vrcp.pop %v246
    %v257 = vmul.f32 1.0, %v256
    %v258 = vrcp.pop %v247
    %v259 = vmul.f32 1.0, %v258
    %v260 = vrcp.pop %v248
    %v261 = vmul.f32 1.0, %v260
    %v262 = vrcp.pop %v249
    %v263 = vmul.f32 1.0, %v262
    %v264 = vrcp.pop %v250
    %v265 = vmul.f32 1.0, %v264
    %v266 = vrcp.pop %v251
    %v267 = vmul.f32 1.0, %v266
    %276 = vrot.lane.b32.xlu0 %v212, 64
    %v277 = vpop.permute.xlu0 %276
    %278 = vrot.lane.b32.xlu0 %v213, 64
    %v279 = vpop.permute.xlu0 %278
    %280 = vrot.lane.b32.xlu0 %v214, 64
    %v281 = vpop.permute.xlu0 %280
    %282 = vrot.lane.b32.xlu0 %v215, 64
    %v283 = vpop.permute.xlu0 %282
    %284 = vrot.lane.b32.xlu0 %v216, 64
    %v285 = vpop.permute.xlu0 %284
    %286 = vrot.lane.b32.xlu0 %v217, 64
    %v287 = vpop.permute.xlu0 %286
    %288 = vrot.lane.b32.xlu0 %v218, 64
    %v289 = vpop.permute.xlu0 %288
    %290 = vrot.lane.b32.xlu0 %v219, 64
    %v291 = vpop.permute.xlu0 %290
    %v300 = vmul.f32 %v253, %v277
    %v301 = vmul.f32 %v255, %v279
    %v302 = vmul.f32 %v257, %v281
    %v303 = vmul.f32 %v259, %v283
    %v304 = vmul.f32 %v261, %v285
    %v305 = vmul.f32 %v263, %v287
    %v306 = vmul.f32 %v265, %v289
    %v307 = vmul.f32 %v267, %v291
    %v308 = vsub.f32 1.0, %v253
    %v309 = vsub.f32 1.0, %v255
    %v310 = vsub.f32 1.0, %v257
    %v311 = vsub.f32 1.0, %v259
    %v312 = vsub.f32 1.0, %v261
    %v313 = vsub.f32 1.0, %v263
    %v314 = vsub.f32 1.0, %v265
    %v315 = vsub.f32 1.0, %v267
    %324 = vrot.lane.b32.xlu0 %v174, 32
    %v325 = vpop.permute.xlu0 %324
    %326 = vrot.lane.b32.xlu0 %v179, 32
    %v327 = vpop.permute.xlu0 %326
    %328 = vrot.lane.b32.xlu0 %v184, 32
    %v329 = vpop.permute.xlu0 %328
    %330 = vrot.lane.b32.xlu0 %v189, 32
    %v331 = vpop.permute.xlu0 %330
    %332 = vrot.lane.b32.xlu0 %v194, 32
    %v333 = vpop.permute.xlu0 %332
    %334 = vrot.lane.b32.xlu0 %v199, 32
    %v335 = vpop.permute.xlu0 %334
    %336 = vrot.lane.b32.xlu0 %v204, 32
    %v337 = vpop.permute.xlu0 %336
    %338 = vrot.lane.b32.xlu0 %v209, 32
    %v339 = vpop.permute.xlu0 %338
    %v348 = vmul.f32 %v308, %v325
    %v349 = vmul.f32 %v309, %v327
    %v350 = vmul.f32 %v310, %v329
    %v351 = vmul.f32 %v311, %v331
    %v352 = vmul.f32 %v312, %v333
    %v353 = vmul.f32 %v313, %v335
    %v354 = vmul.f32 %v314, %v337
    %v355 = vmul.f32 %v315, %v339
    %v356 = vadd.f32 %v300, %v348
    %v357 = vadd.f32 %v301, %v349
    %v358 = vadd.f32 %v302, %v350
    %v359 = vadd.f32 %v303, %v351
    %v360 = vadd.f32 %v304, %v352
    %v361 = vadd.f32 %v305, %v353
    %v362 = vadd.f32 %v306, %v354
    %v363 = vadd.f32 %v307, %v355
    %s364 = scalar_lea.vmem %s1, 32
    %v365 = vld [vmem:[%s364] sm:$0xff]
    %v366 = vld [vmem:[%s364 + $0x8] sm:$0xff]
    %v367 = vld [vmem:[%s364 + $0x10] sm:$0xff]
    %v368 = vld [vmem:[%s364 + $0x18] sm:$0xff]
    %s369 = scalar_lea.vmem %s2, 1
    %v370 = vld [vmem:[%s369] sm:$0x1]
    %v372 = vlaneseq
    %v373 = vshrl.u32 %v372, 7
    %v374 = vsub.s32 0, %v373
    %v375 = vrot.slane %v370, %v374
    %385 = vrot.lane.b32.xlu0 %v356, 64
    %v386 = vpop.permute.xlu0 %385
    %387 = vrot.lane.b32.xlu0 %v357, 64
    %v388 = vpop.permute.xlu0 %387
    %389 = vrot.lane.b32.xlu0 %v358, 64
    %v390 = vpop.permute.xlu0 %389
    %391 = vrot.lane.b32.xlu0 %v359, 64
    %v392 = vpop.permute.xlu0 %391
    %393 = vrot.lane.b32.xlu0 %v360, 64
    %v394 = vpop.permute.xlu0 %393
    %395 = vrot.lane.b32.xlu0 %v361, 64
    %v396 = vpop.permute.xlu0 %395
    %397 = vrot.lane.b32.xlu0 %v362, 64
    %v398 = vpop.permute.xlu0 %397
    %399 = vrot.lane.b32.xlu0 %v363, 64
    %v400 = vpop.permute.xlu0 %399
    %v401 = vsel %vm82, %v386, 0
    %v403 = vsel %vm82, %v388, 0
    %v405 = vsel %vm82, %v390, 0
    %v407 = vsel %vm82, %v392, 0
    %v409 = vsel %vm82, %v394, 0
    %v411 = vsel %vm82, %v396, 0
    %v413 = vsel %vm82, %v398, 0
    %v415 = vsel %vm82, %v400, 0
    %417 = vmatprep.subr.mxu0 0.0
    %418 = vmatpush1.msra.mxu0 %v365
    %419 = vmatprep.subr.mxu0 0.0
    %420 = vmatpush1.msra.mxu0 %v366
    %421 = vmatprep.subr.mxu0 0.0
    %422 = vmatpush1.msra.mxu0 %v367
    %423 = vmatprep.subr.mxu0 0.0
    %424 = vmatpush1.msra.mxu0 %v368
    %425 = vmatprep.subr.mxu0 0.0
    %426 = vmatpush1.msra.mxu0 0.0
    %427 = vmatprep.subr.mxu0 0.0
    %428 = vmatpush1.msra.mxu0 0.0
    %429 = vmatprep.subr.mxu0 0.0
    %430 = vmatpush1.msra.mxu0 0.0
    %431 = vmatprep.subr.mxu0 0.0
    %432 = vmatpush1.msra.mxu0 0.0
    %433 = vmatprep.subr.mxu0 0.0
    %434 = vmatpush1.msra.mxu0 0.0
    %435 = vmatprep.subr.mxu0 0.0
    %436 = vmatpush1.msra.mxu0 0.0
    %437 = vmatprep.subr.mxu0 0.0
    %438 = vmatpush1.msra.mxu0 0.0
    %439 = vmatprep.subr.mxu0 0.0
    %440 = vmatpush1.msra.mxu0 0.0
    %441 = vmatprep.subr.mxu0 0.0
    %442 = vmatpush1.msra.mxu0 0.0
    %443 = vmatprep.subr.mxu0 0.0
    %444 = vmatpush1.msra.mxu0 0.0
    %445 = vmatprep.subr.mxu0 0.0
    %446 = vmatpush1.msra.mxu0 0.0
    %447 = vmatprep.subr.mxu0 0.0
    %448 = vmatpush1.msra.mxu0 0.0
    %449 = vmatprep.subr.mxu0 0.0
    %450 = vmatpush1.msra.mxu0 0.0
    %451 = vmatprep.subr.mxu0 0.0
    %452 = vmatpush1.msra.mxu0 0.0
    %453 = vmatprep.subr.mxu0 0.0
    %454 = vmatpush1.msra.mxu0 0.0
    %455 = vmatprep.subr.mxu0 0.0
    %456 = vmatpush1.msra.mxu0 0.0
    %457 = vmatprep.subr.mxu0 0.0
    %458 = vmatpush1.msra.mxu0 0.0
    %459 = vmatprep.subr.mxu0 0.0
    %460 = vmatpush1.msra.mxu0 0.0
    %461 = vmatprep.subr.mxu0 0.0
    %462 = vmatpush1.msra.mxu0 0.0
    %463 = vmatprep.subr.mxu0 0.0
    %464 = vmatpush1.msra.mxu0 0.0
    %465 = vmatprep.subr.mxu0 0.0
    %466 = vmatpush1.msra.mxu0 0.0
    %467 = vmatprep.subr.mxu0 0.0
    %468 = vmatpush1.msra.mxu0 0.0
    %469 = vmatprep.subr.mxu0 0.0
    %470 = vmatpush1.msra.mxu0 0.0
    %471 = vmatprep.subr.mxu0 0.0
    %472 = vmatpush1.msra.mxu0 0.0
    %473 = vmatprep.subr.mxu0 0.0
    %474 = vmatpush1.msra.mxu0 0.0
    %475 = vmatprep.subr.mxu0 0.0
    %476 = vmatpush1.msra.mxu0 0.0
    %477 = vmatprep.subr.mxu0 0.0
    %478 = vmatpush1.msra.mxu0 0.0
    %479 = vmatprep.subr.mxu0 0.0
    %480 = vmatpush1.msra.mxu0 0.0
    %481 = vmatprep.mubr.f32.mxu0 0.0
    %482 = vmatmul.mubr.f32.gmra.mrb[0].mxu0 %v401
    %v483 = vpop.f32.mrb[0].mxu0
    %v484 = vadd.f32 %v375, %v483
    %v485 = vpop.f32.mrb[0].mxu0
    %486 = vmatprep.mubr.f32.mxu0 0.0
    %487 = vmatmul.mubr.f32.gmra.mrb[0].mxu0 %v403
    %v488 = vpop.f32.mrb[0].mxu0
    %v489 = vadd.f32 %v375, %v488
    %v490 = vpop.f32.mrb[0].mxu0
    %491 = vmatprep.mubr.f32.mxu0 0.0
    %492 = vmatmul.mubr.f32.gmra.mrb[0].mxu0 %v405
    %v493 = vpop.f32.mrb[0].mxu0
    %v494 = vadd.f32 %v375, %v493
    %v495 = vpop.f32.mrb[0].mxu0
    %496 = vmatprep.mubr.f32.mxu0 0.0
    %497 = vmatmul.mubr.f32.gmra.mrb[0].mxu0 %v407
    %v498 = vpop.f32.mrb[0].mxu0
    %v499 = vadd.f32 %v375, %v498
    %v500 = vpop.f32.mrb[0].mxu0
    %501 = vmatprep.mubr.f32.mxu0 0.0
    %502 = vmatmul.mubr.f32.gmra.mrb[0].mxu0 %v409
    %v503 = vpop.f32.mrb[0].mxu0
    %v504 = vadd.f32 %v375, %v503
    %v505 = vpop.f32.mrb[0].mxu0
    %506 = vmatprep.mubr.f32.mxu0 0.0
    %507 = vmatmul.mubr.f32.gmra.mrb[0].mxu0 %v411
    %v508 = vpop.f32.mrb[0].mxu0
    %v509 = vadd.f32 %v375, %v508
    %v510 = vpop.f32.mrb[0].mxu0
    %511 = vmatprep.mubr.f32.mxu0 0.0
    %512 = vmatmul.mubr.f32.gmra.mrb[0].mxu0 %v413
    %v513 = vpop.f32.mrb[0].mxu0
    %v514 = vadd.f32 %v375, %v513
    %v515 = vpop.f32.mrb[0].mxu0
    %516 = vmatprep.mubr.f32.mxu0 0.0
    %517 = vmatmul.mubr.f32.gmra.mrb[0].mxu0 %v415
    %v518 = vpop.f32.mrb[0].mxu0
    %v519 = vadd.f32 %v375, %v518
    %v520 = vpop.f32.mrb[0].mxu0
    %521 = vdwg.mxu0
    %v522 = vmax.f32 %v484, 0.0
    %v523 = vmax.f32 %v489, 0.0
    %v524 = vmax.f32 %v494, 0.0
    %v525 = vmax.f32 %v499, 0.0
    %v526 = vmax.f32 %v504, 0.0
    %v527 = vmax.f32 %v509, 0.0
    %v528 = vmax.f32 %v514, 0.0
    %v529 = vmax.f32 %v519, 0.0
    %v530 = vxor.u32 %v484, 2147483648
    %v531 = vxor.u32 %v489, 2147483648
    %v532 = vxor.u32 %v494, 2147483648
    %v533 = vxor.u32 %v499, 2147483648
    %v534 = vxor.u32 %v504, 2147483648
    %v535 = vxor.u32 %v509, 2147483648
    %v536 = vxor.u32 %v514, 2147483648
    %v537 = vxor.u32 %v519, 2147483648
    %v538 = vmul.f32 %v530, 1.442695
    %v539 = vpow.pop %v538
    %v540 = vmul.f32 %v531, 1.442695
    %v541 = vpow.pop %v540
    %v542 = vmul.f32 %v532, 1.442695
    %v543 = vpow.pop %v542
    %v544 = vmul.f32 %v533, 1.442695
    %v545 = vpow.pop %v544
    %v546 = vmul.f32 %v534, 1.442695
    %v547 = vpow.pop %v546
    %v548 = vmul.f32 %v535, 1.442695
    %v549 = vpow.pop %v548
    %v550 = vmul.f32 %v536, 1.442695
    %v551 = vpow.pop %v550
    %v552 = vmul.f32 %v537, 1.442695
    %v553 = vpow.pop %v552
    %v554 = vadd.f32 %v539, 1.0
    %v555 = vadd.f32 %v541, 1.0
    %v556 = vadd.f32 %v543, 1.0
    %v557 = vadd.f32 %v545, 1.0
    %v558 = vadd.f32 %v547, 1.0
    %v559 = vadd.f32 %v549, 1.0
    %v560 = vadd.f32 %v551, 1.0
    %v561 = vadd.f32 %v553, 1.0
    %v562 = vrcp.pop %v554
    %v563 = vmul.f32 1.0, %v562
    %v564 = vrcp.pop %v555
    %v565 = vmul.f32 1.0, %v564
    %v566 = vrcp.pop %v556
    %v567 = vmul.f32 1.0, %v566
    %v568 = vrcp.pop %v557
    %v569 = vmul.f32 1.0, %v568
    %v570 = vrcp.pop %v558
    %v571 = vmul.f32 1.0, %v570
    %v572 = vrcp.pop %v559
    %v573 = vmul.f32 1.0, %v572
    %v574 = vrcp.pop %v560
    %v575 = vmul.f32 1.0, %v574
    %v576 = vrcp.pop %v561
    %v577 = vmul.f32 1.0, %v576
    %586 = vrot.lane.b32.xlu0 %v522, 64
    %v587 = vpop.permute.xlu0 %586
    %588 = vrot.lane.b32.xlu0 %v523, 64
    %v589 = vpop.permute.xlu0 %588
    %590 = vrot.lane.b32.xlu0 %v524, 64
    %v591 = vpop.permute.xlu0 %590
    %592 = vrot.lane.b32.xlu0 %v525, 64
    %v593 = vpop.permute.xlu0 %592
    %594 = vrot.lane.b32.xlu0 %v526, 64
    %v595 = vpop.permute.xlu0 %594
    %596 = vrot.lane.b32.xlu0 %v527, 64
    %v597 = vpop.permute.xlu0 %596
    %598 = vrot.lane.b32.xlu0 %v528, 64
    %v599 = vpop.permute.xlu0 %598
    %600 = vrot.lane.b32.xlu0 %v529, 64
    %v601 = vpop.permute.xlu0 %600
    %v610 = vmul.f32 %v563, %v587
    %v611 = vmul.f32 %v565, %v589
    %v612 = vmul.f32 %v567, %v591
    %v613 = vmul.f32 %v569, %v593
    %v614 = vmul.f32 %v571, %v595
    %v615 = vmul.f32 %v573, %v597
    %v616 = vmul.f32 %v575, %v599
    %v617 = vmul.f32 %v577, %v601
    %v618 = vsub.f32 1.0, %v563
    %v619 = vsub.f32 1.0, %v565
    %v620 = vsub.f32 1.0, %v567
    %v621 = vsub.f32 1.0, %v569
    %v622 = vsub.f32 1.0, %v571
    %v623 = vsub.f32 1.0, %v573
    %v624 = vsub.f32 1.0, %v575
    %v625 = vsub.f32 1.0, %v577
    %634 = vrot.lane.b32.xlu0 %v484, 32
    %v635 = vpop.permute.xlu0 %634
    %636 = vrot.lane.b32.xlu0 %v489, 32
    %v637 = vpop.permute.xlu0 %636
    %638 = vrot.lane.b32.xlu0 %v494, 32
    %v639 = vpop.permute.xlu0 %638
    %640 = vrot.lane.b32.xlu0 %v499, 32
    %v641 = vpop.permute.xlu0 %640
    %642 = vrot.lane.b32.xlu0 %v504, 32
    %v643 = vpop.permute.xlu0 %642
    %644 = vrot.lane.b32.xlu0 %v509, 32
    %v645 = vpop.permute.xlu0 %644
    %646 = vrot.lane.b32.xlu0 %v514, 32
    %v647 = vpop.permute.xlu0 %646
    %648 = vrot.lane.b32.xlu0 %v519, 32
    %v649 = vpop.permute.xlu0 %648
    %v658 = vmul.f32 %v618, %v635
    %v659 = vmul.f32 %v619, %v637
    %v660 = vmul.f32 %v620, %v639
    %v661 = vmul.f32 %v621, %v641
    %v662 = vmul.f32 %v622, %v643
    %v663 = vmul.f32 %v623, %v645
    %v664 = vmul.f32 %v624, %v647
    %v665 = vmul.f32 %v625, %v649
    %v666 = vadd.f32 %v610, %v658
    %v667 = vadd.f32 %v611, %v659
    %v668 = vadd.f32 %v612, %v660
    %v669 = vadd.f32 %v613, %v661
    %v670 = vadd.f32 %v614, %v662
    %v671 = vadd.f32 %v615, %v663
    %v672 = vadd.f32 %v616, %v664
    %v673 = vadd.f32 %v617, %v665
    %v674 = vlaneseq
    %v675 = vand.u32 %v674, 127
    %vm676 = vcmp.lt.s32.totalorder %v675, 0
    %v677 = vsub.s32 0, %v675
    %v678 = vsel %vm676, %v677, %v675
    %v679 = vshrl.u32 %v678, 5
    %v680 = vand.u32 %v678, 31
    %v681 = vsub.s32 0, %v680
    %v682 = vsel %vm676, %v681, %v680
    %vm683 = vcmp.ne.s32.totalorder %v682, 0
    %vm684 = vcmp.lt.s32.totalorder %v682, 0
    %vm685 = vmand %vm684, %vm683
    %v686 = vadd.s32 %v682, 32
    %v687 = vsel %vm685, %v686, %v682
    %vm688 = vcmp.lt.s32.totalorder %v687, 16
    %vm689 = vcmp.lt.s32.totalorder %v675, 16
    %v690 = vld [vmem:[%s3] sm:$0xff]
    %v691 = vld [vmem:[%s3 + $0x8] sm:$0xff]
    %v692 = vld [vmem:[%s3 + $0x10] sm:$0xff]
    %v693 = vld [vmem:[%s3 + $0x18] sm:$0xff]
    %v694 = vld [vmem:[#allocation2] sm:$0x1]
    %v696 = vlaneseq
    %v697 = vshrl.u32 %v696, 7
    %v698 = vsub.s32 0, %v697
    %v699 = vrot.slane %v694, %v698
    %709 = vrot.lane.b32.xlu0 %v666, 64
    %v710 = vpop.permute.xlu0 %709
    %711 = vrot.lane.b32.xlu0 %v667, 64
    %v712 = vpop.permute.xlu0 %711
    %713 = vrot.lane.b32.xlu0 %v668, 64
    %v714 = vpop.permute.xlu0 %713
    %715 = vrot.lane.b32.xlu0 %v669, 64
    %v716 = vpop.permute.xlu0 %715
    %717 = vrot.lane.b32.xlu0 %v670, 64
    %v718 = vpop.permute.xlu0 %717
    %719 = vrot.lane.b32.xlu0 %v671, 64
    %v720 = vpop.permute.xlu0 %719
    %721 = vrot.lane.b32.xlu0 %v672, 64
    %v722 = vpop.permute.xlu0 %721
    %723 = vrot.lane.b32.xlu0 %v673, 64
    %v724 = vpop.permute.xlu0 %723
    %v725 = vsel %vm82, %v710, 0
    %v727 = vsel %vm82, %v712, 0
    %v729 = vsel %vm82, %v714, 0
    %v731 = vsel %vm82, %v716, 0
    %v733 = vsel %vm82, %v718, 0
    %v735 = vsel %vm82, %v720, 0
    %v737 = vsel %vm82, %v722, 0
    %v739 = vsel %vm82, %v724, 0
    %741 = vmatprep.subr.mxu0 0.0
    %742 = vmatpush1.msra.mxu0 %v690
    %743 = vmatprep.subr.mxu0 0.0
    %744 = vmatpush1.msra.mxu0 %v691
    %745 = vmatprep.subr.mxu0 0.0
    %746 = vmatpush1.msra.mxu0 %v692
    %747 = vmatprep.subr.mxu0 0.0
    %748 = vmatpush1.msra.mxu0 %v693
    %749 = vmatprep.subr.mxu0 0.0
    %750 = vmatpush1.msra.mxu0 0.0
    %751 = vmatprep.subr.mxu0 0.0
    %752 = vmatpush1.msra.mxu0 0.0
    %753 = vmatprep.subr.mxu0 0.0
    %754 = vmatpush1.msra.mxu0 0.0
    %755 = vmatprep.subr.mxu0 0.0
    %756 = vmatpush1.msra.mxu0 0.0
    %757 = vmatprep.subr.mxu0 0.0
    %758 = vmatpush1.msra.mxu0 0.0
    %759 = vmatprep.subr.mxu0 0.0
    %760 = vmatpush1.msra.mxu0 0.0
    %761 = vmatprep.subr.mxu0 0.0
    %762 = vmatpush1.msra.mxu0 0.0
    %763 = vmatprep.subr.mxu0 0.0
    %764 = vmatpush1.msra.mxu0 0.0
    %765 = vmatprep.subr.mxu0 0.0
    %766 = vmatpush1.msra.mxu0 0.0
    %767 = vmatprep.subr.mxu0 0.0
    %768 = vmatpush1.msra.mxu0 0.0
    %769 = vmatprep.subr.mxu0 0.0
    %770 = vmatpush1.msra.mxu0 0.0
    %771 = vmatprep.subr.mxu0 0.0
    %772 = vmatpush1.msra.mxu0 0.0
    %773 = vmatprep.subr.mxu0 0.0
    %774 = vmatpush1.msra.mxu0 0.0
    %775 = vmatprep.subr.mxu0 0.0
    %776 = vmatpush1.msra.mxu0 0.0
    %777 = vmatprep.subr.mxu0 0.0
    %778 = vmatpush1.msra.mxu0 0.0
    %779 = vmatprep.subr.mxu0 0.0
    %780 = vmatpush1.msra.mxu0 0.0
    %781 = vmatprep.subr.mxu0 0.0
    %782 = vmatpush1.msra.mxu0 0.0
    %783 = vmatprep.subr.mxu0 0.0
    %784 = vmatpush1.msra.mxu0 0.0
    %785 = vmatprep.subr.mxu0 0.0
    %786 = vmatpush1.msra.mxu0 0.0
    %787 = vmatprep.subr.mxu0 0.0
    %788 = vmatpush1.msra.mxu0 0.0
    %789 = vmatprep.subr.mxu0 0.0
    %790 = vmatpush1.msra.mxu0 0.0
    %791 = vmatprep.subr.mxu0 0.0
    %792 = vmatpush1.msra.mxu0 0.0
    %793 = vmatprep.subr.mxu0 0.0
    %794 = vmatpush1.msra.mxu0 0.0
    %795 = vmatprep.subr.mxu0 0.0
    %796 = vmatpush1.msra.mxu0 0.0
    %797 = vmatprep.subr.mxu0 0.0
    %798 = vmatpush1.msra.mxu0 0.0
    %799 = vmatprep.subr.mxu0 0.0
    %800 = vmatpush1.msra.mxu0 0.0
    %801 = vmatprep.subr.mxu0 0.0
    %802 = vmatpush1.msra.mxu0 0.0
    %803 = vmatprep.subr.mxu0 0.0
    %804 = vmatpush1.msra.mxu0 0.0
    %805 = vmatprep.mubr.f32.mxu0 0.0
    %806 = vmatmul.mubr.f32.gmra.mrb[0].mxu0 %v725
    %v807 = vpop.f32.mrb[0].mxu0
    %v808 = vadd.f32 %v699, %v807
    %v809 = vpop.f32.mrb[0].mxu0
    %810 = vmatprep.mubr.f32.mxu0 0.0
    %811 = vmatmul.mubr.f32.gmra.mrb[0].mxu0 %v727
    %v812 = vpop.f32.mrb[0].mxu0
    %v813 = vadd.f32 %v699, %v812
    %v814 = vpop.f32.mrb[0].mxu0
    %815 = vmatprep.mubr.f32.mxu0 0.0
    %816 = vmatmul.mubr.f32.gmra.mrb[0].mxu0 %v729
    %v817 = vpop.f32.mrb[0].mxu0
    %v818 = vadd.f32 %v699, %v817
    %v819 = vpop.f32.mrb[0].mxu0
    %820 = vmatprep.mubr.f32.mxu0 0.0
    %821 = vmatmul.mubr.f32.gmra.mrb[0].mxu0 %v731
    %v822 = vpop.f32.mrb[0].mxu0
    %v823 = vadd.f32 %v699, %v822
    %v824 = vpop.f32.mrb[0].mxu0
    %825 = vmatprep.mubr.f32.mxu0 0.0
    %826 = vmatmul.mubr.f32.gmra.mrb[0].mxu0 %v733
    %v827 = vpop.f32.mrb[0].mxu0
    %v828 = vadd.f32 %v699, %v827
    %v829 = vpop.f32.mrb[0].mxu0
    %830 = vmatprep.mubr.f32.mxu0 0.0
    %831 = vmatmul.mubr.f32.gmra.mrb[0].mxu0 %v735
    %v832 = vpop.f32.mrb[0].mxu0
    %v833 = vadd.f32 %v699, %v832
    %v834 = vpop.f32.mrb[0].mxu0
    %835 = vmatprep.mubr.f32.mxu0 0.0
    %836 = vmatmul.mubr.f32.gmra.mrb[0].mxu0 %v737
    %v837 = vpop.f32.mrb[0].mxu0
    %v838 = vadd.f32 %v699, %v837
    %v839 = vpop.f32.mrb[0].mxu0
    %840 = vmatprep.mubr.f32.mxu0 0.0
    %841 = vmatmul.mubr.f32.gmra.mrb[0].mxu0 %v739
    %v842 = vpop.f32.mrb[0].mxu0
    %v843 = vadd.f32 %v699, %v842
    %v844 = vpop.f32.mrb[0].mxu0
    %845 = vdwg.mxu0
    %v846 = vld [vmem:[%s4] sm:$0xff]
    %v847 = vld [vmem:[%s4 + $0x8] sm:$0xff]
    %v848 = vld [vmem:[%s4 + $0x10] sm:$0xff]
    %v849 = vld [vmem:[%s4 + $0x18] sm:$0xff]
    %v850 = vsel %vm688, %v808, %v843
    %v852 = vsel %vm82, 0.0, 0
    %854 = vmatprep.subr.mxu0 0.0
    %855 = vmatpush1.msra.mxu0 %v846
    %856 = vmatprep.subr.mxu0 0.0
    %857 = vmatpush1.msra.mxu0 %v847
    %858 = vmatprep.subr.mxu0 0.0
    %859 = vmatpush1.msra.mxu0 %v848
    %860 = vmatprep.subr.mxu0 0.0
    %861 = vmatpush1.msra.mxu0 %v849
    %862 = vmatprep.subr.mxu0 0.0
    %863 = vmatpush1.msra.mxu0 0.0
    %864 = vmatprep.subr.mxu0 0.0
    %865 = vmatpush1.msra.mxu0 0.0
    %866 = vmatprep.subr.mxu0 0.0
    %867 = vmatpush1.msra.mxu0 0.0
    %868 = vmatprep.subr.mxu0 0.0
    %869 = vmatpush1.msra.mxu0 0.0
    %870 = vmatprep.subr.mxu0 0.0
    %871 = vmatpush1.msra.mxu0 0.0
    %872 = vmatprep.subr.mxu0 0.0
    %873 = vmatpush1.msra.mxu0 0.0
    %874 = vmatprep.subr.mxu0 0.0
    %875 = vmatpush1.msra.mxu0 0.0
    %876 = vmatprep.subr.mxu0 0.0
    %877 = vmatpush1.msra.mxu0 0.0
    %878 = vmatprep.subr.mxu0 0.0
    %879 = vmatpush1.msra.mxu0 0.0
    %880 = vmatprep.subr.mxu0 0.0
    %881 = vmatpush1.msra.mxu0 0.0
    %882 = vmatprep.subr.mxu0 0.0
    %883 = vmatpush1.msra.mxu0 0.0
    %884 = vmatprep.subr.mxu0 0.0
    %885 = vmatpush1.msra.mxu0 0.0
    %886 = vmatprep.subr.mxu0 0.0
    %887 = vmatpush1.msra.mxu0 0.0
    %888 = vmatprep.subr.mxu0 0.0
    %889 = vmatpush1.msra.mxu0 0.0
    %890 = vmatprep.subr.mxu0 0.0
    %891 = vmatpush1.msra.mxu0 0.0
    %892 = vmatprep.subr.mxu0 0.0
    %893 = vmatpush1.msra.mxu0 0.0
    %894 = vmatprep.subr.mxu0 0.0
    %895 = vmatpush1.msra.mxu0 0.0
    %896 = vmatprep.subr.mxu0 0.0
    %897 = vmatpush1.msra.mxu0 0.0
    %898 = vmatprep.subr.mxu0 0.0
    %899 = vmatpush1.msra.mxu0 0.0
    %900 = vmatprep.subr.mxu0 0.0
    %901 = vmatpush1.msra.mxu0 0.0
    %902 = vmatprep.subr.mxu0 0.0
    %903 = vmatpush1.msra.mxu0 0.0
    %904 = vmatprep.subr.mxu0 0.0
    %905 = vmatpush1.msra.mxu0 0.0
    %906 = vmatprep.subr.mxu0 0.0
    %907 = vmatpush1.msra.mxu0 0.0
    %908 = vmatprep.subr.mxu0 0.0
    %909 = vmatpush1.msra.mxu0 0.0
    %910 = vmatprep.subr.mxu0 0.0
    %911 = vmatpush1.msra.mxu0 0.0
    %912 = vmatprep.subr.mxu0 0.0
    %913 = vmatpush1.msra.mxu0 0.0
    %914 = vmatprep.subr.mxu0 0.0
    %915 = vmatpush1.msra.mxu0 0.0
    %916 = vmatprep.subr.mxu0 0.0
    %917 = vmatpush1.msra.mxu0 0.0
    %918 = vmatprep.mubr.f32.mxu0 0.0
    %919 = vmatmul.mubr.f32.gmra.mrb[0].mxu0 %v852
    %v920 = vpop.f32.mrb[0].mxu0
    %v921 = vadd.f32 0.0, %v920
    %v922 = vpop.f32.mrb[0].mxu0
    %923 = vdwg.mxu0
    %v924 = vadd.f32 %v850, %v921
    %v925 = vxor.u32 %v924, 2147483648
    %v926 = vmul.f32 %v925, 1.442695
    %v927 = vpow.pop %v926
    %v928 = vadd.f32 %v927, 1.0
    %v929 = vrcp.pop %v928
    %v930 = vmul.f32 1.0, %v929
    %v931 = vtanh.pop %v924
    %v932 = vmul.f32 %v930, 0.0
    %934 = vrot.lane.b32.xlu0 %v931, 32
    %v935 = vpop.permute.xlu0 %934
    %v937 = vmul.f32 %v930, %v935
    %939 = vrot.lane.b32.xlu0 %v937, 32
    %v940 = vpop.permute.xlu0 %939
    %v942 = vadd.f32 %v932, %v940
    %v943 = vtanh.pop %v942
    %945 = vrot.lane.b32.xlu0 %v943, 32
    %v946 = vpop.permute.xlu0 %945
    %v948 = vmul.f32 %v930, %v946
    %v949 = vsel %vm688, %v813, %v838
    %951 = vrot.lane.b32.xlu0 %v948, 64
    %v952 = vpop.permute.xlu0 %951
    %v953 = vsel %vm82, %v952, 0
    %955 = vmatprep.subr.mxu0 0.0
    %956 = vmatpush1.msra.mxu0 %v846
    %957 = vmatprep.subr.mxu0 0.0
    %958 = vmatpush1.msra.mxu0 %v847
    %959 = vmatprep.subr.mxu0 0.0
    %960 = vmatpush1.msra.mxu0 %v848
    %961 = vmatprep.subr.mxu0 0.0
    %962 = vmatpush1.msra.mxu0 %v849
    %963 = vmatprep.subr.mxu0 0.0
    %964 = vmatpush1.msra.mxu0 0.0
    %965 = vmatprep.subr.mxu0 0.0
    %966 = vmatpush1.msra.mxu0 0.0
    %967 = vmatprep.subr.mxu0 0.0
    %968 = vmatpush1.msra.mxu0 0.0
    %969 = vmatprep.subr.mxu0 0.0
    %970 = vmatpush1.msra.mxu0 0.0
    %971 = vmatprep.subr.mxu0 0.0
    %972 = vmatpush1.msra.mxu0 0.0
    %973 = vmatprep.subr.mxu0 0.0
    %974 = vmatpush1.msra.mxu0 0.0
    %975 = vmatprep.subr.mxu0 0.0
    %976 = vmatpush1.msra.mxu0 0.0
    %977 = vmatprep.subr.mxu0 0.0
    %978 = vmatpush1.msra.mxu0 0.0
    %979 = vmatprep.subr.mxu0 0.0
    %980 = vmatpush1.msra.mxu0 0.0
    %981 = vmatprep.subr.mxu0 0.0
    %982 = vmatpush1.msra.mxu0 0.0
    %983 = vmatprep.subr.mxu0 0.0
    %984 = vmatpush1.msra.mxu0 0.0
    %985 = vmatprep.subr.mxu0 0.0
    %986 = vmatpush1.msra.mxu0 0.0
    %987 = vmatprep.subr.mxu0 0.0
    %988 = vmatpush1.msra.mxu0 0.0
    %989 = vmatprep.subr.mxu0 0.0
    %990 = vmatpush1.msra.mxu0 0.0
    %991 = vmatprep.subr.mxu0 0.0
    %992 = vmatpush1.msra.mxu0 0.0
    %993 = vmatprep.subr.mxu0 0.0
    %994 = vmatpush1.msra.mxu0 0.0
    %995 = vmatprep.subr.mxu0 0.0
    %996 = vmatpush1.msra.mxu0 0.0
    %997 = vmatprep.subr.mxu0 0.0
    %998 = vmatpush1.msra.mxu0 0.0
    %999 = vmatprep.subr.mxu0 0.0
    %1000 = vmatpush1.msra.mxu0 0.0
    %1001 = vmatprep.subr.mxu0 0.0
    %1002 = vmatpush1.msra.mxu0 0.0
    %1003 = vmatprep.subr.mxu0 0.0
    %1004 = vmatpush1.msra.mxu0 0.0
    %1005 = vmatprep.subr.mxu0 0.0
    %1006 = vmatpush1.msra.mxu0 0.0
    %1007 = vmatprep.subr.mxu0 0.0
    %1008 = vmatpush1.msra.mxu0 0.0
    %1009 = vmatprep.subr.mxu0 0.0
    %1010 = vmatpush1.msra.mxu0 0.0
    %1011 = vmatprep.subr.mxu0 0.0
    %1012 = vmatpush1.msra.mxu0 0.0
    %1013 = vmatprep.subr.mxu0 0.0
    %1014 = vmatpush1.msra.mxu0 0.0
    %1015 = vmatprep.subr.mxu0 0.0
    %1016 = vmatpush1.msra.mxu0 0.0
    %1017 = vmatprep.subr.mxu0 0.0
    %1018 = vmatpush1.msra.mxu0 0.0
    %1019 = vmatprep.mubr.f32.mxu0 0.0
    %1020 = vmatmul.mubr.f32.gmra.mrb[0].mxu0 %v953
    %v1021 = vpop.f32.mrb[0].mxu0
    %v1022 = vadd.f32 0.0, %v1021
    %v1023 = vpop.f32.mrb[0].mxu0
    %1024 = vdwg.mxu0
    %v1025 = vadd.f32 %v949, %v1022
    %v1026 = vxor.u32 %v1025, 2147483648
    %v1027 = vmul.f32 %v1026, 1.442695
    %v1028 = vpow.pop %v1027
    %v1029 = vadd.f32 %v1028, 1.0
    %v1030 = vrcp.pop %v1029
    %v1031 = vmul.f32 1.0, %v1030
    %v1032 = vtanh.pop %v1025
    %v1033 = vmul.f32 %v1031, %v942
    %1035 = vrot.lane.b32.xlu0 %v1032, 32
    %v1036 = vpop.permute.xlu0 %1035
    %v1038 = vmul.f32 %v1031, %v1036
    %1040 = vrot.lane.b32.xlu0 %v1038, 32
    %v1041 = vpop.permute.xlu0 %1040
    %v1043 = vadd.f32 %v1033, %v1041
    %v1044 = vtanh.pop %v1043
    %1046 = vrot.lane.b32.xlu0 %v1044, 32
    %v1047 = vpop.permute.xlu0 %1046
    %v1049 = vmul.f32 %v1031, %v1047
    %v1050 = vsel %vm688, %v818, %v833
    %1052 = vrot.lane.b32.xlu0 %v1049, 64
    %v1053 = vpop.permute.xlu0 %1052
    %v1054 = vsel %vm82, %v1053, 0
    %1056 = vmatprep.subr.mxu0 0.0
    %1057 = vmatpush1.msra.mxu0 %v846
    %1058 = vmatprep.subr.mxu0 0.0
    %1059 = vmatpush1.msra.mxu0 %v847
    %1060 = vmatprep.subr.mxu0 0.0
    %1061 = vmatpush1.msra.mxu0 %v848
    %1062 = vmatprep.subr.mxu0 0.0
    %1063 = vmatpush1.msra.mxu0 %v849
    %1064 = vmatprep.subr.mxu0 0.0
    %1065 = vmatpush1.msra.mxu0 0.0
    %1066 = vmatprep.subr.mxu0 0.0
    %1067 = vmatpush1.msra.mxu0 0.0
    %1068 = vmatprep.subr.mxu0 0.0
    %1069 = vmatpush1.msra.mxu0 0.0
    %1070 = vmatprep.subr.mxu0 0.0
    %1071 = vmatpush1.msra.mxu0 0.0
    %1072 = vmatprep.subr.mxu0 0.0
    %1073 = vmatpush1.msra.mxu0 0.0
    %1074 = vmatprep.subr.mxu0 0.0
    %1075 = vmatpush1.msra.mxu0 0.0
    %1076 = vmatprep.subr.mxu0 0.0
    %1077 = vmatpush1.msra.mxu0 0.0
    %1078 = vmatprep.subr.mxu0 0.0
    %1079 = vmatpush1.msra.mxu0 0.0
    %1080 = vmatprep.subr.mxu0 0.0
    %1081 = vmatpush1.msra.mxu0 0.0
    %1082 = vmatprep.subr.mxu0 0.0
    %1083 = vmatpush1.msra.mxu0 0.0
    %1084 = vmatprep.subr.mxu0 0.0
    %1085 = vmatpush1.msra.mxu0 0.0
    %1086 = vmatprep.subr.mxu0 0.0
    %1087 = vmatpush1.msra.mxu0 0.0
    %1088 = vmatprep.subr.mxu0 0.0
    %1089 = vmatpush1.msra.mxu0 0.0
    %1090 = vmatprep.subr.mxu0 0.0
    %1091 = vmatpush1.msra.mxu0 0.0
    %1092 = vmatprep.subr.mxu0 0.0
    %1093 = vmatpush1.msra.mxu0 0.0
    %1094 = vmatprep.subr.mxu0 0.0
    %1095 = vmatpush1.msra.mxu0 0.0
    %1096 = vmatprep.subr.mxu0 0.0
    %1097 = vmatpush1.msra.mxu0 0.0
    %1098 = vmatprep.subr.mxu0 0.0
    %1099 = vmatpush1.msra.mxu0 0.0
    %1100 = vmatprep.subr.mxu0 0.0
    %1101 = vmatpush1.msra.mxu0 0.0
    %1102 = vmatprep.subr.mxu0 0.0
    %1103 = vmatpush1.msra.mxu0 0.0
    %1104 = vmatprep.subr.mxu0 0.0
    %1105 = vmatpush1.msra.mxu0 0.0
    %1106 = vmatprep.subr.mxu0 0.0
    %1107 = vmatpush1.msra.mxu0 0.0
    %1108 = vmatprep.subr.mxu0 0.0
    %1109 = vmatpush1.msra.mxu0 0.0
    %1110 = vmatprep.subr.mxu0 0.0
    %1111 = vmatpush1.msra.mxu0 0.0
    %1112 = vmatprep.subr.mxu0 0.0
    %1113 = vmatpush1.msra.mxu0 0.0
    %1114 = vmatprep.subr.mxu0 0.0
    %1115 = vmatpush1.msra.mxu0 0.0
    %1116 = vmatprep.subr.mxu0 0.0
    %1117 = vmatpush1.msra.mxu0 0.0
    %1118 = vmatprep.subr.mxu0 0.0
    %1119 = vmatpush1.msra.mxu0 0.0
    %1120 = vmatprep.mubr.f32.mxu0 0.0
    %1121 = vmatmul.mubr.f32.gmra.mrb[0].mxu0 %v1054
    %v1122 = vpop.f32.mrb[0].mxu0
    %v1123 = vadd.f32 0.0, %v1122
    %v1124 = vpop.f32.mrb[0].mxu0
    %1125 = vdwg.mxu0
    %v1126 = vadd.f32 %v1050, %v1123
    %v1127 = vxor.u32 %v1126, 2147483648
    %v1128 = vmul.f32 %v1127, 1.442695
    %v1129 = vpow.pop %v1128
    %v1130 = vadd.f32 %v1129, 1.0
    %v1131 = vrcp.pop %v1130
    %v1132 = vmul.f32 1.0, %v1131
    %v1133 = vtanh.pop %v1126
    %v1134 = vmul.f32 %v1132, %v1043
    %1136 = vrot.lane.b32.xlu0 %v1133, 32
    %v1137 = vpop.permute.xlu0 %1136
    %v1139 = vmul.f32 %v1132, %v1137
    %1141 = vrot.lane.b32.xlu0 %v1139, 32
    %v1142 = vpop.permute.xlu0 %1141
    %v1144 = vadd.f32 %v1134, %v1142
    %v1145 = vtanh.pop %v1144
    %1147 = vrot.lane.b32.xlu0 %v1145, 32
    %v1148 = vpop.permute.xlu0 %1147
    %v1150 = vmul.f32 %v1132, %v1148
    %v1151 = vsel %vm688, %v823, %v828
    %1153 = vrot.lane.b32.xlu0 %v1150, 64
    %v1154 = vpop.permute.xlu0 %1153
    %v1155 = vsel %vm82, %v1154, 0
    %1157 = vmatprep.subr.mxu0 0.0
    %1158 = vmatpush1.msra.mxu0 %v846
    %1159 = vmatprep.subr.mxu0 0.0
    %1160 = vmatpush1.msra.mxu0 %v847
    %1161 = vmatprep.subr.mxu0 0.0
    %1162 = vmatpush1.msra.mxu0 %v848
    %1163 = vmatprep.subr.mxu0 0.0
    %1164 = vmatpush1.msra.mxu0 %v849
    %1165 = vmatprep.subr.mxu0 0.0
    %1166 = vmatpush1.msra.mxu0 0.0
    %1167 = vmatprep.subr.mxu0 0.0
    %1168 = vmatpush1.msra.mxu0 0.0
    %1169 = vmatprep.subr.mxu0 0.0
    %1170 = vmatpush1.msra.mxu0 0.0
    %1171 = vmatprep.subr.mxu0 0.0
    %1172 = vmatpush1.msra.mxu0 0.0
    %1173 = vmatprep.subr.mxu0 0.0
    %1174 = vmatpush1.msra.mxu0 0.0
    %1175 = vmatprep.subr.mxu0 0.0
    %1176 = vmatpush1.msra.mxu0 0.0
    %1177 = vmatprep.subr.mxu0 0.0
    %1178 = vmatpush1.msra.mxu0 0.0
    %1179 = vmatprep.subr.mxu0 0.0
    %1180 = vmatpush1.msra.mxu0 0.0
    %1181 = vmatprep.subr.mxu0 0.0
    %1182 = vmatpush1.msra.mxu0 0.0
    %1183 = vmatprep.subr.mxu0 0.0
    %1184 = vmatpush1.msra.mxu0 0.0
    %1185 = vmatprep.subr.mxu0 0.0
    %1186 = vmatpush1.msra.mxu0 0.0
    %1187 = vmatprep.subr.mxu0 0.0
    %1188 = vmatpush1.msra.mxu0 0.0
    %1189 = vmatprep.subr.mxu0 0.0
    %1190 = vmatpush1.msra.mxu0 0.0
    %1191 = vmatprep.subr.mxu0 0.0
    %1192 = vmatpush1.msra.mxu0 0.0
    %1193 = vmatprep.subr.mxu0 0.0
    %1194 = vmatpush1.msra.mxu0 0.0
    %1195 = vmatprep.subr.mxu0 0.0
    %1196 = vmatpush1.msra.mxu0 0.0
    %1197 = vmatprep.subr.mxu0 0.0
    %1198 = vmatpush1.msra.mxu0 0.0
    %1199 = vmatprep.subr.mxu0 0.0
    %1200 = vmatpush1.msra.mxu0 0.0
    %1201 = vmatprep.subr.mxu0 0.0
    %1202 = vmatpush1.msra.mxu0 0.0
    %1203 = vmatprep.subr.mxu0 0.0
    %1204 = vmatpush1.msra.mxu0 0.0
    %1205 = vmatprep.subr.mxu0 0.0
    %1206 = vmatpush1.msra.mxu0 0.0
    %1207 = vmatprep.subr.mxu0 0.0
    %1208 = vmatpush1.msra.mxu0 0.0
    %1209 = vmatprep.subr.mxu0 0.0
    %1210 = vmatpush1.msra.mxu0 0.0
    %1211 = vmatprep.subr.mxu0 0.0
    %1212 = vmatpush1.msra.mxu0 0.0
    %1213 = vmatprep.subr.mxu0 0.0
    %1214 = vmatpush1.msra.mxu0 0.0
    %1215 = vmatprep.subr.mxu0 0.0
    %1216 = vmatpush1.msra.mxu0 0.0
    %1217 = vmatprep.subr.mxu0 0.0
    %1218 = vmatpush1.msra.mxu0 0.0
    %1219 = vmatprep.subr.mxu0 0.0
    %1220 = vmatpush1.msra.mxu0 0.0
    %1221 = vmatprep.mubr.f32.mxu0 0.0
    %1222 = vmatmul.mubr.f32.gmra.mrb[0].mxu0 %v1155
    %v1223 = vpop.f32.mrb[0].mxu0
    %v1224 = vadd.f32 0.0, %v1223
    %v1225 = vpop.f32.mrb[0].mxu0
    %1226 = vdwg.mxu0
    %v1227 = vadd.f32 %v1151, %v1224
    %v1228 = vxor.u32 %v1227, 2147483648
    %v1229 = vmul.f32 %v1228, 1.442695
    %v1230 = vpow.pop %v1229
    %v1231 = vadd.f32 %v1230, 1.0
    %v1232 = vrcp.pop %v1231
    %v1233 = vmul.f32 1.0, %v1232
    %v1234 = vtanh.pop %v1227
    %v1235 = vmul.f32 %v1233, %v1144
    %1237 = vrot.lane.b32.xlu0 %v1234, 32
    %v1238 = vpop.permute.xlu0 %1237
    %v1240 = vmul.f32 %v1233, %v1238
    %1242 = vrot.lane.b32.xlu0 %v1240, 32
    %v1243 = vpop.permute.xlu0 %1242
    %v1245 = vadd.f32 %v1235, %v1243
    %v1246 = vtanh.pop %v1245
    %1248 = vrot.lane.b32.xlu0 %v1246, 32
    %v1249 = vpop.permute.xlu0 %1248
    %v1251 = vmul.f32 %v1233, %v1249
    %v1252 = vsel %vm688, %v828, %v823
    %1254 = vrot.lane.b32.xlu0 %v1251, 64
    %v1255 = vpop.permute.xlu0 %1254
    %v1256 = vsel %vm82, %v1255, 0
    %1258 = vmatprep.subr.mxu0 0.0
    %1259 = vmatpush1.msra.mxu0 %v846
    %1260 = vmatprep.subr.mxu0 0.0
    %1261 = vmatpush1.msra.mxu0 %v847
    %1262 = vmatprep.subr.mxu0 0.0
    %1263 = vmatpush1.msra.mxu0 %v848
    %1264 = vmatprep.subr.mxu0 0.0
    %1265 = vmatpush1.msra.mxu0 %v849
    %1266 = vmatprep.subr.mxu0 0.0
    %1267 = vmatpush1.msra.mxu0 0.0
    %1268 = vmatprep.subr.mxu0 0.0
    %1269 = vmatpush1.msra.mxu0 0.0
    %1270 = vmatprep.subr.mxu0 0.0
    %1271 = vmatpush1.msra.mxu0 0.0
    %1272 = vmatprep.subr.mxu0 0.0
    %1273 = vmatpush1.msra.mxu0 0.0
    %1274 = vmatprep.subr.mxu0 0.0
    %1275 = vmatpush1.msra.mxu0 0.0
    %1276 = vmatprep.subr.mxu0 0.0
    %1277 = vmatpush1.msra.mxu0 0.0
    %1278 = vmatprep.subr.mxu0 0.0
    %1279 = vmatpush1.msra.mxu0 0.0
    %1280 = vmatprep.subr.mxu0 0.0
    %1281 = vmatpush1.msra.mxu0 0.0
    %1282 = vmatprep.subr.mxu0 0.0
    %1283 = vmatpush1.msra.mxu0 0.0
    %1284 = vmatprep.subr.mxu0 0.0
    %1285 = vmatpush1.msra.mxu0 0.0
    %1286 = vmatprep.subr.mxu0 0.0
    %1287 = vmatpush1.msra.mxu0 0.0
    %1288 = vmatprep.subr.mxu0 0.0
    %1289 = vmatpush1.msra.mxu0 0.0
    %1290 = vmatprep.subr.mxu0 0.0
    %1291 = vmatpush1.msra.mxu0 0.0
    %1292 = vmatprep.subr.mxu0 0.0
    %1293 = vmatpush1.msra.mxu0 0.0
    %1294 = vmatprep.subr.mxu0 0.0
    %1295 = vmatpush1.msra.mxu0 0.0
    %1296 = vmatprep.subr.mxu0 0.0
    %1297 = vmatpush1.msra.mxu0 0.0
    %1298 = vmatprep.subr.mxu0 0.0
    %1299 = vmatpush1.msra.mxu0 0.0
    %1300 = vmatprep.subr.mxu0 0.0
    %1301 = vmatpush1.msra.mxu0 0.0
    %1302 = vmatprep.subr.mxu0 0.0
    %1303 = vmatpush1.msra.mxu0 0.0
    %1304 = vmatprep.subr.mxu0 0.0
    %1305 = vmatpush1.msra.mxu0 0.0
    %1306 = vmatprep.subr.mxu0 0.0
    %1307 = vmatpush1.msra.mxu0 0.0
    %1308 = vmatprep.subr.mxu0 0.0
    %1309 = vmatpush1.msra.mxu0 0.0
    %1310 = vmatprep.subr.mxu0 0.0
    %1311 = vmatpush1.msra.mxu0 0.0
    %1312 = vmatprep.subr.mxu0 0.0
    %1313 = vmatpush1.msra.mxu0 0.0
    %1314 = vmatprep.subr.mxu0 0.0
    %1315 = vmatpush1.msra.mxu0 0.0
    %1316 = vmatprep.subr.mxu0 0.0
    %1317 = vmatpush1.msra.mxu0 0.0
    %1318 = vmatprep.subr.mxu0 0.0
    %1319 = vmatpush1.msra.mxu0 0.0
    %1320 = vmatprep.subr.mxu0 0.0
    %1321 = vmatpush1.msra.mxu0 0.0
    %1322 = vmatprep.mubr.f32.mxu0 0.0
    %1323 = vmatmul.mubr.f32.gmra.mrb[0].mxu0 %v1256
    %v1324 = vpop.f32.mrb[0].mxu0
    %v1325 = vadd.f32 0.0, %v1324
    %v1326 = vpop.f32.mrb[0].mxu0
    %1327 = vdwg.mxu0
    %v1328 = vadd.f32 %v1252, %v1325
    %v1329 = vxor.u32 %v1328, 2147483648
    %v1330 = vmul.f32 %v1329, 1.442695
    %v1331 = vpow.pop %v1330
    %v1332 = vadd.f32 %v1331, 1.0
    %v1333 = vrcp.pop %v1332
    %v1334 = vmul.f32 1.0, %v1333
    %v1335 = vtanh.pop %v1328
    %v1336 = vmul.f32 %v1334, %v1245
    %1338 = vrot.lane.b32.xlu0 %v1335, 32
    %v1339 = vpop.permute.xlu0 %1338
    %v1341 = vmul.f32 %v1334, %v1339
    %1343 = vrot.lane.b32.xlu0 %v1341, 32
    %v1344 = vpop.permute.xlu0 %1343
    %v1346 = vadd.f32 %v1336, %v1344
    %v1347 = vtanh.pop %v1346
    %1349 = vrot.lane.b32.xlu0 %v1347, 32
    %v1350 = vpop.permute.xlu0 %1349
    %v1352 = vmul.f32 %v1334, %v1350
    %v1353 = vsel %vm688, %v833, %v818
    %1355 = vrot.lane.b32.xlu0 %v1352, 64
    %v1356 = vpop.permute.xlu0 %1355
    %v1357 = vsel %vm82, %v1356, 0
    %1359 = vmatprep.subr.mxu0 0.0
    %1360 = vmatpush1.msra.mxu0 %v846
    %1361 = vmatprep.subr.mxu0 0.0
    %1362 = vmatpush1.msra.mxu0 %v847
    %1363 = vmatprep.subr.mxu0 0.0
    %1364 = vmatpush1.msra.mxu0 %v848
    %1365 = vmatprep.subr.mxu0 0.0
    %1366 = vmatpush1.msra.mxu0 %v849
    %1367 = vmatprep.subr.mxu0 0.0
    %1368 = vmatpush1.msra.mxu0 0.0
    %1369 = vmatprep.subr.mxu0 0.0
    %1370 = vmatpush1.msra.mxu0 0.0
    %1371 = vmatprep.subr.mxu0 0.0
    %1372 = vmatpush1.msra.mxu0 0.0
    %1373 = vmatprep.subr.mxu0 0.0
    %1374 = vmatpush1.msra.mxu0 0.0
    %1375 = vmatprep.subr.mxu0 0.0
    %1376 = vmatpush1.msra.mxu0 0.0
    %1377 = vmatprep.subr.mxu0 0.0
    %1378 = vmatpush1.msra.mxu0 0.0
    %1379 = vmatprep.subr.mxu0 0.0
    %1380 = vmatpush1.msra.mxu0 0.0
    %1381 = vmatprep.subr.mxu0 0.0
    %1382 = vmatpush1.msra.mxu0 0.0
    %1383 = vmatprep.subr.mxu0 0.0
    %1384 = vmatpush1.msra.mxu0 0.0
    %1385 = vmatprep.subr.mxu0 0.0
    %1386 = vmatpush1.msra.mxu0 0.0
    %1387 = vmatprep.subr.mxu0 0.0
    %1388 = vmatpush1.msra.mxu0 0.0
    %1389 = vmatprep.subr.mxu0 0.0
    %1390 = vmatpush1.msra.mxu0 0.0
    %1391 = vmatprep.subr.mxu0 0.0
    %1392 = vmatpush1.msra.mxu0 0.0
    %1393 = vmatprep.subr.mxu0 0.0
    %1394 = vmatpush1.msra.mxu0 0.0
    %1395 = vmatprep.subr.mxu0 0.0
    %1396 = vmatpush1.msra.mxu0 0.0
    %1397 = vmatprep.subr.mxu0 0.0
    %1398 = vmatpush1.msra.mxu0 0.0
    %1399 = vmatprep.subr.mxu0 0.0
    %1400 = vmatpush1.msra.mxu0 0.0
    %1401 = vmatprep.subr.mxu0 0.0
    %1402 = vmatpush1.msra.mxu0 0.0
    %1403 = vmatprep.subr.mxu0 0.0
    %1404 = vmatpush1.msra.mxu0 0.0
    %1405 = vmatprep.subr.mxu0 0.0
    %1406 = vmatpush1.msra.mxu0 0.0
    %1407 = vmatprep.subr.mxu0 0.0
    %1408 = vmatpush1.msra.mxu0 0.0
    %1409 = vmatprep.subr.mxu0 0.0
    %1410 = vmatpush1.msra.mxu0 0.0
    %1411 = vmatprep.subr.mxu0 0.0
    %1412 = vmatpush1.msra.mxu0 0.0
    %1413 = vmatprep.subr.mxu0 0.0
    %1414 = vmatpush1.msra.mxu0 0.0
    %1415 = vmatprep.subr.mxu0 0.0
    %1416 = vmatpush1.msra.mxu0 0.0
    %1417 = vmatprep.subr.mxu0 0.0
    %1418 = vmatpush1.msra.mxu0 0.0
    %1419 = vmatprep.subr.mxu0 0.0
    %1420 = vmatpush1.msra.mxu0 0.0
    %1421 = vmatprep.subr.mxu0 0.0
    %1422 = vmatpush1.msra.mxu0 0.0
    %1423 = vmatprep.mubr.f32.mxu0 0.0
    %1424 = vmatmul.mubr.f32.gmra.mrb[0].mxu0 %v1357
    %v1425 = vpop.f32.mrb[0].mxu0
    %v1426 = vadd.f32 0.0, %v1425
    %v1427 = vpop.f32.mrb[0].mxu0
    %1428 = vdwg.mxu0
    %v1429 = vadd.f32 %v1353, %v1426
    %v1430 = vxor.u32 %v1429, 2147483648
    %v1431 = vmul.f32 %v1430, 1.442695
    %v1432 = vpow.pop %v1431
    %v1433 = vadd.f32 %v1432, 1.0
    %v1434 = vrcp.pop %v1433
    %v1435 = vmul.f32 1.0, %v1434
    %v1436 = vtanh.pop %v1429
    %v1437 = vmul.f32 %v1435, %v1346
    %1439 = vrot.lane.b32.xlu0 %v1436, 32
    %v1440 = vpop.permute.xlu0 %1439
    %v1442 = vmul.f32 %v1435, %v1440
    %1444 = vrot.lane.b32.xlu0 %v1442, 32
    %v1445 = vpop.permute.xlu0 %1444
    %v1447 = vadd.f32 %v1437, %v1445
    %v1448 = vtanh.pop %v1447
    %1450 = vrot.lane.b32.xlu0 %v1448, 32
    %v1451 = vpop.permute.xlu0 %1450
    %v1453 = vmul.f32 %v1435, %v1451
    %v1454 = vsel %vm688, %v838, %v813
    %1456 = vrot.lane.b32.xlu0 %v1453, 64
    %v1457 = vpop.permute.xlu0 %1456
    %v1458 = vsel %vm82, %v1457, 0
    %1460 = vmatprep.subr.mxu0 0.0
    %1461 = vmatpush1.msra.mxu0 %v846
    %1462 = vmatprep.subr.mxu0 0.0
    %1463 = vmatpush1.msra.mxu0 %v847
    %1464 = vmatprep.subr.mxu0 0.0
    %1465 = vmatpush1.msra.mxu0 %v848
    %1466 = vmatprep.subr.mxu0 0.0
    %1467 = vmatpush1.msra.mxu0 %v849
    %1468 = vmatprep.subr.mxu0 0.0
    %1469 = vmatpush1.msra.mxu0 0.0
    %1470 = vmatprep.subr.mxu0 0.0
    %1471 = vmatpush1.msra.mxu0 0.0
    %1472 = vmatprep.subr.mxu0 0.0
    %1473 = vmatpush1.msra.mxu0 0.0
    %1474 = vmatprep.subr.mxu0 0.0
    %1475 = vmatpush1.msra.mxu0 0.0
    %1476 = vmatprep.subr.mxu0 0.0
    %1477 = vmatpush1.msra.mxu0 0.0
    %1478 = vmatprep.subr.mxu0 0.0
    %1479 = vmatpush1.msra.mxu0 0.0
    %1480 = vmatprep.subr.mxu0 0.0
    %1481 = vmatpush1.msra.mxu0 0.0
    %1482 = vmatprep.subr.mxu0 0.0
    %1483 = vmatpush1.msra.mxu0 0.0
    %1484 = vmatprep.subr.mxu0 0.0
    %1485 = vmatpush1.msra.mxu0 0.0
    %1486 = vmatprep.subr.mxu0 0.0
    %1487 = vmatpush1.msra.mxu0 0.0
    %1488 = vmatprep.subr.mxu0 0.0
    %1489 = vmatpush1.msra.mxu0 0.0
    %1490 = vmatprep.subr.mxu0 0.0
    %1491 = vmatpush1.msra.mxu0 0.0
    %1492 = vmatprep.subr.mxu0 0.0
    %1493 = vmatpush1.msra.mxu0 0.0
    %1494 = vmatprep.subr.mxu0 0.0
    %1495 = vmatpush1.msra.mxu0 0.0
    %1496 = vmatprep.subr.mxu0 0.0
    %1497 = vmatpush1.msra.mxu0 0.0
    %1498 = vmatprep.subr.mxu0 0.0
    %1499 = vmatpush1.msra.mxu0 0.0
    %1500 = vmatprep.subr.mxu0 0.0
    %1501 = vmatpush1.msra.mxu0 0.0
    %1502 = vmatprep.subr.mxu0 0.0
    %1503 = vmatpush1.msra.mxu0 0.0
    %1504 = vmatprep.subr.mxu0 0.0
    %1505 = vmatpush1.msra.mxu0 0.0
    %1506 = vmatprep.subr.mxu0 0.0
    %1507 = vmatpush1.msra.mxu0 0.0
    %1508 = vmatprep.subr.mxu0 0.0
    %1509 = vmatpush1.msra.mxu0 0.0
    %1510 = vmatprep.subr.mxu0 0.0
    %1511 = vmatpush1.msra.mxu0 0.0
    %1512 = vmatprep.subr.mxu0 0.0
    %1513 = vmatpush1.msra.mxu0 0.0
    %1514 = vmatprep.subr.mxu0 0.0
    %1515 = vmatpush1.msra.mxu0 0.0
    %1516 = vmatprep.subr.mxu0 0.0
    %1517 = vmatpush1.msra.mxu0 0.0
    %1518 = vmatprep.subr.mxu0 0.0
    %1519 = vmatpush1.msra.mxu0 0.0
    %1520 = vmatprep.subr.mxu0 0.0
    %1521 = vmatpush1.msra.mxu0 0.0
    %1522 = vmatprep.subr.mxu0 0.0
    %1523 = vmatpush1.msra.mxu0 0.0
    %1524 = vmatprep.mubr.f32.mxu0 0.0
    %1525 = vmatmul.mubr.f32.gmra.mrb[0].mxu0 %v1458
    %v1526 = vpop.f32.mrb[0].mxu0
    %v1527 = vadd.f32 0.0, %v1526
    %v1528 = vpop.f32.mrb[0].mxu0
    %1529 = vdwg.mxu0
    %v1530 = vadd.f32 %v1454, %v1527
    %v1531 = vxor.u32 %v1530, 2147483648
    %v1532 = vmul.f32 %v1531, 1.442695
    %v1533 = vpow.pop %v1532
    %v1534 = vadd.f32 %v1533, 1.0
    %v1535 = vrcp.pop %v1534
    %v1536 = vmul.f32 1.0, %v1535
    %v1537 = vtanh.pop %v1530
    %v1538 = vmul.f32 %v1536, %v1447
    %1540 = vrot.lane.b32.xlu0 %v1537, 32
    %v1541 = vpop.permute.xlu0 %1540
    %v1543 = vmul.f32 %v1536, %v1541
    %1545 = vrot.lane.b32.xlu0 %v1543, 32
    %v1546 = vpop.permute.xlu0 %1545
    %v1548 = vadd.f32 %v1538, %v1546
    %v1549 = vtanh.pop %v1548
    %1551 = vrot.lane.b32.xlu0 %v1549, 32
    %v1552 = vpop.permute.xlu0 %1551
    %v1554 = vmul.f32 %v1536, %v1552
    %v1555 = vsel %vm688, %v843, %v808
    %1557 = vrot.lane.b32.xlu0 %v1554, 64
    %v1558 = vpop.permute.xlu0 %1557
    %v1559 = vsel %vm82, %v1558, 0
    %1561 = vmatprep.subr.mxu0 0.0
    %1562 = vmatpush1.msra.mxu0 %v846
    %1563 = vmatprep.subr.mxu0 0.0
    %1564 = vmatpush1.msra.mxu0 %v847
    %1565 = vmatprep.subr.mxu0 0.0
    %1566 = vmatpush1.msra.mxu0 %v848
    %1567 = vmatprep.subr.mxu0 0.0
    %1568 = vmatpush1.msra.mxu0 %v849
    %1569 = vmatprep.subr.mxu0 0.0
    %1570 = vmatpush1.msra.mxu0 0.0
    %1571 = vmatprep.subr.mxu0 0.0
    %1572 = vmatpush1.msra.mxu0 0.0
    %1573 = vmatprep.subr.mxu0 0.0
    %1574 = vmatpush1.msra.mxu0 0.0
    %1575 = vmatprep.subr.mxu0 0.0
    %1576 = vmatpush1.msra.mxu0 0.0
    %1577 = vmatprep.subr.mxu0 0.0
    %1578 = vmatpush1.msra.mxu0 0.0
    %1579 = vmatprep.subr.mxu0 0.0
    %1580 = vmatpush1.msra.mxu0 0.0
    %1581 = vmatprep.subr.mxu0 0.0
    %1582 = vmatpush1.msra.mxu0 0.0
    %1583 = vmatprep.subr.mxu0 0.0
    %1584 = vmatpush1.msra.mxu0 0.0
    %1585 = vmatprep.subr.mxu0 0.0
    %1586 = vmatpush1.msra.mxu0 0.0
    %1587 = vmatprep.subr.mxu0 0.0
    %1588 = vmatpush1.msra.mxu0 0.0
    %1589 = vmatprep.subr.mxu0 0.0
    %1590 = vmatpush1.msra.mxu0 0.0
    %1591 = vmatprep.subr.mxu0 0.0
    %1592 = vmatpush1.msra.mxu0 0.0
    %1593 = vmatprep.subr.mxu0 0.0
    %1594 = vmatpush1.msra.mxu0 0.0
    %1595 = vmatprep.subr.mxu0 0.0
    %1596 = vmatpush1.msra.mxu0 0.0
    %1597 = vmatprep.subr.mxu0 0.0
    %1598 = vmatpush1.msra.mxu0 0.0
    %1599 = vmatprep.subr.mxu0 0.0
    %1600 = vmatpush1.msra.mxu0 0.0
    %1601 = vmatprep.subr.mxu0 0.0
    %1602 = vmatpush1.msra.mxu0 0.0
    %1603 = vmatprep.subr.mxu0 0.0
    %1604 = vmatpush1.msra.mxu0 0.0
    %1605 = vmatprep.subr.mxu0 0.0
    %1606 = vmatpush1.msra.mxu0 0.0
    %1607 = vmatprep.subr.mxu0 0.0
    %1608 = vmatpush1.msra.mxu0 0.0
    %1609 = vmatprep.subr.mxu0 0.0
    %1610 = vmatpush1.msra.mxu0 0.0
    %1611 = vmatprep.subr.mxu0 0.0
    %1612 = vmatpush1.msra.mxu0 0.0
    %1613 = vmatprep.subr.mxu0 0.0
    %1614 = vmatpush1.msra.mxu0 0.0
    %1615 = vmatprep.subr.mxu0 0.0
    %1616 = vmatpush1.msra.mxu0 0.0
    %1617 = vmatprep.subr.mxu0 0.0
    %1618 = vmatpush1.msra.mxu0 0.0
    %1619 = vmatprep.subr.mxu0 0.0
    %1620 = vmatpush1.msra.mxu0 0.0
    %1621 = vmatprep.subr.mxu0 0.0
    %1622 = vmatpush1.msra.mxu0 0.0
    %1623 = vmatprep.subr.mxu0 0.0
    %1624 = vmatpush1.msra.mxu0 0.0
    %1625 = vmatprep.mubr.f32.mxu0 0.0
    %1626 = vmatmul.mubr.f32.gmra.mrb[0].mxu0 %v1559
    %v1627 = vpop.f32.mrb[0].mxu0
    %v1628 = vadd.f32 0.0, %v1627
    %v1629 = vpop.f32.mrb[0].mxu0
    %1630 = vdwg.mxu0
    %v1631 = vadd.f32 %v1555, %v1628
    %v1632 = vxor.u32 %v1631, 2147483648
    %v1633 = vmul.f32 %v1632, 1.442695
    %v1634 = vpow.pop %v1633
    %v1635 = vadd.f32 %v1634, 1.0
    %v1636 = vrcp.pop %v1635
    %v1637 = vmul.f32 1.0, %v1636
    %v1638 = vtanh.pop %v1631
    %v1639 = vmul.f32 %v1637, %v1548
    %1641 = vrot.lane.b32.xlu0 %v1638, 32
    %v1642 = vpop.permute.xlu0 %1641
    %v1644 = vmul.f32 %v1637, %v1642
    %1646 = vrot.lane.b32.xlu0 %v1644, 32
    %v1647 = vpop.permute.xlu0 %1646
    %v1649 = vadd.f32 %v1639, %v1647
    %v1650 = vtanh.pop %v1649
    %1652 = vrot.lane.b32.xlu0 %v1650, 32
    %v1653 = vpop.permute.xlu0 %1652
    %v1655 = vmul.f32 %v1637, %v1653
    %1658 = vrot.lane.b32.xlu0 %v1655, 64
    %v1659 = vpop.permute.xlu0 %1658
    %v1661 = vsel %vm689, %v952, %v1659
    %v1664 = vsel %vm689, %v1053, %v1558
    %v1667 = vsel %vm689, %v1154, %v1457
    %v1670 = vsel %vm689, %v1255, %v1356
    %v1671 = vsel %vm689, %v1356, %v1255
    %v1672 = vsel %vm689, %v1457, %v1154
    %v1673 = vsel %vm689, %v1558, %v1053
    %v1674 = vsel %vm689, %v1659, %v952
    %v1675 = vld [vmem:[%s6] sm:$0xff]
    %v1676 = vld [vmem:[%s6 + $0x8] sm:$0xff]
    %v1677 = vld [vmem:[%s6 + $0x10] sm:$0xff]
    %v1678 = vld [vmem:[%s6 + $0x18] sm:$0xff]
    %v1679 = vld [vmem:[#allocation5] sm:$0x1]
    %v1681 = vlaneseq
    %v1682 = vshrl.u32 %v1681, 7
    %v1683 = vsub.s32 0, %v1682
    %v1684 = vrot.slane %v1679, %v1683
    %v1687 = vsel %vm82, %v1661, 0
    %v1690 = vsel %vm82, %v1664, 0
    %v1693 = vsel %vm82, %v1667, 0
    %v1696 = vsel %vm82, %v1670, 0
    %v1699 = vsel %vm82, %v1671, 0
    %v1702 = vsel %vm82, %v1672, 0
    %v1705 = vsel %vm82, %v1673, 0
    %v1708 = vsel %vm82, %v1674, 0
    %1710 = vmatprep.subr.mxu0 0.0
    %1711 = vmatpush1.msra.mxu0 %v1675
    %1712 = vmatprep.subr.mxu0 0.0
    %1713 = vmatpush1.msra.mxu0 %v1676
    %1714 = vmatprep.subr.mxu0 0.0
    %1715 = vmatpush1.msra.mxu0 %v1677
    %1716 = vmatprep.subr.mxu0 0.0
    %1717 = vmatpush1.msra.mxu0 %v1678
    %1718 = vmatprep.subr.mxu0 0.0
    %1719 = vmatpush1.msra.mxu0 0.0
    %1720 = vmatprep.subr.mxu0 0.0
    %1721 = vmatpush1.msra.mxu0 0.0
    %1722 = vmatprep.subr.mxu0 0.0
    %1723 = vmatpush1.msra.mxu0 0.0
    %1724 = vmatprep.subr.mxu0 0.0
    %1725 = vmatpush1.msra.mxu0 0.0
    %1726 = vmatprep.subr.mxu0 0.0
    %1727 = vmatpush1.msra.mxu0 0.0
    %1728 = vmatprep.subr.mxu0 0.0
    %1729 = vmatpush1.msra.mxu0 0.0
    %1730 = vmatprep.subr.mxu0 0.0
    %1731 = vmatpush1.msra.mxu0 0.0
    %1732 = vmatprep.subr.mxu0 0.0
    %1733 = vmatpush1.msra.mxu0 0.0
    %1734 = vmatprep.subr.mxu0 0.0
    %1735 = vmatpush1.msra.mxu0 0.0
    %1736 = vmatprep.subr.mxu0 0.0
    %1737 = vmatpush1.msra.mxu0 0.0
    %1738 = vmatprep.subr.mxu0 0.0
    %1739 = vmatpush1.msra.mxu0 0.0
    %1740 = vmatprep.subr.mxu0 0.0
    %1741 = vmatpush1.msra.mxu0 0.0
    %1742 = vmatprep.subr.mxu0 0.0
    %1743 = vmatpush1.msra.mxu0 0.0
    %1744 = vmatprep.subr.mxu0 0.0
    %1745 = vmatpush1.msra.mxu0 0.0
    %1746 = vmatprep.subr.mxu0 0.0
    %1747 = vmatpush1.msra.mxu0 0.0
    %1748 = vmatprep.subr.mxu0 0.0
    %1749 = vmatpush1.msra.mxu0 0.0
    %1750 = vmatprep.subr.mxu0 0.0
    %1751 = vmatpush1.msra.mxu0 0.0
    %1752 = vmatprep.subr.mxu0 0.0
    %1753 = vmatpush1.msra.mxu0 0.0
    %1754 = vmatprep.subr.mxu0 0.0
    %1755 = vmatpush1.msra.mxu0 0.0
    %1756 = vmatprep.subr.mxu0 0.0
    %1757 = vmatpush1.msra.mxu0 0.0
    %1758 = vmatprep.subr.mxu0 0.0
    %1759 = vmatpush1.msra.mxu0 0.0
    %1760 = vmatprep.subr.mxu0 0.0
    %1761 = vmatpush1.msra.mxu0 0.0
    %1762 = vmatprep.subr.mxu0 0.0
    %1763 = vmatpush1.msra.mxu0 0.0
    %1764 = vmatprep.subr.mxu0 0.0
    %1765 = vmatpush1.msra.mxu0 0.0
    %1766 = vmatprep.subr.mxu0 0.0
    %1767 = vmatpush1.msra.mxu0 0.0
    %1768 = vmatprep.subr.mxu0 0.0
    %1769 = vmatpush1.msra.mxu0 0.0
    %1770 = vmatprep.subr.mxu0 0.0
    %1771 = vmatpush1.msra.mxu0 0.0
    %1772 = vmatprep.subr.mxu0 0.0
    %1773 = vmatpush1.msra.mxu0 0.0
    %1774 = vmatprep.mubr.f32.mxu0 0.0
    %1775 = vmatmul.mubr.f32.gmra.mrb[0].mxu0 %v1687
    %v1776 = vpop.f32.mrb[0].mxu0
    %v1777 = vadd.f32 %v1684, %v1776
    %v1778 = vpop.f32.mrb[0].mxu0
    %1779 = vmatprep.mubr.f32.mxu0 0.0
    %1780 = vmatmul.mubr.f32.gmra.mrb[0].mxu0 %v1690
    %v1781 = vpop.f32.mrb[0].mxu0
    %v1782 = vadd.f32 %v1684, %v1781
    %v1783 = vpop.f32.mrb[0].mxu0
    %1784 = vmatprep.mubr.f32.mxu0 0.0
    %1785 = vmatmul.mubr.f32.gmra.mrb[0].mxu0 %v1693
    %v1786 = vpop.f32.mrb[0].mxu0
    %v1787 = vadd.f32 %v1684, %v1786
    %v1788 = vpop.f32.mrb[0].mxu0
    %1789 = vmatprep.mubr.f32.mxu0 0.0
    %1790 = vmatmul.mubr.f32.gmra.mrb[0].mxu0 %v1696
    %v1791 = vpop.f32.mrb[0].mxu0
    %v1792 = vadd.f32 %v1684, %v1791
    %v1793 = vpop.f32.mrb[0].mxu0
    %1794 = vmatprep.mubr.f32.mxu0 0.0
    %1795 = vmatmul.mubr.f32.gmra.mrb[0].mxu0 %v1699
    %v1796 = vpop.f32.mrb[0].mxu0
    %v1797 = vadd.f32 %v1684, %v1796
    %v1798 = vpop.f32.mrb[0].mxu0
    %1799 = vmatprep.mubr.f32.mxu0 0.0
    %1800 = vmatmul.mubr.f32.gmra.mrb[0].mxu0 %v1702
    %v1801 = vpop.f32.mrb[0].mxu0
    %v1802 = vadd.f32 %v1684, %v1801
    %v1803 = vpop.f32.mrb[0].mxu0
    %1804 = vmatprep.mubr.f32.mxu0 0.0
    %1805 = vmatmul.mubr.f32.gmra.mrb[0].mxu0 %v1705
    %v1806 = vpop.f32.mrb[0].mxu0
    %v1807 = vadd.f32 %v1684, %v1806
    %v1808 = vpop.f32.mrb[0].mxu0
    %1809 = vmatprep.mubr.f32.mxu0 0.0
    %1810 = vmatmul.mubr.f32.gmra.mrb[0].mxu0 %v1708
    %v1811 = vpop.f32.mrb[0].mxu0
    %v1812 = vadd.f32 %v1684, %v1811
    %v1813 = vpop.f32.mrb[0].mxu0
    %1814 = vdwg.mxu0
    %v1815 = vld [vmem:[%s7] sm:$0xff]
    %v1816 = vld [vmem:[%s7 + $0x8] sm:$0xff]
    %v1817 = vld [vmem:[%s7 + $0x10] sm:$0xff]
    %v1818 = vld [vmem:[%s7 + $0x18] sm:$0xff]
    %v1819 = vsel %vm688, %v1777, %v1812
    %1820 = vmatprep.subr.mxu0 0.0
    %1821 = vmatpush1.msra.mxu0 %v1815
    %1822 = vmatprep.subr.mxu0 0.0
    %1823 = vmatpush1.msra.mxu0 %v1816
    %1824 = vmatprep.subr.mxu0 0.0
    %1825 = vmatpush1.msra.mxu0 %v1817
    %1826 = vmatprep.subr.mxu0 0.0
    %1827 = vmatpush1.msra.mxu0 %v1818
    %1828 = vmatprep.subr.mxu0 0.0
    %1829 = vmatpush1.msra.mxu0 0.0
    %1830 = vmatprep.subr.mxu0 0.0
    %1831 = vmatpush1.msra.mxu0 0.0
    %1832 = vmatprep.subr.mxu0 0.0
    %1833 = vmatpush1.msra.mxu0 0.0
    %1834 = vmatprep.subr.mxu0 0.0
    %1835 = vmatpush1.msra.mxu0 0.0
    %1836 = vmatprep.subr.mxu0 0.0
    %1837 = vmatpush1.msra.mxu0 0.0
    %1838 = vmatprep.subr.mxu0 0.0
    %1839 = vmatpush1.msra.mxu0 0.0
    %1840 = vmatprep.subr.mxu0 0.0
    %1841 = vmatpush1.msra.mxu0 0.0
    %1842 = vmatprep.subr.mxu0 0.0
    %1843 = vmatpush1.msra.mxu0 0.0
    %1844 = vmatprep.subr.mxu0 0.0
    %1845 = vmatpush1.msra.mxu0 0.0
    %1846 = vmatprep.subr.mxu0 0.0
    %1847 = vmatpush1.msra.mxu0 0.0
    %1848 = vmatprep.subr.mxu0 0.0
    %1849 = vmatpush1.msra.mxu0 0.0
    %1850 = vmatprep.subr.mxu0 0.0
    %1851 = vmatpush1.msra.mxu0 0.0
    %1852 = vmatprep.subr.mxu0 0.0
    %1853 = vmatpush1.msra.mxu0 0.0
    %1854 = vmatprep.subr.mxu0 0.0
    %1855 = vmatpush1.msra.mxu0 0.0
    %1856 = vmatprep.subr.mxu0 0.0
    %1857 = vmatpush1.msra.mxu0 0.0
    %1858 = vmatprep.subr.mxu0 0.0
    %1859 = vmatpush1.msra.mxu0 0.0
    %1860 = vmatprep.subr.mxu0 0.0
    %1861 = vmatpush1.msra.mxu0 0.0
    %1862 = vmatprep.subr.mxu0 0.0
    %1863 = vmatpush1.msra.mxu0 0.0
    %1864 = vmatprep.subr.mxu0 0.0
    %1865 = vmatpush1.msra.mxu0 0.0
    %1866 = vmatprep.subr.mxu0 0.0
    %1867 = vmatpush1.msra.mxu0 0.0
    %1868 = vmatprep.subr.mxu0 0.0
    %1869 = vmatpush1.msra.mxu0 0.0
    %1870 = vmatprep.subr.mxu0 0.0
    %1871 = vmatpush1.msra.mxu0 0.0
    %1872 = vmatprep.subr.mxu0 0.0
    %1873 = vmatpush1.msra.mxu0 0.0
    %1874 = vmatprep.subr.mxu0 0.0
    %1875 = vmatpush1.msra.mxu0 0.0
    %1876 = vmatprep.subr.mxu0 0.0
    %1877 = vmatpush1.msra.mxu0 0.0
    %1878 = vmatprep.subr.mxu0 0.0
    %1879 = vmatpush1.msra.mxu0 0.0
    %1880 = vmatprep.subr.mxu0 0.0
    %1881 = vmatpush1.msra.mxu0 0.0
    %1882 = vmatprep.subr.mxu0 0.0
    %1883 = vmatpush1.msra.mxu0 0.0
    %1884 = vmatprep.mubr.f32.mxu0 0.0
    %1885 = vmatmul.mubr.f32.gmra.mrb[0].mxu0 %v852
    %v1886 = vpop.f32.mrb[0].mxu0
    %v1887 = vadd.f32 0.0, %v1886
    %v1888 = vpop.f32.mrb[0].mxu0
    %1889 = vdwg.mxu0
    %v1890 = vadd.f32 %v1819, %v1887
    %v1891 = vxor.u32 %v1890, 2147483648
    %v1892 = vmul.f32 %v1891, 1.442695
    %v1893 = vpow.pop %v1892
    %v1894 = vadd.f32 %v1893, 1.0
    %v1895 = vrcp.pop %v1894
    %v1896 = vmul.f32 1.0, %v1895
    %v1897 = vtanh.pop %v1890
    %v1898 = vmul.f32 %v1896, 0.0
    %1900 = vrot.lane.b32.xlu0 %v1897, 32
    %v1901 = vpop.permute.xlu0 %1900
    %v1903 = vmul.f32 %v1896, %v1901
    %1905 = vrot.lane.b32.xlu0 %v1903, 32
    %v1906 = vpop.permute.xlu0 %1905
    %v1908 = vadd.f32 %v1898, %v1906
    %v1909 = vtanh.pop %v1908
    %1911 = vrot.lane.b32.xlu0 %v1909, 32
    %v1912 = vpop.permute.xlu0 %1911
    %v1914 = vmul.f32 %v1896, %v1912
    %v1915 = vsel %vm688, %v1782, %v1807
    %1917 = vrot.lane.b32.xlu0 %v1914, 64
    %v1918 = vpop.permute.xlu0 %1917
    %v1919 = vsel %vm82, %v1918, 0
    %1921 = vmatprep.subr.mxu0 0.0
    %1922 = vmatpush1.msra.mxu0 %v1815
    %1923 = vmatprep.subr.mxu0 0.0
    %1924 = vmatpush1.msra.mxu0 %v1816
    %1925 = vmatprep.subr.mxu0 0.0
    %1926 = vmatpush1.msra.mxu0 %v1817
    %1927 = vmatprep.subr.mxu0 0.0
    %1928 = vmatpush1.msra.mxu0 %v1818
    %1929 = vmatprep.subr.mxu0 0.0
    %1930 = vmatpush1.msra.mxu0 0.0
    %1931 = vmatprep.subr.mxu0 0.0
    %1932 = vmatpush1.msra.mxu0 0.0
    %1933 = vmatprep.subr.mxu0 0.0
    %1934 = vmatpush1.msra.mxu0 0.0
    %1935 = vmatprep.subr.mxu0 0.0
    %1936 = vmatpush1.msra.mxu0 0.0
    %1937 = vmatprep.subr.mxu0 0.0
    %1938 = vmatpush1.msra.mxu0 0.0
    %1939 = vmatprep.subr.mxu0 0.0
    %1940 = vmatpush1.msra.mxu0 0.0
    %1941 = vmatprep.subr.mxu0 0.0
    %1942 = vmatpush1.msra.mxu0 0.0
    %1943 = vmatprep.subr.mxu0 0.0
    %1944 = vmatpush1.msra.mxu0 0.0
    %1945 = vmatprep.subr.mxu0 0.0
    %1946 = vmatpush1.msra.mxu0 0.0
    %1947 = vmatprep.subr.mxu0 0.0
    %1948 = vmatpush1.msra.mxu0 0.0
    %1949 = vmatprep.subr.mxu0 0.0
    %1950 = vmatpush1.msra.mxu0 0.0
    %1951 = vmatprep.subr.mxu0 0.0
    %1952 = vmatpush1.msra.mxu0 0.0
    %1953 = vmatprep.subr.mxu0 0.0
    %1954 = vmatpush1.msra.mxu0 0.0
    %1955 = vmatprep.subr.mxu0 0.0
    %1956 = vmatpush1.msra.mxu0 0.0
    %1957 = vmatprep.subr.mxu0 0.0
    %1958 = vmatpush1.msra.mxu0 0.0
    %1959 = vmatprep.subr.mxu0 0.0
    %1960 = vmatpush1.msra.mxu0 0.0
    %1961 = vmatprep.subr.mxu0 0.0
    %1962 = vmatpush1.msra.mxu0 0.0
    %1963 = vmatprep.subr.mxu0 0.0
    %1964 = vmatpush1.msra.mxu0 0.0
    %1965 = vmatprep.subr.mxu0 0.0
    %1966 = vmatpush1.msra.mxu0 0.0
    %1967 = vmatprep.subr.mxu0 0.0
    %1968 = vmatpush1.msra.mxu0 0.0
    %1969 = vmatprep.subr.mxu0 0.0
    %1970 = vmatpush1.msra.mxu0 0.0
    %1971 = vmatprep.subr.mxu0 0.0
    %1972 = vmatpush1.msra.mxu0 0.0
    %1973 = vmatprep.subr.mxu0 0.0
    %1974 = vmatpush1.msra.mxu0 0.0
    %1975 = vmatprep.subr.mxu0 0.0
    %1976 = vmatpush1.msra.mxu0 0.0
    %1977 = vmatprep.subr.mxu0 0.0
    %1978 = vmatpush1.msra.mxu0 0.0
    %1979 = vmatprep.subr.mxu0 0.0
    %1980 = vmatpush1.msra.mxu0 0.0
    %1981 = vmatprep.subr.mxu0 0.0
    %1982 = vmatpush1.msra.mxu0 0.0
    %1983 = vmatprep.subr.mxu0 0.0
    %1984 = vmatpush1.msra.mxu0 0.0
    %1985 = vmatprep.mubr.f32.mxu0 0.0
    %1986 = vmatmul.mubr.f32.gmra.mrb[0].mxu0 %v1919
    %v1987 = vpop.f32.mrb[0].mxu0
    %v1988 = vadd.f32 0.0, %v1987
    %v1989 = vpop.f32.mrb[0].mxu0
    %1990 = vdwg.mxu0
    %v1991 = vadd.f32 %v1915, %v1988
    %v1992 = vxor.u32 %v1991, 2147483648
    %v1993 = vmul.f32 %v1992, 1.442695
    %v1994 = vpow.pop %v1993
    %v1995 = vadd.f32 %v1994, 1.0
    %v1996 = vrcp.pop %v1995
    %v1997 = vmul.f32 1.0, %v1996
    %v1998 = vtanh.pop %v1991
    %v1999 = vmul.f32 %v1997, %v1908
    %2001 = vrot.lane.b32.xlu0 %v1998, 32
    %v2002 = vpop.permute.xlu0 %2001
    %v2004 = vmul.f32 %v1997, %v2002
    %2006 = vrot.lane.b32.xlu0 %v2004, 32
    %v2007 = vpop.permute.xlu0 %2006
    %v2009 = vadd.f32 %v1999, %v2007
    %v2010 = vtanh.pop %v2009
    %2012 = vrot.lane.b32.xlu0 %v2010, 32
    %v2013 = vpop.permute.xlu0 %2012
    %v2015 = vmul.f32 %v1997, %v2013
    %v2016 = vsel %vm688, %v1787, %v1802
    %2018 = vrot.lane.b32.xlu0 %v2015, 64
    %v2019 = vpop.permute.xlu0 %2018
    %v2020 = vsel %vm82, %v2019, 0
    %2022 = vmatprep.subr.mxu0 0.0
    %2023 = vmatpush1.msra.mxu0 %v1815
    %2024 = vmatprep.subr.mxu0 0.0
    %2025 = vmatpush1.msra.mxu0 %v1816
    %2026 = vmatprep.subr.mxu0 0.0
    %2027 = vmatpush1.msra.mxu0 %v1817
    %2028 = vmatprep.subr.mxu0 0.0
    %2029 = vmatpush1.msra.mxu0 %v1818
    %2030 = vmatprep.subr.mxu0 0.0
    %2031 = vmatpush1.msra.mxu0 0.0
    %2032 = vmatprep.subr.mxu0 0.0
    %2033 = vmatpush1.msra.mxu0 0.0
    %2034 = vmatprep.subr.mxu0 0.0
    %2035 = vmatpush1.msra.mxu0 0.0
    %2036 = vmatprep.subr.mxu0 0.0
    %2037 = vmatpush1.msra.mxu0 0.0
    %2038 = vmatprep.subr.mxu0 0.0
    %2039 = vmatpush1.msra.mxu0 0.0
    %2040 = vmatprep.subr.mxu0 0.0
    %2041 = vmatpush1.msra.mxu0 0.0
    %2042 = vmatprep.subr.mxu0 0.0
    %2043 = vmatpush1.msra.mxu0 0.0
    %2044 = vmatprep.subr.mxu0 0.0
    %2045 = vmatpush1.msra.mxu0 0.0
    %2046 = vmatprep.subr.mxu0 0.0
    %2047 = vmatpush1.msra.mxu0 0.0
    %2048 = vmatprep.subr.mxu0 0.0
    %2049 = vmatpush1.msra.mxu0 0.0
    %2050 = vmatprep.subr.mxu0 0.0
    %2051 = vmatpush1.msra.mxu0 0.0
    %2052 = vmatprep.subr.mxu0 0.0
    %2053 = vmatpush1.msra.mxu0 0.0
    %2054 = vmatprep.subr.mxu0 0.0
    %2055 = vmatpush1.msra.mxu0 0.0
    %2056 = vmatprep.subr.mxu0 0.0
    %2057 = vmatpush1.msra.mxu0 0.0
    %2058 = vmatprep.subr.mxu0 0.0
    %2059 = vmatpush1.msra.mxu0 0.0
    %2060 = vmatprep.subr.mxu0 0.0
    %2061 = vmatpush1.msra.mxu0 0.0
    %2062 = vmatprep.subr.mxu0 0.0
    %2063 = vmatpush1.msra.mxu0 0.0
    %2064 = vmatprep.subr.mxu0 0.0
    %2065 = vmatpush1.msra.mxu0 0.0
    %2066 = vmatprep.subr.mxu0 0.0
    %2067 = vmatpush1.msra.mxu0 0.0
    %2068 = vmatprep.subr.mxu0 0.0
    %2069 = vmatpush1.msra.mxu0 0.0
    %2070 = vmatprep.subr.mxu0 0.0
    %2071 = vmatpush1.msra.mxu0 0.0
    %2072 = vmatprep.subr.mxu0 0.0
    %2073 = vmatpush1.msra.mxu0 0.0
    %2074 = vmatprep.subr.mxu0 0.0
    %2075 = vmatpush1.msra.mxu0 0.0
    %2076 = vmatprep.subr.mxu0 0.0
    %2077 = vmatpush1.msra.mxu0 0.0
    %2078 = vmatprep.subr.mxu0 0.0
    %2079 = vmatpush1.msra.mxu0 0.0
    %2080 = vmatprep.subr.mxu0 0.0
    %2081 = vmatpush1.msra.mxu0 0.0
    %2082 = vmatprep.subr.mxu0 0.0
    %2083 = vmatpush1.msra.mxu0 0.0
    %2084 = vmatprep.subr.mxu0 0.0
    %2085 = vmatpush1.msra.mxu0 0.0
    %2086 = vmatprep.mubr.f32.mxu0 0.0
    %2087 = vmatmul.mubr.f32.gmra.mrb[0].mxu0 %v2020
    %v2088 = vpop.f32.mrb[0].mxu0
    %v2089 = vadd.f32 0.0, %v2088
    %v2090 = vpop.f32.mrb[0].mxu0
    %2091 = vdwg.mxu0
    %v2092 = vadd.f32 %v2016, %v2089
    %v2093 = vxor.u32 %v2092, 2147483648
    %v2094 = vmul.f32 %v2093, 1.442695
    %v2095 = vpow.pop %v2094
    %v2096 = vadd.f32 %v2095, 1.0
    %v2097 = vrcp.pop %v2096
    %v2098 = vmul.f32 1.0, %v2097
    %v2099 = vtanh.pop %v2092
    %v2100 = vmul.f32 %v2098, %v2009
    %2102 = vrot.lane.b32.xlu0 %v2099, 32
    %v2103 = vpop.permute.xlu0 %2102
    %v2105 = vmul.f32 %v2098, %v2103
    %2107 = vrot.lane.b32.xlu0 %v2105, 32
    %v2108 = vpop.permute.xlu0 %2107
    %v2110 = vadd.f32 %v2100, %v2108
    %v2111 = vtanh.pop %v2110
    %2113 = vrot.lane.b32.xlu0 %v2111, 32
    %v2114 = vpop.permute.xlu0 %2113
    %v2116 = vmul.f32 %v2098, %v2114
    %v2117 = vsel %vm688, %v1792, %v1797
    %2119 = vrot.lane.b32.xlu0 %v2116, 64
    %v2120 = vpop.permute.xlu0 %2119
    %v2121 = vsel %vm82, %v2120, 0
    %2123 = vmatprep.subr.mxu0 0.0
    %2124 = vmatpush1.msra.mxu0 %v1815
    %2125 = vmatprep.subr.mxu0 0.0
    %2126 = vmatpush1.msra.mxu0 %v1816
    %2127 = vmatprep.subr.mxu0 0.0
    %2128 = vmatpush1.msra.mxu0 %v1817
    %2129 = vmatprep.subr.mxu0 0.0
    %2130 = vmatpush1.msra.mxu0 %v1818
    %2131 = vmatprep.subr.mxu0 0.0
    %2132 = vmatpush1.msra.mxu0 0.0
    %2133 = vmatprep.subr.mxu0 0.0
    %2134 = vmatpush1.msra.mxu0 0.0
    %2135 = vmatprep.subr.mxu0 0.0
    %2136 = vmatpush1.msra.mxu0 0.0
    %2137 = vmatprep.subr.mxu0 0.0
    %2138 = vmatpush1.msra.mxu0 0.0
    %2139 = vmatprep.subr.mxu0 0.0
    %2140 = vmatpush1.msra.mxu0 0.0
    %2141 = vmatprep.subr.mxu0 0.0
    %2142 = vmatpush1.msra.mxu0 0.0
    %2143 = vmatprep.subr.mxu0 0.0
    %2144 = vmatpush1.msra.mxu0 0.0
    %2145 = vmatprep.subr.mxu0 0.0
    %2146 = vmatpush1.msra.mxu0 0.0
    %2147 = vmatprep.subr.mxu0 0.0
    %2148 = vmatpush1.msra.mxu0 0.0
    %2149 = vmatprep.subr.mxu0 0.0
    %2150 = vmatpush1.msra.mxu0 0.0
    %2151 = vmatprep.subr.mxu0 0.0
    %2152 = vmatpush1.msra.mxu0 0.0
    %2153 = vmatprep.subr.mxu0 0.0
    %2154 = vmatpush1.msra.mxu0 0.0
    %2155 = vmatprep.subr.mxu0 0.0
    %2156 = vmatpush1.msra.mxu0 0.0
    %2157 = vmatprep.subr.mxu0 0.0
    %2158 = vmatpush1.msra.mxu0 0.0
    %2159 = vmatprep.subr.mxu0 0.0
    %2160 = vmatpush1.msra.mxu0 0.0
    %2161 = vmatprep.subr.mxu0 0.0
    %2162 = vmatpush1.msra.mxu0 0.0
    %2163 = vmatprep.subr.mxu0 0.0
    %2164 = vmatpush1.msra.mxu0 0.0
    %2165 = vmatprep.subr.mxu0 0.0
    %2166 = vmatpush1.msra.mxu0 0.0
    %2167 = vmatprep.subr.mxu0 0.0
    %2168 = vmatpush1.msra.mxu0 0.0
    %2169 = vmatprep.subr.mxu0 0.0
    %2170 = vmatpush1.msra.mxu0 0.0
    %2171 = vmatprep.subr.mxu0 0.0
    %2172 = vmatpush1.msra.mxu0 0.0
    %2173 = vmatprep.subr.mxu0 0.0
    %2174 = vmatpush1.msra.mxu0 0.0
    %2175 = vmatprep.subr.mxu0 0.0
    %2176 = vmatpush1.msra.mxu0 0.0
    %2177 = vmatprep.subr.mxu0 0.0
    %2178 = vmatpush1.msra.mxu0 0.0
    %2179 = vmatprep.subr.mxu0 0.0
    %2180 = vmatpush1.msra.mxu0 0.0
    %2181 = vmatprep.subr.mxu0 0.0
    %2182 = vmatpush1.msra.mxu0 0.0
    %2183 = vmatprep.subr.mxu0 0.0
    %2184 = vmatpush1.msra.mxu0 0.0
    %2185 = vmatprep.subr.mxu0 0.0
    %2186 = vmatpush1.msra.mxu0 0.0
    %2187 = vmatprep.mubr.f32.mxu0 0.0
    %2188 = vmatmul.mubr.f32.gmra.mrb[0].mxu0 %v2121
    %v2189 = vpop.f32.mrb[0].mxu0
    %v2190 = vadd.f32 0.0, %v2189
    %v2191 = vpop.f32.mrb[0].mxu0
    %2192 = vdwg.mxu0
    %v2193 = vadd.f32 %v2117, %v2190
    %v2194 = vxor.u32 %v2193, 2147483648
    %v2195 = vmul.f32 %v2194, 1.442695
    %v2196 = vpow.pop %v2195
    %v2197 = vadd.f32 %v2196, 1.0
    %v2198 = vrcp.pop %v2197
    %v2199 = vmul.f32 1.0, %v2198
    %v2200 = vtanh.pop %v2193
    %v2201 = vmul.f32 %v2199, %v2110
    %2203 = vrot.lane.b32.xlu0 %v2200, 32
    %v2204 = vpop.permute.xlu0 %2203
    %v2206 = vmul.f32 %v2199, %v2204
    %2208 = vrot.lane.b32.xlu0 %v2206, 32
    %v2209 = vpop.permute.xlu0 %2208
    %v2211 = vadd.f32 %v2201, %v2209
    %v2212 = vtanh.pop %v2211
    %2214 = vrot.lane.b32.xlu0 %v2212, 32
    %v2215 = vpop.permute.xlu0 %2214
    %v2217 = vmul.f32 %v2199, %v2215
    %v2218 = vsel %vm688, %v1797, %v1792
    %2220 = vrot.lane.b32.xlu0 %v2217, 64
    %v2221 = vpop.permute.xlu0 %2220
    %v2222 = vsel %vm82, %v2221, 0
    %2224 = vmatprep.subr.mxu0 0.0
    %2225 = vmatpush1.msra.mxu0 %v1815
    %2226 = vmatprep.subr.mxu0 0.0
    %2227 = vmatpush1.msra.mxu0 %v1816
    %2228 = vmatprep.subr.mxu0 0.0
    %2229 = vmatpush1.msra.mxu0 %v1817
    %2230 = vmatprep.subr.mxu0 0.0
    %2231 = vmatpush1.msra.mxu0 %v1818
    %2232 = vmatprep.subr.mxu0 0.0
    %2233 = vmatpush1.msra.mxu0 0.0
    %2234 = vmatprep.subr.mxu0 0.0
    %2235 = vmatpush1.msra.mxu0 0.0
    %2236 = vmatprep.subr.mxu0 0.0
    %2237 = vmatpush1.msra.mxu0 0.0
    %2238 = vmatprep.subr.mxu0 0.0
    %2239 = vmatpush1.msra.mxu0 0.0
    %2240 = vmatprep.subr.mxu0 0.0
    %2241 = vmatpush1.msra.mxu0 0.0
    %2242 = vmatprep.subr.mxu0 0.0
    %2243 = vmatpush1.msra.mxu0 0.0
    %2244 = vmatprep.subr.mxu0 0.0
    %2245 = vmatpush1.msra.mxu0 0.0
    %2246 = vmatprep.subr.mxu0 0.0
    %2247 = vmatpush1.msra.mxu0 0.0
    %2248 = vmatprep.subr.mxu0 0.0
    %2249 = vmatpush1.msra.mxu0 0.0
    %2250 = vmatprep.subr.mxu0 0.0
    %2251 = vmatpush1.msra.mxu0 0.0
    %2252 = vmatprep.subr.mxu0 0.0
    %2253 = vmatpush1.msra.mxu0 0.0
    %2254 = vmatprep.subr.mxu0 0.0
    %2255 = vmatpush1.msra.mxu0 0.0
    %2256 = vmatprep.subr.mxu0 0.0
    %2257 = vmatpush1.msra.mxu0 0.0
    %2258 = vmatprep.subr.mxu0 0.0
    %2259 = vmatpush1.msra.mxu0 0.0
    %2260 = vmatprep.subr.mxu0 0.0
    %2261 = vmatpush1.msra.mxu0 0.0
    %2262 = vmatprep.subr.mxu0 0.0
    %2263 = vmatpush1.msra.mxu0 0.0
    %2264 = vmatprep.subr.mxu0 0.0
    %2265 = vmatpush1.msra.mxu0 0.0
    %2266 = vmatprep.subr.mxu0 0.0
    %2267 = vmatpush1.msra.mxu0 0.0
    %2268 = vmatprep.subr.mxu0 0.0
    %2269 = vmatpush1.msra.mxu0 0.0
    %2270 = vmatprep.subr.mxu0 0.0
    %2271 = vmatpush1.msra.mxu0 0.0
    %2272 = vmatprep.subr.mxu0 0.0
    %2273 = vmatpush1.msra.mxu0 0.0
    %2274 = vmatprep.subr.mxu0 0.0
    %2275 = vmatpush1.msra.mxu0 0.0
    %2276 = vmatprep.subr.mxu0 0.0
    %2277 = vmatpush1.msra.mxu0 0.0
    %2278 = vmatprep.subr.mxu0 0.0
    %2279 = vmatpush1.msra.mxu0 0.0
    %2280 = vmatprep.subr.mxu0 0.0
    %2281 = vmatpush1.msra.mxu0 0.0
    %2282 = vmatprep.subr.mxu0 0.0
    %2283 = vmatpush1.msra.mxu0 0.0
    %2284 = vmatprep.subr.mxu0 0.0
    %2285 = vmatpush1.msra.mxu0 0.0
    %2286 = vmatprep.subr.mxu0 0.0
    %2287 = vmatpush1.msra.mxu0 0.0
    %2288 = vmatprep.mubr.f32.mxu0 0.0
    %2289 = vmatmul.mubr.f32.gmra.mrb[0].mxu0 %v2222
    %v2290 = vpop.f32.mrb[0].mxu0
    %v2291 = vadd.f32 0.0, %v2290
    %v2292 = vpop.f32.mrb[0].mxu0
    %2293 = vdwg.mxu0
    %v2294 = vadd.f32 %v2218, %v2291
    %v2295 = vxor.u32 %v2294, 2147483648
    %v2296 = vmul.f32 %v2295, 1.442695
    %v2297 = vpow.pop %v2296
    %v2298 = vadd.f32 %v2297, 1.0
    %v2299 = vrcp.pop %v2298
    %v2300 = vmul.f32 1.0, %v2299
    %v2301 = vtanh.pop %v2294
    %v2302 = vmul.f32 %v2300, %v2211
    %2304 = vrot.lane.b32.xlu0 %v2301, 32
    %v2305 = vpop.permute.xlu0 %2304
    %v2307 = vmul.f32 %v2300, %v2305
    %2309 = vrot.lane.b32.xlu0 %v2307, 32
    %v2310 = vpop.permute.xlu0 %2309
    %v2312 = vadd.f32 %v2302, %v2310
    %v2313 = vtanh.pop %v2312
    %2315 = vrot.lane.b32.xlu0 %v2313, 32
    %v2316 = vpop.permute.xlu0 %2315
    %v2318 = vmul.f32 %v2300, %v2316
    %v2319 = vsel %vm688, %v1802, %v1787
    %2321 = vrot.lane.b32.xlu0 %v2318, 64
    %v2322 = vpop.permute.xlu0 %2321
    %v2323 = vsel %vm82, %v2322, 0
    %2325 = vmatprep.subr.mxu0 0.0
    %2326 = vmatpush1.msra.mxu0 %v1815
    %2327 = vmatprep.subr.mxu0 0.0
    %2328 = vmatpush1.msra.mxu0 %v1816
    %2329 = vmatprep.subr.mxu0 0.0
    %2330 = vmatpush1.msra.mxu0 %v1817
    %2331 = vmatprep.subr.mxu0 0.0
    %2332 = vmatpush1.msra.mxu0 %v1818
    %2333 = vmatprep.subr.mxu0 0.0
    %2334 = vmatpush1.msra.mxu0 0.0
    %2335 = vmatprep.subr.mxu0 0.0
    %2336 = vmatpush1.msra.mxu0 0.0
    %2337 = vmatprep.subr.mxu0 0.0
    %2338 = vmatpush1.msra.mxu0 0.0
    %2339 = vmatprep.subr.mxu0 0.0
    %2340 = vmatpush1.msra.mxu0 0.0
    %2341 = vmatprep.subr.mxu0 0.0
    %2342 = vmatpush1.msra.mxu0 0.0
    %2343 = vmatprep.subr.mxu0 0.0
    %2344 = vmatpush1.msra.mxu0 0.0
    %2345 = vmatprep.subr.mxu0 0.0
    %2346 = vmatpush1.msra.mxu0 0.0
    %2347 = vmatprep.subr.mxu0 0.0
    %2348 = vmatpush1.msra.mxu0 0.0
    %2349 = vmatprep.subr.mxu0 0.0
    %2350 = vmatpush1.msra.mxu0 0.0
    %2351 = vmatprep.subr.mxu0 0.0
    %2352 = vmatpush1.msra.mxu0 0.0
    %2353 = vmatprep.subr.mxu0 0.0
    %2354 = vmatpush1.msra.mxu0 0.0
    %2355 = vmatprep.subr.mxu0 0.0
    %2356 = vmatpush1.msra.mxu0 0.0
    %2357 = vmatprep.subr.mxu0 0.0
    %2358 = vmatpush1.msra.mxu0 0.0
    %2359 = vmatprep.subr.mxu0 0.0
    %2360 = vmatpush1.msra.mxu0 0.0
    %2361 = vmatprep.subr.mxu0 0.0
    %2362 = vmatpush1.msra.mxu0 0.0
    %2363 = vmatprep.subr.mxu0 0.0
    %2364 = vmatpush1.msra.mxu0 0.0
    %2365 = vmatprep.subr.mxu0 0.0
    %2366 = vmatpush1.msra.mxu0 0.0
    %2367 = vmatprep.subr.mxu0 0.0
    %2368 = vmatpush1.msra.mxu0 0.0
    %2369 = vmatprep.subr.mxu0 0.0
    %2370 = vmatpush1.msra.mxu0 0.0
    %2371 = vmatprep.subr.mxu0 0.0
    %2372 = vmatpush1.msra.mxu0 0.0
    %2373 = vmatprep.subr.mxu0 0.0
    %2374 = vmatpush1.msra.mxu0 0.0
    %2375 = vmatprep.subr.mxu0 0.0
    %2376 = vmatpush1.msra.mxu0 0.0
    %2377 = vmatprep.subr.mxu0 0.0
    %2378 = vmatpush1.msra.mxu0 0.0
    %2379 = vmatprep.subr.mxu0 0.0
    %2380 = vmatpush1.msra.mxu0 0.0
    %2381 = vmatprep.subr.mxu0 0.0
    %2382 = vmatpush1.msra.mxu0 0.0
    %2383 = vmatprep.subr.mxu0 0.0
    %2384 = vmatpush1.msra.mxu0 0.0
    %2385 = vmatprep.subr.mxu0 0.0
    %2386 = vmatpush1.msra.mxu0 0.0
    %2387 = vmatprep.subr.mxu0 0.0
    %2388 = vmatpush1.msra.mxu0 0.0
    %2389 = vmatprep.mubr.f32.mxu0 0.0
    %2390 = vmatmul.mubr.f32.gmra.mrb[0].mxu0 %v2323
    %v2391 = vpop.f32.mrb[0].mxu0
    %v2392 = vadd.f32 0.0, %v2391
    %v2393 = vpop.f32.mrb[0].mxu0
    %2394 = vdwg.mxu0
    %v2395 = vadd.f32 %v2319, %v2392
    %v2396 = vxor.u32 %v2395, 2147483648
    %v2397 = vmul.f32 %v2396, 1.442695
    %v2398 = vpow.pop %v2397
    %v2399 = vadd.f32 %v2398, 1.0
    %v2400 = vrcp.pop %v2399
    %v2401 = vmul.f32 1.0, %v2400
    %v2402 = vtanh.pop %v2395
    %v2403 = vmul.f32 %v2401, %v2312
    %2405 = vrot.lane.b32.xlu0 %v2402, 32
    %v2406 = vpop.permute.xlu0 %2405
    %v2408 = vmul.f32 %v2401, %v2406
    %2410 = vrot.lane.b32.xlu0 %v2408, 32
    %v2411 = vpop.permute.xlu0 %2410
    %v2413 = vadd.f32 %v2403, %v2411
    %v2414 = vtanh.pop %v2413
    %2416 = vrot.lane.b32.xlu0 %v2414, 32
    %v2417 = vpop.permute.xlu0 %2416
    %v2419 = vmul.f32 %v2401, %v2417
    %v2420 = vsel %vm688, %v1807, %v1782
    %2422 = vrot.lane.b32.xlu0 %v2419, 64
    %v2423 = vpop.permute.xlu0 %2422
    %v2424 = vsel %vm82, %v2423, 0
    %2426 = vmatprep.subr.mxu0 0.0
    %2427 = vmatpush1.msra.mxu0 %v1815
    %2428 = vmatprep.subr.mxu0 0.0
    %2429 = vmatpush1.msra.mxu0 %v1816
    %2430 = vmatprep.subr.mxu0 0.0
    %2431 = vmatpush1.msra.mxu0 %v1817
    %2432 = vmatprep.subr.mxu0 0.0
    %2433 = vmatpush1.msra.mxu0 %v1818
    %2434 = vmatprep.subr.mxu0 0.0
    %2435 = vmatpush1.msra.mxu0 0.0
    %2436 = vmatprep.subr.mxu0 0.0
    %2437 = vmatpush1.msra.mxu0 0.0
    %2438 = vmatprep.subr.mxu0 0.0
    %2439 = vmatpush1.msra.mxu0 0.0
    %2440 = vmatprep.subr.mxu0 0.0
    %2441 = vmatpush1.msra.mxu0 0.0
    %2442 = vmatprep.subr.mxu0 0.0
    %2443 = vmatpush1.msra.mxu0 0.0
    %2444 = vmatprep.subr.mxu0 0.0
    %2445 = vmatpush1.msra.mxu0 0.0
    %2446 = vmatprep.subr.mxu0 0.0
    %2447 = vmatpush1.msra.mxu0 0.0
    %2448 = vmatprep.subr.mxu0 0.0
    %2449 = vmatpush1.msra.mxu0 0.0
    %2450 = vmatprep.subr.mxu0 0.0
    %2451 = vmatpush1.msra.mxu0 0.0
    %2452 = vmatprep.subr.mxu0 0.0
    %2453 = vmatpush1.msra.mxu0 0.0
    %2454 = vmatprep.subr.mxu0 0.0
    %2455 = vmatpush1.msra.mxu0 0.0
    %2456 = vmatprep.subr.mxu0 0.0
    %2457 = vmatpush1.msra.mxu0 0.0
    %2458 = vmatprep.subr.mxu0 0.0
    %2459 = vmatpush1.msra.mxu0 0.0
    %2460 = vmatprep.subr.mxu0 0.0
    %2461 = vmatpush1.msra.mxu0 0.0
    %2462 = vmatprep.subr.mxu0 0.0
    %2463 = vmatpush1.msra.mxu0 0.0
    %2464 = vmatprep.subr.mxu0 0.0
    %2465 = vmatpush1.msra.mxu0 0.0
    %2466 = vmatprep.subr.mxu0 0.0
    %2467 = vmatpush1.msra.mxu0 0.0
    %2468 = vmatprep.subr.mxu0 0.0
    %2469 = vmatpush1.msra.mxu0 0.0
    %2470 = vmatprep.subr.mxu0 0.0
    %2471 = vmatpush1.msra.mxu0 0.0
    %2472 = vmatprep.subr.mxu0 0.0
    %2473 = vmatpush1.msra.mxu0 0.0
    %2474 = vmatprep.subr.mxu0 0.0
    %2475 = vmatpush1.msra.mxu0 0.0
    %2476 = vmatprep.subr.mxu0 0.0
    %2477 = vmatpush1.msra.mxu0 0.0
    %2478 = vmatprep.subr.mxu0 0.0
    %2479 = vmatpush1.msra.mxu0 0.0
    %2480 = vmatprep.subr.mxu0 0.0
    %2481 = vmatpush1.msra.mxu0 0.0
    %2482 = vmatprep.subr.mxu0 0.0
    %2483 = vmatpush1.msra.mxu0 0.0
    %2484 = vmatprep.subr.mxu0 0.0
    %2485 = vmatpush1.msra.mxu0 0.0
    %2486 = vmatprep.subr.mxu0 0.0
    %2487 = vmatpush1.msra.mxu0 0.0
    %2488 = vmatprep.subr.mxu0 0.0
    %2489 = vmatpush1.msra.mxu0 0.0
    %2490 = vmatprep.mubr.f32.mxu0 0.0
    %2491 = vmatmul.mubr.f32.gmra.mrb[0].mxu0 %v2424
    %v2492 = vpop.f32.mrb[0].mxu0
    %v2493 = vadd.f32 0.0, %v2492
    %v2494 = vpop.f32.mrb[0].mxu0
    %2495 = vdwg.mxu0
    %v2496 = vadd.f32 %v2420, %v2493
    %v2497 = vxor.u32 %v2496, 2147483648
    %v2498 = vmul.f32 %v2497, 1.442695
    %v2499 = vpow.pop %v2498
    %v2500 = vadd.f32 %v2499, 1.0
    %v2501 = vrcp.pop %v2500
    %v2502 = vmul.f32 1.0, %v2501
    %v2503 = vtanh.pop %v2496
    %v2504 = vmul.f32 %v2502, %v2413
    %2506 = vrot.lane.b32.xlu0 %v2503, 32
    %v2507 = vpop.permute.xlu0 %2506
    %v2509 = vmul.f32 %v2502, %v2507
    %2511 = vrot.lane.b32.xlu0 %v2509, 32
    %v2512 = vpop.permute.xlu0 %2511
    %v2514 = vadd.f32 %v2504, %v2512
    %v2515 = vtanh.pop %v2514
    %2517 = vrot.lane.b32.xlu0 %v2515, 32
    %v2518 = vpop.permute.xlu0 %2517
    %v2520 = vmul.f32 %v2502, %v2518
    %v2521 = vsel %vm688, %v1812, %v1777
    %2523 = vrot.lane.b32.xlu0 %v2520, 64
    %v2524 = vpop.permute.xlu0 %2523
    %v2525 = vsel %vm82, %v2524, 0
    %2527 = vmatprep.subr.mxu0 0.0
    %2528 = vmatpush1.msra.mxu0 %v1815
    %2529 = vmatprep.subr.mxu0 0.0
    %2530 = vmatpush1.msra.mxu0 %v1816
    %2531 = vmatprep.subr.mxu0 0.0
    %2532 = vmatpush1.msra.mxu0 %v1817
    %2533 = vmatprep.subr.mxu0 0.0
    %2534 = vmatpush1.msra.mxu0 %v1818
    %2535 = vmatprep.subr.mxu0 0.0
    %2536 = vmatpush1.msra.mxu0 0.0
    %2537 = vmatprep.subr.mxu0 0.0
    %2538 = vmatpush1.msra.mxu0 0.0
    %2539 = vmatprep.subr.mxu0 0.0
    %2540 = vmatpush1.msra.mxu0 0.0
    %2541 = vmatprep.subr.mxu0 0.0
    %2542 = vmatpush1.msra.mxu0 0.0
    %2543 = vmatprep.subr.mxu0 0.0
    %2544 = vmatpush1.msra.mxu0 0.0
    %2545 = vmatprep.subr.mxu0 0.0
    %2546 = vmatpush1.msra.mxu0 0.0
    %2547 = vmatprep.subr.mxu0 0.0
    %2548 = vmatpush1.msra.mxu0 0.0
    %2549 = vmatprep.subr.mxu0 0.0
    %2550 = vmatpush1.msra.mxu0 0.0
    %2551 = vmatprep.subr.mxu0 0.0
    %2552 = vmatpush1.msra.mxu0 0.0
    %2553 = vmatprep.subr.mxu0 0.0
    %2554 = vmatpush1.msra.mxu0 0.0
    %2555 = vmatprep.subr.mxu0 0.0
    %2556 = vmatpush1.msra.mxu0 0.0
    %2557 = vmatprep.subr.mxu0 0.0
    %2558 = vmatpush1.msra.mxu0 0.0
    %2559 = vmatprep.subr.mxu0 0.0
    %2560 = vmatpush1.msra.mxu0 0.0
    %2561 = vmatprep.subr.mxu0 0.0
    %2562 = vmatpush1.msra.mxu0 0.0
    %2563 = vmatprep.subr.mxu0 0.0
    %2564 = vmatpush1.msra.mxu0 0.0
    %2565 = vmatprep.subr.mxu0 0.0
    %2566 = vmatpush1.msra.mxu0 0.0
    %2567 = vmatprep.subr.mxu0 0.0
    %2568 = vmatpush1.msra.mxu0 0.0
    %2569 = vmatprep.subr.mxu0 0.0
    %2570 = vmatpush1.msra.mxu0 0.0
    %2571 = vmatprep.subr.mxu0 0.0
    %2572 = vmatpush1.msra.mxu0 0.0
    %2573 = vmatprep.subr.mxu0 0.0
    %2574 = vmatpush1.msra.mxu0 0.0
    %2575 = vmatprep.subr.mxu0 0.0
    %2576 = vmatpush1.msra.mxu0 0.0
    %2577 = vmatprep.subr.mxu0 0.0
    %2578 = vmatpush1.msra.mxu0 0.0
    %2579 = vmatprep.subr.mxu0 0.0
    %2580 = vmatpush1.msra.mxu0 0.0
    %2581 = vmatprep.subr.mxu0 0.0
    %2582 = vmatpush1.msra.mxu0 0.0
    %2583 = vmatprep.subr.mxu0 0.0
    %2584 = vmatpush1.msra.mxu0 0.0
    %2585 = vmatprep.subr.mxu0 0.0
    %2586 = vmatpush1.msra.mxu0 0.0
    %2587 = vmatprep.subr.mxu0 0.0
    %2588 = vmatpush1.msra.mxu0 0.0
    %2589 = vmatprep.subr.mxu0 0.0
    %2590 = vmatpush1.msra.mxu0 0.0
    %2591 = vmatprep.mubr.f32.mxu0 0.0
    %2592 = vmatmul.mubr.f32.gmra.mrb[0].mxu0 %v2525
    %v2593 = vpop.f32.mrb[0].mxu0
    %v2594 = vadd.f32 0.0, %v2593
    %v2595 = vpop.f32.mrb[0].mxu0
    %2596 = vdwg.mxu0
    %v2597 = vadd.f32 %v2521, %v2594
    %v2598 = vxor.u32 %v2597, 2147483648
    %v2599 = vmul.f32 %v2598, 1.442695
    %v2600 = vpow.pop %v2599
    %v2601 = vadd.f32 %v2600, 1.0
    %v2602 = vrcp.pop %v2601
    %v2603 = vmul.f32 1.0, %v2602
    %v2604 = vtanh.pop %v2597
    %v2605 = vmul.f32 %v2603, %v2514
    %2607 = vrot.lane.b32.xlu0 %v2604, 32
    %v2608 = vpop.permute.xlu0 %2607
    %v2610 = vmul.f32 %v2603, %v2608
    %2612 = vrot.lane.b32.xlu0 %v2610, 32
    %v2613 = vpop.permute.xlu0 %2612
    %v2615 = vadd.f32 %v2605, %v2613
    %v2616 = vtanh.pop %v2615
    %2618 = vrot.lane.b32.xlu0 %v2616, 32
    %v2619 = vpop.permute.xlu0 %2618
    %v2621 = vmul.f32 %v2603, %v2619
    %2623 = vrot.lane.b32.xlu0 %v2621, 64
    %v2624 = vpop.permute.xlu0 %2623
    %v2626 = vsel %vm82, %v2624, %v2615
    %v2627 = vld [vmem:[%s9] sm:$0xff]
    %v2628 = vld [vmem:[%s9 + $0x8] sm:$0xff]
    %v2629 = vld [vmem:[%s9 + $0x10] sm:$0xff]
    %v2630 = vld [vmem:[%s9 + $0x18] sm:$0xff]
    %v2631 = vld [vmem:[%s9 + $0x20] sm:$0xff]
    %v2632 = vld [vmem:[%s9 + $0x28] sm:$0xff]
    %v2633 = vld [vmem:[%s9 + $0x30] sm:$0xff]
    %v2634 = vld [vmem:[%s9 + $0x38] sm:$0xff]
    %v2635 = vld [vmem:[%s10] sm:$0x1]
    %v2637 = vlaneseq
    %v2638 = vshrl.u32 %v2637, 7
    %v2639 = vsub.s32 0, %v2638
    %v2640 = vrot.slane %v2635, %v2639
    %vm2642 = vcmask 523264
    %v2644 = vsel %vm2642, %v2626, 0
    %2646 = vmatprep.subr.mxu0 0.0
    %2647 = vmatpush1.msra.mxu0 %v2627
    %2648 = vmatprep.subr.mxu0 0.0
    %2649 = vmatpush1.msra.mxu0 %v2628
    %2650 = vmatprep.subr.mxu0 0.0
    %2651 = vmatpush1.msra.mxu0 %v2629
    %2652 = vmatprep.subr.mxu0 0.0
    %2653 = vmatpush1.msra.mxu0 %v2630
    %2654 = vmatprep.subr.mxu0 0.0
    %2655 = vmatpush1.msra.mxu0 %v2631
    %2656 = vmatprep.subr.mxu0 0.0
    %2657 = vmatpush1.msra.mxu0 %v2632
    %2658 = vmatprep.subr.mxu0 0.0
    %2659 = vmatpush1.msra.mxu0 %v2633
    %2660 = vmatprep.subr.mxu0 0.0
    %2661 = vmatpush1.msra.mxu0 %v2634
    %2662 = vmatprep.subr.mxu0 0.0
    %2663 = vmatpush1.msra.mxu0 0.0
    %2664 = vmatprep.subr.mxu0 0.0
    %2665 = vmatpush1.msra.mxu0 0.0
    %2666 = vmatprep.subr.mxu0 0.0
    %2667 = vmatpush1.msra.mxu0 0.0
    %2668 = vmatprep.subr.mxu0 0.0
    %2669 = vmatpush1.msra.mxu0 0.0
    %2670 = vmatprep.subr.mxu0 0.0
    %2671 = vmatpush1.msra.mxu0 0.0
    %2672 = vmatprep.subr.mxu0 0.0
    %2673 = vmatpush1.msra.mxu0 0.0
    %2674 = vmatprep.subr.mxu0 0.0
    %2675 = vmatpush1.msra.mxu0 0.0
    %2676 = vmatprep.subr.mxu0 0.0
    %2677 = vmatpush1.msra.mxu0 0.0
    %2678 = vmatprep.subr.mxu0 0.0
    %2679 = vmatpush1.msra.mxu0 0.0
    %2680 = vmatprep.subr.mxu0 0.0
    %2681 = vmatpush1.msra.mxu0 0.0
    %2682 = vmatprep.subr.mxu0 0.0
    %2683 = vmatpush1.msra.mxu0 0.0
    %2684 = vmatprep.subr.mxu0 0.0
    %2685 = vmatpush1.msra.mxu0 0.0
    %2686 = vmatprep.subr.mxu0 0.0
    %2687 = vmatpush1.msra.mxu0 0.0
    %2688 = vmatprep.subr.mxu0 0.0
    %2689 = vmatpush1.msra.mxu0 0.0
    %2690 = vmatprep.subr.mxu0 0.0
    %2691 = vmatpush1.msra.mxu0 0.0
    %2692 = vmatprep.subr.mxu0 0.0
    %2693 = vmatpush1.msra.mxu0 0.0
    %2694 = vmatprep.subr.mxu0 0.0
    %2695 = vmatpush1.msra.mxu0 0.0
    %2696 = vmatprep.subr.mxu0 0.0
    %2697 = vmatpush1.msra.mxu0 0.0
    %2698 = vmatprep.subr.mxu0 0.0
    %2699 = vmatpush1.msra.mxu0 0.0
    %2700 = vmatprep.subr.mxu0 0.0
    %2701 = vmatpush1.msra.mxu0 0.0
    %2702 = vmatprep.subr.mxu0 0.0
    %2703 = vmatpush1.msra.mxu0 0.0
    %2704 = vmatprep.subr.mxu0 0.0
    %2705 = vmatpush1.msra.mxu0 0.0
    %2706 = vmatprep.subr.mxu0 0.0
    %2707 = vmatpush1.msra.mxu0 0.0
    %2708 = vmatprep.subr.mxu0 0.0
    %2709 = vmatpush1.msra.mxu0 0.0
    %2710 = vmatprep.mubr.f32.mxu0 0.0
    %2711 = vmatmul.mubr.f32.gmra.mrb[0].mxu0 %v2644
    %v2712 = vpop.f32.mrb[0].mxu0
    %v2713 = vadd.f32 %v2640, %v2712
    %v2714 = vpop.f32.mrb[0].mxu0
    %2715 = vdwg.mxu0
    %vm2716 = vcmask 130048
    %2717 = vst.msk [vmem:[#allocation7] sm:$0xff] %vm2716, %v2713
    // Predicated region
    $region54: #{tpu_custom_call.1} parent=1 // pred_check
      _
    $region55: #{tpu_custom_call.1} parent=1 // pred_check_branch
      %2719 = sbr.rel (0) target = $region57
    $region56: #{tpu_custom_call.1} parent=1 // pred_region
      %s2721 = ssub.s32 128, 128
      %2722 = vsyncadd [#allocation4], %s2721
      %s2724 = sshll.u32 [#allocation7], 4
      %s2725 = int_to_ptr.vmem [resolvable:$true] %s2724
      %2727 = dma.vmem_to_hbm [thread:$0]  %s2725, 128, %s11, [#allocation4]
    $region57: #{tpu_custom_call.1} parent=1 // pred_fallthru
      _
    // Predicated region
    $region58: #{tpu_custom_call.1} parent=1 // pred_check
      _
    $region59: #{tpu_custom_call.1} parent=1 // pred_check_branch
      %2729 = sbr.rel (0) target = $region61
    $region60: #{tpu_custom_call.1} parent=1 // pred_region
      %2730 = dma.done [#allocation4], 128
    $region61: #{tpu_custom_call.1} parent=1 // pred_fallthru
      _
    %2731 = vsyncpa [#allocation3], 1
    %2732 = vsyncpa [#allocation6], 1
    %2733 = vsyncpa [#allocation4], 1

</llo_original>
